<compile_context>
chip_gen: v6e
topology: v6e:2x2x1
jax: 0.10.0
libtpu: 0.0.40
codegen_flags: <defaults>
</compile_context>

<pallas_src>
import numpy as np
import jax
import jax.numpy as jnp
from jax.experimental import pallas as pl
from jax.experimental.pallas import tpu as pltpu

IMG = 28          # the architecture requires 28x28 inputs (flatten size 32)
LANES = 128       # TPU lane width; packed activations are padded to this
TB_MAX = 128      # max batch tile per grid step (VMEM-safe on v7x's 64 MiB)


def _round_up(v, m):
    return ((v + m - 1) // m) * m


# ---------------------------------------------------------------------------
# The single fused kernel
# ---------------------------------------------------------------------------
def _fused_forward_kernel(x_ref,
                          c1w_ref, c1b_ref,
                          c2w_ref, c2b_ref,
                          c3w_ref, c3b_ref,
                          f1w_ref, f1b_ref,
                          f2w_ref, f2b_ref,
                          f3w_ref, f3b_ref,
                          o_ref):
    f32, bf16 = jnp.float32, jnp.bfloat16
    tb = x_ref.shape[0]

    def conv_relu_wpool(x3d, w_ref, b_ref):
        # x3d:   (tb, H, K)      f32  (lanes are width-major, channel-minor)
        # w_ref: (KH, K, 2*NP)   bf16 (even pooled cols | odd pooled cols)
        # b_ref: (1, NP)         f32  (bias tiled along the pooled width)
        # returns (tb, Ho, NP)   f32  after conv + bias + ReLU + width-pool
        kh, k, n2 = w_ref.shape
        npool = n2 // 2
        ho = x3d.shape[1] - kh + 1
        acc = None
        for di in range(kh):            # im2col over the KH row taps
            # batch folded into the matmul M dimension -> one big 2-D MXU dot
            lhs = x3d[:, di:di + ho, :].reshape(tb * ho, k).astype(bf16)
            part = jnp.dot(lhs, w_ref[di], preferred_element_type=f32)
            acc = part if acc is None else acc + part
        # width half of the 2x2 max-pool (even|odd column blocks) + bias + ReLU
        y = jnp.maximum(jnp.maximum(acc[:, :npool], acc[:, npool:])
                        + b_ref[...], 0.0)
        return y.reshape(tb, ho, npool)

    def hpool_rows(y3):
        # height half of the 2x2 pool as a vectorized pair-max per pooled row.
        return [jnp.maximum(y3[:, 2 * h:2 * h + 1, :],
                            y3[:, 2 * h + 1:2 * h + 2, :])
                for h in range(y3.shape[1] // 2)]

    def fc(h2d, w_ref, b_ref, relu):
        # h2d: (tb, K) f32; w_ref: (K, N) bf16; b_ref: (1, N) f32
        y = jnp.dot(h2d.astype(bf16), w_ref[...],
                    preferred_element_type=f32) + b_ref[...]
        return jnp.maximum(y, 0.0) if relu else y

    x = x_ref[...].astype(f32)                                   # (tb, 28, 28)

    # conv1 + ReLU + 2x2 pool : (tb, 28, 28) -> (tb, 12, 128)
    h3 = jnp.concatenate(hpool_rows(conv_relu_wpool(x, c1w_ref, c1b_ref)),
                         axis=1)

    # conv2 + ReLU + 2x2 pool : (tb, 12, 128) -> (tb, 4*128); the pooled rows
    # are concatenated along lanes so conv3 sees each image as ONE wide row.
    rows = hpool_rows(conv_relu_wpool(h3, c2w_ref, c2b_ref))
    h2 = jnp.concatenate([r.reshape(tb, r.shape[-1]) for r in rows], axis=-1)

    # conv3 + ReLU + 2x2 pool + flatten as ONE matmul: (tb, 512) -> (tb, 128)
    acc3 = jnp.dot(h2.astype(bf16), c3w_ref[...], preferred_element_type=f32)
    npool3 = c3b_ref.shape[-1]
    m3 = acc3[:, :npool3]
    for q in range(1, acc3.shape[-1] // npool3):
        m3 = jnp.maximum(m3, acc3[:, q * npool3:(q + 1) * npool3])
    h1 = jnp.maximum(m3 + c3b_ref[...], 0.0)                      # (tb, 128)

    # fc1 -> fc2 -> fc3 (K/N padded to 128 lanes; padded lanes stay zero)
    h1 = fc(h1, f1w_ref, f1b_ref, relu=True)
    h1 = fc(h1, f2w_ref, f2b_ref, relu=True)
    o_ref[...] = fc(h1, f3w_ref, f3b_ref, relu=False).astype(o_ref.dtype)


# ---------------------------------------------------------------------------
# One-time host-side parameter repacking (index glue only, no math)
# ---------------------------------------------------------------------------
def _pack_conv(w, b, H, W, k_in):
    """PyTorch conv weight (Cout,Cin,KH,KW)+bias -> per-row-tap matmul layout.

    Input rows to this conv are (width-major, channel-minor) over k_in lanes,
    of which only the first W*Cin are meaningful (the rest are zero).
    Returns:
      m  : (KH, k_in, 2*np_pad) bf16 -- column block 0 produces the EVEN pooled
           output columns, block 1 the ODD ones (the width half of the 2x2
           max-pool becomes a single vector max in the kernel epilogue).
      bt : (1, np_pad) f32 bias tiled along the pooled width (zero in padding).
      np_pad : padded pooled row width (== k_in of the next layer).
    """
    w = np.asarray(jax.device_get(w), np.float32)
    b = np.asarray(jax.device_get(b), np.float32)
    cout, cin, kh, kw = w.shape
    assert W * cin <= k_in
    wo, ho = W - kw + 1, H - kh + 1
    assert wo % 2 == 0 and ho % 2 == 0
    wp_n = wo // 2
    np_real = wp_n * cout
    np_pad = _round_up(np_real, LANES)
    m = np.zeros((kh, k_in, 2 * np_pad), np.float32)
    for di in range(kh):
        for dj in range(kw):
            tap = w[:, :, di, dj].T                     # (Cin, Cout)
            for wp in range(wp_n):
                col = wp * cout
                wi = 2 * wp + dj                        # even output column
                m[di, wi * cin:(wi + 1) * cin, col:col + cout] = tap
                wi = 2 * wp + 1 + dj                    # odd output column
                m[di, wi * cin:(wi + 1) * cin,
                  np_pad + col:np_pad + col + cout] = tap
    bt = np.zeros((1, np_pad), np.float32)
    bt[0, :np_real] = np.tile(b, wp_n)
    return jnp.asarray(m, jnp.bfloat16), jnp.asarray(bt), np_pad


def _pack_conv3_full(w, b, H, W, k_in):
    """Conv3 + ReLU + 2x2 pool + flatten collapsed into a single matmul.

    The conv3 input (one image) reaches the kernel as ONE row of H*k_in lanes
    (row-major; lane = r*k_in + wi*Cin + ci).  The conv3 output is only 2x2
    (pooled to 1x1), so each of the 4 output positions is a linear functional
    of that row: they become 4 column blocks of one weight matrix, and the
    whole 2x2 max-pool is a lane-blockwise max in the kernel.
    Returns m: (H*k_in, 4*np_pad) bf16, bt: (1, np_pad) f32, np_pad.
    """
    w = np.asarray(jax.device_get(w), np.float32)
    b = np.asarray(jax.device_get(b), np.float32)
    cout, cin, kh, kw = w.shape
    ho, wo = H - kh + 1, W - kw + 1
    assert ho == 2 and wo == 2 and W * cin <= k_in
    np_pad = _round_up(cout, LANES)
    m = np.zeros((H * k_in, (ho * wo) * np_pad), np.float32)
    for ro in range(ho):
        for co_w in range(wo):
            q = ro * wo + co_w
            for di in range(kh):
                for dj in range(kw):
                    tap = w[:, :, di, dj].T             # (Cin, Cout)
                    r, wi = ro + di, co_w + dj
                    lane0 = r * k_in + wi * cin
                    m[lane0:lane0 + cin, q * np_pad:q * np_pad + cout] = tap
    bt = np.zeros((1, np_pad), np.float32)
    bt[0, :cout] = b
    return jnp.asarray(m, jnp.bfloat16), jnp.asarray(bt), np_pad


def _pack_fc(w, b, k_in, n_pad):
    """PyTorch Linear weight (N, K) + bias -> zero-padded (k_in, n_pad) bf16."""
    w = np.asarray(jax.device_get(w), np.float32)
    b = np.asarray(jax.device_get(b), np.float32)
    n_real, k_real = w.shape
    assert k_real <= k_in and n_real <= n_pad
    m = np.zeros((k_in, n_pad), np.float32)
    m[:k_real, :n_real] = w.T
    bt = np.zeros((1, n_pad), np.float32)
    bt[0, :n_real] = b
    return jnp.asarray(m, jnp.bfloat16), jnp.asarray(bt)


def prepare_params(params):
    c1w, c1b, k2 = _pack_conv(params["conv1_w"], params["conv1_b"], 28, 28, 28)
    c2w, c2b, k3 = _pack_conv(params["conv2_w"], params["conv2_b"], 12, 12, k2)
    c3w, c3b, kf = _pack_conv3_full(params["conv3_w"], params["conv3_b"],
                                    4, 4, k3)
    f1w, f1b = _pack_fc(params["fc1_w"], params["fc1_b"], kf, LANES)
    f2w, f2b = _pack_fc(params["fc2_w"], params["fc2_b"], LANES, LANES)
    f3w, f3b = _pack_fc(params["fc3_w"], params["fc3_b"], LANES, LANES)
    return {"c1w": c1w, "c1b": c1b, "c2w": c2w, "c2b": c2b,
            "c3w": c3w, "c3b": c3b,
            "f1w": f1w, "f1b": f1b, "f2w": f2w, "f2b": f2b,
            "f3w": f3w, "f3b": f3b}


# ---------------------------------------------------------------------------
# Forward pass wrapper
# ---------------------------------------------------------------------------
def _full_spec(a):
    nd = a.ndim
    return pl.BlockSpec(a.shape, lambda i: (0,) * nd)


@jax.jit
def mauro_mnist_convnet(prepped, x_nchw):
    n = x_nchw.shape[0]
    # NCHW with C=1 -> (N, 28, 28); bf16 DMA halves the dominant HBM traffic.
    x = x_nchw.reshape(n, IMG, IMG).astype(jnp.bfloat16)
    tb = min(TB_MAX, _round_up(n, 8))          # adaptive batch tile
    n_pad = _round_up(n, tb)
    if n_pad != n:
        x = jnp.pad(x, ((0, n_pad - n), (0, 0), (0, 0)))

    weights = (prepped["c1w"], prepped["c1b"], prepped["c2w"], prepped["c2b"],
               prepped["c3w"], prepped["c3b"],
               prepped["f1w"], prepped["f1b"], prepped["f2w"], prepped["f2b"],
               prepped["f3w"], prepped["f3b"])

    out = pl.pallas_call(
        _fused_forward_kernel,
        out_shape=jax.ShapeDtypeStruct((n_pad, LANES), jnp.float32),
        grid_spec=pltpu.PrefetchScalarGridSpec(
            num_scalar_prefetch=0,
            grid=(n_pad // tb,),
            in_specs=[pl.BlockSpec((tb, IMG, IMG), lambda i: (i, 0, 0))]
                     + [_full_spec(w) for w in weights],
            out_specs=pl.BlockSpec((tb, LANES), lambda i: (i, 0)),
        ),
        compiler_params=pltpu.CompilerParams(
            dimension_semantics=("parallel",),
            vmem_limit_bytes=48 * 1024 * 1024,
        ),
    )(x, *weights)
    return out[:n, :10]                        # logits live in lanes 0..9


# ---------------------------------------------------------------------------
# Demo / self-check
# ---------------------------------------------------------------------------
def init_params(key):
    ks = jax.random.split(key, 12)

    def w(k, shape, scale=0.1):
        return (scale * jax.random.normal(k, shape)).astype(jnp.float32)

    # con_fc1 (Linear 32 -> 30) exists in __init__ but is unused in forward().
    return {
        "conv1_w": w(ks[0], (6, 1, 5, 5)),   "conv1_b": w(ks[1], (6,)),
        "conv2_w": w(ks[2], (16, 6, 5, 5)),  "conv2_b": w(ks[3], (16,)),
        "conv3_w": w(ks[4], (32, 16, 3, 3)), "conv3_b": w(ks[5], (32,)),
        "fc1_w":   w(ks[6], (25, 32)),       "fc1_b":   w(ks[7], (25,)),
        "fc2_w":   w(ks[8], (20, 25)),       "fc2_b":   w(ks[9], (20,)),
        "fc3_w":   w(ks[10], (10, 20)),      "fc3_b":   w(ks[11], (10,)),
    }


def reference_forward(params, x_nchw):
    """Pure-JAX/XLA reference with the same semantics as the PyTorch module."""
    def conv(x, w, b):
        y = jax.lax.conv_general_dilated(
            x, w, window_strides=(1, 1), padding="VALID",
            dimension_numbers=("NCHW", "OIHW", "NCHW"))
        return y + b.reshape(1, -1, 1, 1)

    def pool(x):
        return jax.lax.reduce_window(x, -jnp.inf, jax.lax.max,
                                     (1, 1, 2, 2), (1, 1, 2, 2), "VALID")

    x = pool(jax.nn.relu(conv(x_nchw, params["conv1_w"], params["conv1_b"])))
    x = pool(jax.nn.relu(conv(x, params["conv2_w"], params["conv2_b"])))
    x = pool(jax.nn.relu(conv(x, params["conv3_w"], params["conv3_b"])))
    x = x.reshape(-1, 32)
    x = jax.nn.relu(x @ params["fc1_w"].T + params["fc1_b"])
    x = jax.nn.relu(x @ params["fc2_w"].T + params["fc2_b"])
    return x @ params["fc3_w"].T + params["fc3_b"]


if __name__ == "__main__":
    key = jax.random.PRNGKey(0)
    pkey, xkey = jax.random.split(key)
    params = init_params(pkey)

    # Snap params/inputs to bf16-representable f32 so the only precision
    # difference vs the pure-f32 XLA reference is the bf16 rounding of the
    # intermediate activations fed to the MXU (accumulation stays f32).
    snap = lambda a: a.astype(jnp.bfloat16).astype(jnp.float32)
    params = jax.tree_util.tree_map(snap, params)
    x = snap(jax.random.normal(xkey, (2, 1, IMG, IMG), dtype=jnp.float32))

    prepped = prepare_params(params)
    out = jax.block_until_ready(mauro_mnist_convnet(prepped, x))

    assert out.shape == (2, 10), out.shape
    assert bool(jnp.all(jnp.isfinite(out)))
    ref = reference_forward(params, x)
    np.testing.assert_allclose(np.asarray(out), np.asarray(ref),
                               rtol=2e-2, atol=2e-2)
    print("KERNEL_OK")
</pallas_src>

<mosaic_0001>
module attributes {stable_mosaic.version = 11 : i64} {
  func.func @_fused_forward_kernel(%arg0: i32, %arg1: memref<8x28x28xbf16, #tpu.memory_space<vmem>>, %arg2: memref<5x28x256xbf16, #tpu.memory_space<vmem>>, %arg3: memref<1x128xf32, #tpu.memory_space<vmem>>, %arg4: memref<5x128x256xbf16, #tpu.memory_space<vmem>>, %arg5: memref<1x128xf32, #tpu.memory_space<vmem>>, %arg6: memref<512x512xbf16, #tpu.memory_space<vmem>>, %arg7: memref<1x128xf32, #tpu.memory_space<vmem>>, %arg8: memref<128x128xbf16, #tpu.memory_space<vmem>>, %arg9: memref<1x128xf32, #tpu.memory_space<vmem>>, %arg10: memref<128x128xbf16, #tpu.memory_space<vmem>>, %arg11: memref<1x128xf32, #tpu.memory_space<vmem>>, %arg12: memref<128x128xbf16, #tpu.memory_space<vmem>>, %arg13: memref<1x128xf32, #tpu.memory_space<vmem>>, %arg14: memref<8x128xf32, #tpu.memory_space<vmem>>) attributes {dimension_semantics = [#tpu.dimension_semantics<parallel>], iteration_bounds = array<i64: 1>, scalar_prefetch = 0 : i64, scratch_operands = 0 : i64, tpu.core_type = #tpu.core_type<tc>, window_params = [{transform_indices = @transform_0, window_bounds = array<i64: 8, 28, 28>}, {pipeline_mode = #tpu.pipeline_mode<synchronous>, transform_indices = @transform_1, window_bounds = array<i64: 5, 28, 256>}, {pipeline_mode = #tpu.pipeline_mode<synchronous>, transform_indices = @transform_2, window_bounds = array<i64: 1, 128>}, {pipeline_mode = #tpu.pipeline_mode<synchronous>, transform_indices = @transform_3, window_bounds = array<i64: 5, 128, 256>}, {pipeline_mode = #tpu.pipeline_mode<synchronous>, transform_indices = @transform_4, window_bounds = array<i64: 1, 128>}, {pipeline_mode = #tpu.pipeline_mode<synchronous>, transform_indices = @transform_5, window_bounds = array<i64: 512, 512>}, {pipeline_mode = #tpu.pipeline_mode<synchronous>, transform_indices = @transform_6, window_bounds = array<i64: 1, 128>}, {pipeline_mode = #tpu.pipeline_mode<synchronous>, transform_indices = @transform_7, window_bounds = array<i64: 128, 128>}, {pipeline_mode = #tpu.pipeline_mode<synchronous>, transform_indices = @transform_8, window_bounds = array<i64: 1, 128>}, {pipeline_mode = #tpu.pipeline_mode<synchronous>, transform_indices = @transform_9, window_bounds = array<i64: 128, 128>}, {pipeline_mode = #tpu.pipeline_mode<synchronous>, transform_indices = @transform_10, window_bounds = array<i64: 1, 128>}, {pipeline_mode = #tpu.pipeline_mode<synchronous>, transform_indices = @transform_11, window_bounds = array<i64: 128, 128>}, {pipeline_mode = #tpu.pipeline_mode<synchronous>, transform_indices = @transform_12, window_bounds = array<i64: 1, 128>}, {transform_indices = @transform_13, window_bounds = array<i64: 8, 128>}]} {
    %c0 = arith.constant 0 : index
    %c0_0 = arith.constant 0 : index
    %c0_1 = arith.constant 0 : index
    %0 = vector.load %arg1[%c0, %c0_0, %c0_1] : memref<8x28x28xbf16, #tpu.memory_space<vmem>>, vector<8x28x28xbf16>
    %1 = arith.extf %0 : vector<8x28x28xbf16> to vector<8x28x28xf32>
    %2 = vector.extract_strided_slice %1 {offsets = [0, 0, 0], sizes = [8, 24, 28], strides = [1, 1, 1]} : vector<8x28x28xf32> to vector<8x24x28xf32>
    %3 = vector.shape_cast %2 : vector<8x24x28xf32> to vector<192x28xf32>
    %4 = arith.truncf %3 : vector<192x28xf32> to vector<192x28xbf16>
    %c0_2 = arith.constant 0 : index
    %c0_3 = arith.constant 0 : index
    %c0_4 = arith.constant 0 : index
    %5 = vector.load %arg2[%c0_2, %c0_3, %c0_4] : memref<5x28x256xbf16, #tpu.memory_space<vmem>>, vector<1x28x256xbf16>
    %6 = vector.shape_cast %5 : vector<1x28x256xbf16> to vector<28x256xbf16>
    %cst = arith.constant dense<0.000000e+00> : vector<192x256xf32>
    %7 = tpu.matmul %4, %6, %cst {dimension_numbers = #tpu.dot_dimension_numbers<[1], [0], [0], [1], [0, 0, 1, 1], [], []>} : vector<192x28xbf16>, vector<28x256xbf16>, vector<192x256xf32> -> vector<192x256xf32>
    %8 = vector.extract_strided_slice %1 {offsets = [0, 1, 0], sizes = [8, 24, 28], strides = [1, 1, 1]} : vector<8x28x28xf32> to vector<8x24x28xf32>
    %9 = vector.shape_cast %8 : vector<8x24x28xf32> to vector<192x28xf32>
    %10 = arith.truncf %9 : vector<192x28xf32> to vector<192x28xbf16>
    %c1 = arith.constant 1 : index
    %c0_5 = arith.constant 0 : index
    %c0_6 = arith.constant 0 : index
    %11 = vector.load %arg2[%c1, %c0_5, %c0_6] : memref<5x28x256xbf16, #tpu.memory_space<vmem>>, vector<1x28x256xbf16>
    %12 = vector.shape_cast %11 : vector<1x28x256xbf16> to vector<28x256xbf16>
    %cst_7 = arith.constant dense<0.000000e+00> : vector<192x256xf32>
    %13 = tpu.matmul %10, %12, %cst_7 {dimension_numbers = #tpu.dot_dimension_numbers<[1], [0], [0], [1], [0, 0, 1, 1], [], []>} : vector<192x28xbf16>, vector<28x256xbf16>, vector<192x256xf32> -> vector<192x256xf32>
    %14 = arith.addf %7, %13 : vector<192x256xf32>
    %15 = vector.extract_strided_slice %1 {offsets = [0, 2, 0], sizes = [8, 24, 28], strides = [1, 1, 1]} : vector<8x28x28xf32> to vector<8x24x28xf32>
    %16 = vector.shape_cast %15 : vector<8x24x28xf32> to vector<192x28xf32>
    %17 = arith.truncf %16 : vector<192x28xf32> to vector<192x28xbf16>
    %c2 = arith.constant 2 : index
    %c0_8 = arith.constant 0 : index
    %c0_9 = arith.constant 0 : index
    %18 = vector.load %arg2[%c2, %c0_8, %c0_9] : memref<5x28x256xbf16, #tpu.memory_space<vmem>>, vector<1x28x256xbf16>
    %19 = vector.shape_cast %18 : vector<1x28x256xbf16> to vector<28x256xbf16>
    %cst_10 = arith.constant dense<0.000000e+00> : vector<192x256xf32>
    %20 = tpu.matmul %17, %19, %cst_10 {dimension_numbers = #tpu.dot_dimension_numbers<[1], [0], [0], [1], [0, 0, 1, 1], [], []>} : vector<192x28xbf16>, vector<28x256xbf16>, vector<192x256xf32> -> vector<192x256xf32>
    %21 = arith.addf %14, %20 : vector<192x256xf32>
    %22 = vector.extract_strided_slice %1 {offsets = [0, 3, 0], sizes = [8, 24, 28], strides = [1, 1, 1]} : vector<8x28x28xf32> to vector<8x24x28xf32>
    %23 = vector.shape_cast %22 : vector<8x24x28xf32> to vector<192x28xf32>
    %24 = arith.truncf %23 : vector<192x28xf32> to vector<192x28xbf16>
    %c3 = arith.constant 3 : index
    %c0_11 = arith.constant 0 : index
    %c0_12 = arith.constant 0 : index
    %25 = vector.load %arg2[%c3, %c0_11, %c0_12] : memref<5x28x256xbf16, #tpu.memory_space<vmem>>, vector<1x28x256xbf16>
    %26 = vector.shape_cast %25 : vector<1x28x256xbf16> to vector<28x256xbf16>
    %cst_13 = arith.constant dense<0.000000e+00> : vector<192x256xf32>
    %27 = tpu.matmul %24, %26, %cst_13 {dimension_numbers = #tpu.dot_dimension_numbers<[1], [0], [0], [1], [0, 0, 1, 1], [], []>} : vector<192x28xbf16>, vector<28x256xbf16>, vector<192x256xf32> -> vector<192x256xf32>
    %28 = arith.addf %21, %27 : vector<192x256xf32>
    %29 = vector.extract_strided_slice %1 {offsets = [0, 4, 0], sizes = [8, 24, 28], strides = [1, 1, 1]} : vector<8x28x28xf32> to vector<8x24x28xf32>
    %30 = vector.shape_cast %29 : vector<8x24x28xf32> to vector<192x28xf32>
    %31 = arith.truncf %30 : vector<192x28xf32> to vector<192x28xbf16>
    %c4 = arith.constant 4 : index
    %c0_14 = arith.constant 0 : index
    %c0_15 = arith.constant 0 : index
    %32 = vector.load %arg2[%c4, %c0_14, %c0_15] : memref<5x28x256xbf16, #tpu.memory_space<vmem>>, vector<1x28x256xbf16>
    %33 = vector.shape_cast %32 : vector<1x28x256xbf16> to vector<28x256xbf16>
    %cst_16 = arith.constant dense<0.000000e+00> : vector<192x256xf32>
    %34 = tpu.matmul %31, %33, %cst_16 {dimension_numbers = #tpu.dot_dimension_numbers<[1], [0], [0], [1], [0, 0, 1, 1], [], []>} : vector<192x28xbf16>, vector<28x256xbf16>, vector<192x256xf32> -> vector<192x256xf32>
    %35 = arith.addf %28, %34 : vector<192x256xf32>
    %36 = vector.extract_strided_slice %35 {offsets = [0, 0], sizes = [192, 128], strides = [1, 1]} : vector<192x256xf32> to vector<192x128xf32>
    %37 = vector.extract_strided_slice %35 {offsets = [0, 128], sizes = [192, 128], strides = [1, 1]} : vector<192x256xf32> to vector<192x128xf32>
    %38 = arith.maximumf %36, %37 : vector<192x128xf32>
    %c0_17 = arith.constant 0 : index
    %c0_18 = arith.constant 0 : index
    %39 = vector.load %arg3[%c0_17, %c0_18] : memref<1x128xf32, #tpu.memory_space<vmem>>, vector<1x128xf32>
    %40 = vector.broadcast %39 : vector<1x128xf32> to vector<192x128xf32>
    %41 = arith.addf %38, %40 : vector<192x128xf32>
    %cst_19 = arith.constant 0.000000e+00 : f32
    %42 = vector.broadcast %cst_19 : f32 to vector<192x128xf32>
    %43 = arith.maximumf %41, %42 : vector<192x128xf32>
    %44 = vector.shape_cast %43 : vector<192x128xf32> to vector<8x24x128xf32>
    %45 = vector.extract_strided_slice %44 {offsets = [0, 0, 0], sizes = [8, 1, 128], strides = [1, 1, 1]} : vector<8x24x128xf32> to vector<8x1x128xf32>
    %46 = vector.extract_strided_slice %44 {offsets = [0, 1, 0], sizes = [8, 1, 128], strides = [1, 1, 1]} : vector<8x24x128xf32> to vector<8x1x128xf32>
    %47 = arith.maximumf %45, %46 : vector<8x1x128xf32>
    %48 = vector.extract_strided_slice %44 {offsets = [0, 2, 0], sizes = [8, 1, 128], strides = [1, 1, 1]} : vector<8x24x128xf32> to vector<8x1x128xf32>
    %49 = vector.extract_strided_slice %44 {offsets = [0, 3, 0], sizes = [8, 1, 128], strides = [1, 1, 1]} : vector<8x24x128xf32> to vector<8x1x128xf32>
    %50 = arith.maximumf %48, %49 : vector<8x1x128xf32>
    %51 = vector.extract_strided_slice %44 {offsets = [0, 4, 0], sizes = [8, 1, 128], strides = [1, 1, 1]} : vector<8x24x128xf32> to vector<8x1x128xf32>
    %52 = vector.extract_strided_slice %44 {offsets = [0, 5, 0], sizes = [8, 1, 128], strides = [1, 1, 1]} : vector<8x24x128xf32> to vector<8x1x128xf32>
    %53 = arith.maximumf %51, %52 : vector<8x1x128xf32>
    %54 = vector.extract_strided_slice %44 {offsets = [0, 6, 0], sizes = [8, 1, 128], strides = [1, 1, 1]} : vector<8x24x128xf32> to vector<8x1x128xf32>
    %55 = vector.extract_strided_slice %44 {offsets = [0, 7, 0], sizes = [8, 1, 128], strides = [1, 1, 1]} : vector<8x24x128xf32> to vector<8x1x128xf32>
    %56 = arith.maximumf %54, %55 : vector<8x1x128xf32>
    %57 = vector.extract_strided_slice %44 {offsets = [0, 8, 0], sizes = [8, 1, 128], strides = [1, 1, 1]} : vector<8x24x128xf32> to vector<8x1x128xf32>
    %58 = vector.extract_strided_slice %44 {offsets = [0, 9, 0], sizes = [8, 1, 128], strides = [1, 1, 1]} : vector<8x24x128xf32> to vector<8x1x128xf32>
    %59 = arith.maximumf %57, %58 : vector<8x1x128xf32>
    %60 = vector.extract_strided_slice %44 {offsets = [0, 10, 0], sizes = [8, 1, 128], strides = [1, 1, 1]} : vector<8x24x128xf32> to vector<8x1x128xf32>
    %61 = vector.extract_strided_slice %44 {offsets = [0, 11, 0], sizes = [8, 1, 128], strides = [1, 1, 1]} : vector<8x24x128xf32> to vector<8x1x128xf32>
    %62 = arith.maximumf %60, %61 : vector<8x1x128xf32>
    %63 = vector.extract_strided_slice %44 {offsets = [0, 12, 0], sizes = [8, 1, 128], strides = [1, 1, 1]} : vector<8x24x128xf32> to vector<8x1x128xf32>
    %64 = vector.extract_strided_slice %44 {offsets = [0, 13, 0], sizes = [8, 1, 128], strides = [1, 1, 1]} : vector<8x24x128xf32> to vector<8x1x128xf32>
    %65 = arith.maximumf %63, %64 : vector<8x1x128xf32>
    %66 = vector.extract_strided_slice %44 {offsets = [0, 14, 0], sizes = [8, 1, 128], strides = [1, 1, 1]} : vector<8x24x128xf32> to vector<8x1x128xf32>
    %67 = vector.extract_strided_slice %44 {offsets = [0, 15, 0], sizes = [8, 1, 128], strides = [1, 1, 1]} : vector<8x24x128xf32> to vector<8x1x128xf32>
    %68 = arith.maximumf %66, %67 : vector<8x1x128xf32>
    %69 = vector.extract_strided_slice %44 {offsets = [0, 16, 0], sizes = [8, 1, 128], strides = [1, 1, 1]} : vector<8x24x128xf32> to vector<8x1x128xf32>
    %70 = vector.extract_strided_slice %44 {offsets = [0, 17, 0], sizes = [8, 1, 128], strides = [1, 1, 1]} : vector<8x24x128xf32> to vector<8x1x128xf32>
    %71 = arith.maximumf %69, %70 : vector<8x1x128xf32>
    %72 = vector.extract_strided_slice %44 {offsets = [0, 18, 0], sizes = [8, 1, 128], strides = [1, 1, 1]} : vector<8x24x128xf32> to vector<8x1x128xf32>
    %73 = vector.extract_strided_slice %44 {offsets = [0, 19, 0], sizes = [8, 1, 128], strides = [1, 1, 1]} : vector<8x24x128xf32> to vector<8x1x128xf32>
    %74 = arith.maximumf %72, %73 : vector<8x1x128xf32>
    %75 = vector.extract_strided_slice %44 {offsets = [0, 20, 0], sizes = [8, 1, 128], strides = [1, 1, 1]} : vector<8x24x128xf32> to vector<8x1x128xf32>
    %76 = vector.extract_strided_slice %44 {offsets = [0, 21, 0], sizes = [8, 1, 128], strides = [1, 1, 1]} : vector<8x24x128xf32> to vector<8x1x128xf32>
    %77 = arith.maximumf %75, %76 : vector<8x1x128xf32>
    %78 = vector.extract_strided_slice %44 {offsets = [0, 22, 0], sizes = [8, 1, 128], strides = [1, 1, 1]} : vector<8x24x128xf32> to vector<8x1x128xf32>
    %79 = vector.extract_strided_slice %44 {offsets = [0, 23, 0], sizes = [8, 1, 128], strides = [1, 1, 1]} : vector<8x24x128xf32> to vector<8x1x128xf32>
    %80 = arith.maximumf %78, %79 : vector<8x1x128xf32>
    %81 = tpu.concatenate %47, %50, %53, %56, %59, %62, %65, %68, %71, %74, %77, %80 in 1 : vector<8x1x128xf32>, vector<8x1x128xf32>, vector<8x1x128xf32>, vector<8x1x128xf32>, vector<8x1x128xf32>, vector<8x1x128xf32>, vector<8x1x128xf32>, vector<8x1x128xf32>, vector<8x1x128xf32>, vector<8x1x128xf32>, vector<8x1x128xf32>, vector<8x1x128xf32> -> vector<8x12x128xf32>
    %82 = vector.extract_strided_slice %81 {offsets = [0, 0, 0], sizes = [8, 8, 128], strides = [1, 1, 1]} : vector<8x12x128xf32> to vector<8x8x128xf32>
    %83 = vector.shape_cast %82 : vector<8x8x128xf32> to vector<64x128xf32>
    %84 = arith.truncf %83 : vector<64x128xf32> to vector<64x128xbf16>
    %c0_20 = arith.constant 0 : index
    %c0_21 = arith.constant 0 : index
    %c0_22 = arith.constant 0 : index
    %85 = vector.load %arg4[%c0_20, %c0_21, %c0_22] : memref<5x128x256xbf16, #tpu.memory_space<vmem>>, vector<1x128x256xbf16>
    %86 = vector.shape_cast %85 : vector<1x128x256xbf16> to vector<128x256xbf16>
    %cst_23 = arith.constant dense<0.000000e+00> : vector<64x256xf32>
    %87 = tpu.matmul %84, %86, %cst_23 {dimension_numbers = #tpu.dot_dimension_numbers<[1], [0], [0], [1], [0, 0, 1, 1], [], []>} : vector<64x128xbf16>, vector<128x256xbf16>, vector<64x256xf32> -> vector<64x256xf32>
    %88 = vector.extract_strided_slice %81 {offsets = [0, 1, 0], sizes = [8, 8, 128], strides = [1, 1, 1]} : vector<8x12x128xf32> to vector<8x8x128xf32>
    %89 = vector.shape_cast %88 : vector<8x8x128xf32> to vector<64x128xf32>
    %90 = arith.truncf %89 : vector<64x128xf32> to vector<64x128xbf16>
    %c1_24 = arith.constant 1 : index
    %c0_25 = arith.constant 0 : index
    %c0_26 = arith.constant 0 : index
    %91 = vector.load %arg4[%c1_24, %c0_25, %c0_26] : memref<5x128x256xbf16, #tpu.memory_space<vmem>>, vector<1x128x256xbf16>
    %92 = vector.shape_cast %91 : vector<1x128x256xbf16> to vector<128x256xbf16>
    %cst_27 = arith.constant dense<0.000000e+00> : vector<64x256xf32>
    %93 = tpu.matmul %90, %92, %cst_27 {dimension_numbers = #tpu.dot_dimension_numbers<[1], [0], [0], [1], [0, 0, 1, 1], [], []>} : vector<64x128xbf16>, vector<128x256xbf16>, vector<64x256xf32> -> vector<64x256xf32>
    %94 = arith.addf %87, %93 : vector<64x256xf32>
    %95 = vector.extract_strided_slice %81 {offsets = [0, 2, 0], sizes = [8, 8, 128], strides = [1, 1, 1]} : vector<8x12x128xf32> to vector<8x8x128xf32>
    %96 = vector.shape_cast %95 : vector<8x8x128xf32> to vector<64x128xf32>
    %97 = arith.truncf %96 : vector<64x128xf32> to vector<64x128xbf16>
    %c2_28 = arith.constant 2 : index
    %c0_29 = arith.constant 0 : index
    %c0_30 = arith.constant 0 : index
    %98 = vector.load %arg4[%c2_28, %c0_29, %c0_30] : memref<5x128x256xbf16, #tpu.memory_space<vmem>>, vector<1x128x256xbf16>
    %99 = vector.shape_cast %98 : vector<1x128x256xbf16> to vector<128x256xbf16>
    %cst_31 = arith.constant dense<0.000000e+00> : vector<64x256xf32>
    %100 = tpu.matmul %97, %99, %cst_31 {dimension_numbers = #tpu.dot_dimension_numbers<[1], [0], [0], [1], [0, 0, 1, 1], [], []>} : vector<64x128xbf16>, vector<128x256xbf16>, vector<64x256xf32> -> vector<64x256xf32>
    %101 = arith.addf %94, %100 : vector<64x256xf32>
    %102 = vector.extract_strided_slice %81 {offsets = [0, 3, 0], sizes = [8, 8, 128], strides = [1, 1, 1]} : vector<8x12x128xf32> to vector<8x8x128xf32>
    %103 = vector.shape_cast %102 : vector<8x8x128xf32> to vector<64x128xf32>
    %104 = arith.truncf %103 : vector<64x128xf32> to vector<64x128xbf16>
    %c3_32 = arith.constant 3 : index
    %c0_33 = arith.constant 0 : index
    %c0_34 = arith.constant 0 : index
    %105 = vector.load %arg4[%c3_32, %c0_33, %c0_34] : memref<5x128x256xbf16, #tpu.memory_space<vmem>>, vector<1x128x256xbf16>
    %106 = vector.shape_cast %105 : vector<1x128x256xbf16> to vector<128x256xbf16>
    %cst_35 = arith.constant dense<0.000000e+00> : vector<64x256xf32>
    %107 = tpu.matmul %104, %106, %cst_35 {dimension_numbers = #tpu.dot_dimension_numbers<[1], [0], [0], [1], [0, 0, 1, 1], [], []>} : vector<64x128xbf16>, vector<128x256xbf16>, vector<64x256xf32> -> vector<64x256xf32>
    %108 = arith.addf %101, %107 : vector<64x256xf32>
    %109 = vector.extract_strided_slice %81 {offsets = [0, 4, 0], sizes = [8, 8, 128], strides = [1, 1, 1]} : vector<8x12x128xf32> to vector<8x8x128xf32>
    %110 = vector.shape_cast %109 : vector<8x8x128xf32> to vector<64x128xf32>
    %111 = arith.truncf %110 : vector<64x128xf32> to vector<64x128xbf16>
    %c4_36 = arith.constant 4 : index
    %c0_37 = arith.constant 0 : index
    %c0_38 = arith.constant 0 : index
    %112 = vector.load %arg4[%c4_36, %c0_37, %c0_38] : memref<5x128x256xbf16, #tpu.memory_space<vmem>>, vector<1x128x256xbf16>
    %113 = vector.shape_cast %112 : vector<1x128x256xbf16> to vector<128x256xbf16>
    %cst_39 = arith.constant dense<0.000000e+00> : vector<64x256xf32>
    %114 = tpu.matmul %111, %113, %cst_39 {dimension_numbers = #tpu.dot_dimension_numbers<[1], [0], [0], [1], [0, 0, 1, 1], [], []>} : vector<64x128xbf16>, vector<128x256xbf16>, vector<64x256xf32> -> vector<64x256xf32>
    %115 = arith.addf %108, %114 : vector<64x256xf32>
    %116 = vector.extract_strided_slice %115 {offsets = [0, 0], sizes = [64, 128], strides = [1, 1]} : vector<64x256xf32> to vector<64x128xf32>
    %117 = vector.extract_strided_slice %115 {offsets = [0, 128], sizes = [64, 128], strides = [1, 1]} : vector<64x256xf32> to vector<64x128xf32>
    %118 = arith.maximumf %116, %117 : vector<64x128xf32>
    %c0_40 = arith.constant 0 : index
    %c0_41 = arith.constant 0 : index
    %119 = vector.load %arg5[%c0_40, %c0_41] : memref<1x128xf32, #tpu.memory_space<vmem>>, vector<1x128xf32>
    %120 = vector.broadcast %119 : vector<1x128xf32> to vector<64x128xf32>
    %121 = arith.addf %118, %120 : vector<64x128xf32>
    %cst_42 = arith.constant 0.000000e+00 : f32
    %122 = vector.broadcast %cst_42 : f32 to vector<64x128xf32>
    %123 = arith.maximumf %121, %122 : vector<64x128xf32>
    %124 = vector.shape_cast %123 : vector<64x128xf32> to vector<8x8x128xf32>
    %125 = vector.extract_strided_slice %124 {offsets = [0, 0, 0], sizes = [8, 1, 128], strides = [1, 1, 1]} : vector<8x8x128xf32> to vector<8x1x128xf32>
    %126 = vector.extract_strided_slice %124 {offsets = [0, 1, 0], sizes = [8, 1, 128], strides = [1, 1, 1]} : vector<8x8x128xf32> to vector<8x1x128xf32>
    %127 = arith.maximumf %125, %126 : vector<8x1x128xf32>
    %128 = vector.extract_strided_slice %124 {offsets = [0, 2, 0], sizes = [8, 1, 128], strides = [1, 1, 1]} : vector<8x8x128xf32> to vector<8x1x128xf32>
    %129 = vector.extract_strided_slice %124 {offsets = [0, 3, 0], sizes = [8, 1, 128], strides = [1, 1, 1]} : vector<8x8x128xf32> to vector<8x1x128xf32>
    %130 = arith.maximumf %128, %129 : vector<8x1x128xf32>
    %131 = vector.extract_strided_slice %124 {offsets = [0, 4, 0], sizes = [8, 1, 128], strides = [1, 1, 1]} : vector<8x8x128xf32> to vector<8x1x128xf32>
    %132 = vector.extract_strided_slice %124 {offsets = [0, 5, 0], sizes = [8, 1, 128], strides = [1, 1, 1]} : vector<8x8x128xf32> to vector<8x1x128xf32>
    %133 = arith.maximumf %131, %132 : vector<8x1x128xf32>
    %134 = vector.extract_strided_slice %124 {offsets = [0, 6, 0], sizes = [8, 1, 128], strides = [1, 1, 1]} : vector<8x8x128xf32> to vector<8x1x128xf32>
    %135 = vector.extract_strided_slice %124 {offsets = [0, 7, 0], sizes = [8, 1, 128], strides = [1, 1, 1]} : vector<8x8x128xf32> to vector<8x1x128xf32>
    %136 = arith.maximumf %134, %135 : vector<8x1x128xf32>
    %137 = vector.shape_cast %127 : vector<8x1x128xf32> to vector<8x128xf32>
    %138 = vector.shape_cast %130 : vector<8x1x128xf32> to vector<8x128xf32>
    %139 = vector.shape_cast %133 : vector<8x1x128xf32> to vector<8x128xf32>
    %140 = vector.shape_cast %136 : vector<8x1x128xf32> to vector<8x128xf32>
    %141 = tpu.concatenate %137, %138, %139, %140 in 1 : vector<8x128xf32>, vector<8x128xf32>, vector<8x128xf32>, vector<8x128xf32> -> vector<8x512xf32>
    %142 = arith.truncf %141 : vector<8x512xf32> to vector<8x512xbf16>
    %c0_43 = arith.constant 0 : index
    %c0_44 = arith.constant 0 : index
    %143 = vector.load %arg6[%c0_43, %c0_44] : memref<512x512xbf16, #tpu.memory_space<vmem>>, vector<512x512xbf16>
    %cst_45 = arith.constant dense<0.000000e+00> : vector<8x512xf32>
    %144 = tpu.matmul %142, %143, %cst_45 {dimension_numbers = #tpu.dot_dimension_numbers<[1], [0], [0], [1], [0, 0, 1, 1], [], []>} : vector<8x512xbf16>, vector<512x512xbf16>, vector<8x512xf32> -> vector<8x512xf32>
    %145 = vector.extract_strided_slice %144 {offsets = [0, 0], sizes = [8, 128], strides = [1, 1]} : vector<8x512xf32> to vector<8x128xf32>
    %146 = vector.extract_strided_slice %144 {offsets = [0, 128], sizes = [8, 128], strides = [1, 1]} : vector<8x512xf32> to vector<8x128xf32>
    %147 = arith.maximumf %145, %146 : vector<8x128xf32>
    %148 = vector.extract_strided_slice %144 {offsets = [0, 256], sizes = [8, 128], strides = [1, 1]} : vector<8x512xf32> to vector<8x128xf32>
    %149 = arith.maximumf %147, %148 : vector<8x128xf32>
    %150 = vector.extract_strided_slice %144 {offsets = [0, 384], sizes = [8, 128], strides = [1, 1]} : vector<8x512xf32> to vector<8x128xf32>
    %151 = arith.maximumf %149, %150 : vector<8x128xf32>
    %c0_46 = arith.constant 0 : index
    %c0_47 = arith.constant 0 : index
    %152 = vector.load %arg7[%c0_46, %c0_47] : memref<1x128xf32, #tpu.memory_space<vmem>>, vector<1x128xf32>
    %153 = vector.broadcast %152 : vector<1x128xf32> to vector<8x128xf32>
    %154 = arith.addf %151, %153 : vector<8x128xf32>
    %cst_48 = arith.constant 0.000000e+00 : f32
    %155 = vector.broadcast %cst_48 : f32 to vector<8x128xf32>
    %156 = arith.maximumf %154, %155 : vector<8x128xf32>
    %157 = arith.truncf %156 : vector<8x128xf32> to vector<8x128xbf16>
    %c0_49 = arith.constant 0 : index
    %c0_50 = arith.constant 0 : index
    %158 = vector.load %arg8[%c0_49, %c0_50] : memref<128x128xbf16, #tpu.memory_space<vmem>>, vector<128x128xbf16>
    %cst_51 = arith.constant dense<0.000000e+00> : vector<8x128xf32>
    %159 = tpu.matmul %157, %158, %cst_51 {dimension_numbers = #tpu.dot_dimension_numbers<[1], [0], [0], [1], [0, 0, 1, 1], [], []>} : vector<8x128xbf16>, vector<128x128xbf16>, vector<8x128xf32> -> vector<8x128xf32>
    %c0_52 = arith.constant 0 : index
    %c0_53 = arith.constant 0 : index
    %160 = vector.load %arg9[%c0_52, %c0_53] : memref<1x128xf32, #tpu.memory_space<vmem>>, vector<1x128xf32>
    %161 = vector.broadcast %160 : vector<1x128xf32> to vector<8x128xf32>
    %162 = arith.addf %159, %161 : vector<8x128xf32>
    %cst_54 = arith.constant 0.000000e+00 : f32
    %163 = vector.broadcast %cst_54 : f32 to vector<8x128xf32>
    %164 = arith.maximumf %162, %163 : vector<8x128xf32>
    %165 = arith.truncf %164 : vector<8x128xf32> to vector<8x128xbf16>
    %c0_55 = arith.constant 0 : index
    %c0_56 = arith.constant 0 : index
    %166 = vector.load %arg10[%c0_55, %c0_56] : memref<128x128xbf16, #tpu.memory_space<vmem>>, vector<128x128xbf16>
    %cst_57 = arith.constant dense<0.000000e+00> : vector<8x128xf32>
    %167 = tpu.matmul %165, %166, %cst_57 {dimension_numbers = #tpu.dot_dimension_numbers<[1], [0], [0], [1], [0, 0, 1, 1], [], []>} : vector<8x128xbf16>, vector<128x128xbf16>, vector<8x128xf32> -> vector<8x128xf32>
    %c0_58 = arith.constant 0 : index
    %c0_59 = arith.constant 0 : index
    %168 = vector.load %arg11[%c0_58, %c0_59] : memref<1x128xf32, #tpu.memory_space<vmem>>, vector<1x128xf32>
    %169 = vector.broadcast %168 : vector<1x128xf32> to vector<8x128xf32>
    %170 = arith.addf %167, %169 : vector<8x128xf32>
    %cst_60 = arith.constant 0.000000e+00 : f32
    %171 = vector.broadcast %cst_60 : f32 to vector<8x128xf32>
    %172 = arith.maximumf %170, %171 : vector<8x128xf32>
    %173 = arith.truncf %172 : vector<8x128xf32> to vector<8x128xbf16>
    %c0_61 = arith.constant 0 : index
    %c0_62 = arith.constant 0 : index
    %174 = vector.load %arg12[%c0_61, %c0_62] : memref<128x128xbf16, #tpu.memory_space<vmem>>, vector<128x128xbf16>
    %cst_63 = arith.constant dense<0.000000e+00> : vector<8x128xf32>
    %175 = tpu.matmul %173, %174, %cst_63 {dimension_numbers = #tpu.dot_dimension_numbers<[1], [0], [0], [1], [0, 0, 1, 1], [], []>} : vector<8x128xbf16>, vector<128x128xbf16>, vector<8x128xf32> -> vector<8x128xf32>
    %c0_64 = arith.constant 0 : index
    %c0_65 = arith.constant 0 : index
    %176 = vector.load %arg13[%c0_64, %c0_65] : memref<1x128xf32, #tpu.memory_space<vmem>>, vector<1x128xf32>
    %177 = vector.broadcast %176 : vector<1x128xf32> to vector<8x128xf32>
    %178 = arith.addf %175, %177 : vector<8x128xf32>
    %c0_66 = arith.constant 0 : index
    %c0_67 = arith.constant 0 : index
    %179 = vector.load %arg14[%c0_66, %c0_67] : memref<8x128xf32, #tpu.memory_space<vmem>>, vector<8x128xf32>
    tpu.vector_store %arg14[%c0_66, %c0_67], %178 {strides = array<i32>} : memref<8x128xf32, #tpu.memory_space<vmem>>, vector<8x128xf32>,
    return
  }
  func.func @transform_0(%arg0: i32) -> (i32, i32, i32) {
    %c0_i32 = arith.constant 0 : i32
    %c0_i32_0 = arith.constant 0 : i32
    %c0_i32_1 = arith.constant 0 : i32
    return %arg0, %c0_i32, %c0_i32_0 : i32, i32, i32
  }
  func.func @transform_1(%arg0: i32) -> (i32, i32, i32) {
    %c0_i32 = arith.constant 0 : i32
    %c0_i32_0 = arith.constant 0 : i32
    %c0_i32_1 = arith.constant 0 : i32
    %c0_i32_2 = arith.constant 0 : i32
    return %c0_i32, %c0_i32_0, %c0_i32_1 : i32, i32, i32
  }
  func.func @transform_2(%arg0: i32) -> (i32, i32) {
    %c0_i32 = arith.constant 0 : i32
    %c0_i32_0 = arith.constant 0 : i32
    %c0_i32_1 = arith.constant 0 : i32
    return %c0_i32, %c0_i32_0 : i32, i32
  }
  func.func @transform_3(%arg0: i32) -> (i32, i32, i32) {
    %c0_i32 = arith.constant 0 : i32
    %c0_i32_0 = arith.constant 0 : i32
    %c0_i32_1 = arith.constant 0 : i32
    %c0_i32_2 = arith.constant 0 : i32
    return %c0_i32, %c0_i32_0, %c0_i32_1 : i32, i32, i32
  }
  func.func @transform_4(%arg0: i32) -> (i32, i32) {
    %c0_i32 = arith.constant 0 : i32
    %c0_i32_0 = arith.constant 0 : i32
    %c0_i32_1 = arith.constant 0 : i32
    return %c0_i32, %c0_i32_0 : i32, i32
  }
  func.func @transform_5(%arg0: i32) -> (i32, i32) {
    %c0_i32 = arith.constant 0 : i32
    %c0_i32_0 = arith.constant 0 : i32
    %c0_i32_1 = arith.constant 0 : i32
    return %c0_i32, %c0_i32_0 : i32, i32
  }
  func.func @transform_6(%arg0: i32) -> (i32, i32) {
    %c0_i32 = arith.constant 0 : i32
    %c0_i32_0 = arith.constant 0 : i32
    %c0_i32_1 = arith.constant 0 : i32
    return %c0_i32, %c0_i32_0 : i32, i32
  }
  func.func @transform_7(%arg0: i32) -> (i32, i32) {
    %c0_i32 = arith.constant 0 : i32
    %c0_i32_0 = arith.constant 0 : i32
    %c0_i32_1 = arith.constant 0 : i32
    return %c0_i32, %c0_i32_0 : i32, i32
  }
  func.func @transform_8(%arg0: i32) -> (i32, i32) {
    %c0_i32 = arith.constant 0 : i32
    %c0_i32_0 = arith.constant 0 : i32
    %c0_i32_1 = arith.constant 0 : i32
    return %c0_i32, %c0_i32_0 : i32, i32
  }
  func.func @transform_9(%arg0: i32) -> (i32, i32) {
    %c0_i32 = arith.constant 0 : i32
    %c0_i32_0 = arith.constant 0 : i32
    %c0_i32_1 = arith.constant 0 : i32
    return %c0_i32, %c0_i32_0 : i32, i32
  }
  func.func @transform_10(%arg0: i32) -> (i32, i32) {
    %c0_i32 = arith.constant 0 : i32
    %c0_i32_0 = arith.constant 0 : i32
    %c0_i32_1 = arith.constant 0 : i32
    return %c0_i32, %c0_i32_0 : i32, i32
  }
  func.func @transform_11(%arg0: i32) -> (i32, i32) {
    %c0_i32 = arith.constant 0 : i32
    %c0_i32_0 = arith.constant 0 : i32
    %c0_i32_1 = arith.constant 0 : i32
    return %c0_i32, %c0_i32_0 : i32, i32
  }
  func.func @transform_12(%arg0: i32) -> (i32, i32) {
    %c0_i32 = arith.constant 0 : i32
    %c0_i32_0 = arith.constant 0 : i32
    %c0_i32_1 = arith.constant 0 : i32
    return %c0_i32, %c0_i32_0 : i32, i32
  }
  func.func @transform_13(%arg0: i32) -> (i32, i32) {
    %c0_i32 = arith.constant 0 : i32
    %c0_i32_0 = arith.constant 0 : i32
    return %arg0, %c0_i32 : i32, i32
  }
}

</mosaic_0001>

<llo_original>
// kernel: mauro_mnist_convnet.1
$region0: #{mauro_mnist_convnet.1}
  #allocation0 [shape = 'u32[]', space=smem, size = 0x4, offset = 0x4, fixed_abs, tag = 'smem constant byte address 0x4 - core index']
  #allocation1 [shape = 'u32[144,128]{1,0:T(1,128)}', space=vmem, size = 0x12000, scoped, tag = 'internal scratch']
  %s0 = inlined_call_operand.vmem [shape: bf16[8,28,28], index: 0, kind: input, shape index: {}]
  %s1 = inlined_call_operand.vmem [shape: bf16[5,28,256], index: 1, kind: input, shape index: {}]
  %s2 = inlined_call_operand.vmem [shape: f32[1,128], index: 2, kind: input, shape index: {}]
  %s3 = inlined_call_operand.hbm [shape: bf16[5,128,256], index: 3, kind: input, shape index: {}]
  %s4 = inlined_call_operand.vmem [shape: f32[1,128], index: 4, kind: input, shape index: {}]
  %s5 = inlined_call_operand.hbm [shape: bf16[512,512], index: 5, kind: input, shape index: {}]
  %s6 = inlined_call_operand.vmem [shape: f32[1,128], index: 6, kind: input, shape index: {}]
  %s7 = inlined_call_operand.vmem [shape: bf16[128,128], index: 7, kind: input, shape index: {}]
  %s8 = inlined_call_operand.vmem [shape: f32[1,128], index: 8, kind: input, shape index: {}]
  %s9 = inlined_call_operand.hbm [shape: bf16[128,128], index: 9, kind: input, shape index: {}]
  %s10 = inlined_call_operand.vmem [shape: f32[1,128], index: 10, kind: input, shape index: {}]
  %s11 = inlined_call_operand.hbm [shape: bf16[128,128], index: 11, kind: input, shape index: {}]
  %s12 = inlined_call_operand.vmem [shape: f32[1,128], index: 12, kind: input, shape index: {}]
  %s13 = inlined_call_operand.vmem [shape: f32[8,128], index: 13, kind: output, shape index: {}]
  %s14 = sld [smem:[#allocation0]]
  $region78: #{mauro_mnist_convnet.1} parent=0
    _
  %s16 = ssub.s32 1, %s14
  %s17 = scalar_select 0, %s16, %s14
  $region1: #{mauro_mnist_convnet.1} parent=0
    #allocation2 [shape = 'u8[327680]{0}', space=vmem, size = 0x50000, scoped, tag = 'input window, operand 3, single buffered']
    #allocation3 [shape = 's32[1]{0}', space=sflag, size = 0x4, scoped, tag = 'scoped memory for mauro_mnist_convnet.1']
    #allocation4 [shape = 'u8[524288]{0}', space=vmem, size = 0x80000, scoped, tag = 'input window, operand 5, single buffered']
    #allocation5 [shape = 's32[1]{0}', space=sflag, size = 0x4, scoped, tag = 'scoped memory for mauro_mnist_convnet.1']
    #allocation6 [shape = 'u8[32768]{0}', space=vmem, size = 0x8000, scoped, tag = 'input window, operand 9, single buffered']
    #allocation7 [shape = 'u8[32768]{0}', space=vmem, size = 0x8000, scoped, tag = 'input window, operand 11, single buffered']
    #allocation8 [shape = 's32[1]{0}', space=sflag, size = 0x4, scoped, tag = 'scoped memory for mauro_mnist_convnet.1']
    %18 = vsyncpa [#allocation3], 0
    %19 = vsyncpa [#allocation5], 0
    %20 = vsyncpa [#allocation8], 0
    // Predicated region
    $region2: #{mauro_mnist_convnet.1} parent=1 // pred_check
      _
    $region3: #{mauro_mnist_convnet.1} parent=1 // pred_check_branch
      %22 = sbr.rel (0) target = $region5
    $region4: #{mauro_mnist_convnet.1} parent=1 // pred_region
      _
    $region5: #{mauro_mnist_convnet.1} parent=1 // pred_fallthru
      _
    // Predicated region
    $region6: #{mauro_mnist_convnet.1} parent=1 // pred_check
      _
    $region7: #{mauro_mnist_convnet.1} parent=1 // pred_check_branch
      %24 = sbr.rel (0) target = $region9
    $region8: #{mauro_mnist_convnet.1} parent=1 // pred_region
      _
    $region9: #{mauro_mnist_convnet.1} parent=1 // pred_fallthru
      _
    // Predicated region
    $region10: #{mauro_mnist_convnet.1} parent=1 // pred_check
      _
    $region11: #{mauro_mnist_convnet.1} parent=1 // pred_check_branch
      %26 = sbr.rel (0) target = $region13
    $region12: #{mauro_mnist_convnet.1} parent=1 // pred_region
      _
    $region13: #{mauro_mnist_convnet.1} parent=1 // pred_fallthru
      _
    // Predicated region
    $region14: #{mauro_mnist_convnet.1} parent=1 // pred_check
      _
    $region15: #{mauro_mnist_convnet.1} parent=1 // pred_check_branch
      %28 = sbr.rel (0) target = $region17
    $region16: #{mauro_mnist_convnet.1} parent=1 // pred_region
      %s30 = ssub.s32 10240, 10240
      %31 = vsyncadd [#allocation3], %s30
      %s32 = sshll.u32 [#allocation2], 4
      %s33 = int_to_ptr.vmem [resolvable:$true] %s32
      %38 = dma.hbm_to_vmem [thread:$0]  %s3, 10240, %s33, [#allocation3], 128, 128, 8
    $region17: #{mauro_mnist_convnet.1} parent=1 // pred_fallthru
      _
    // Predicated region
    $region18: #{mauro_mnist_convnet.1} parent=1 // pred_check
      _
    $region19: #{mauro_mnist_convnet.1} parent=1 // pred_check_branch
      %40 = sbr.rel (0) target = $region21
    $region20: #{mauro_mnist_convnet.1} parent=1 // pred_region
      _
    $region21: #{mauro_mnist_convnet.1} parent=1 // pred_fallthru
      _
    // Predicated region
    $region22: #{mauro_mnist_convnet.1} parent=1 // pred_check
      _
    $region23: #{mauro_mnist_convnet.1} parent=1 // pred_check_branch
      %42 = sbr.rel (0) target = $region25
    $region24: #{mauro_mnist_convnet.1} parent=1 // pred_region
      %s44 = ssub.s32 16384, 16384
      %45 = vsyncadd [#allocation5], %s44
      %s46 = sshll.u32 [#allocation4], 4
      %s47 = int_to_ptr.vmem [resolvable:$true] %s46
      %52 = dma.hbm_to_vmem [thread:$0]  %s5, 16384, %s47, [#allocation5], 256, 256, 16
    $region25: #{mauro_mnist_convnet.1} parent=1 // pred_fallthru
      _
    // Predicated region
    $region26: #{mauro_mnist_convnet.1} parent=1 // pred_check
      _
    $region27: #{mauro_mnist_convnet.1} parent=1 // pred_check_branch
      %54 = sbr.rel (0) target = $region29
    $region28: #{mauro_mnist_convnet.1} parent=1 // pred_region
      _
    $region29: #{mauro_mnist_convnet.1} parent=1 // pred_fallthru
      _
    // Predicated region
    $region30: #{mauro_mnist_convnet.1} parent=1 // pred_check
      _
    $region31: #{mauro_mnist_convnet.1} parent=1 // pred_check_branch
      %56 = sbr.rel (0) target = $region33
    $region32: #{mauro_mnist_convnet.1} parent=1 // pred_region
      _
    $region33: #{mauro_mnist_convnet.1} parent=1 // pred_fallthru
      _
    // Predicated region
    $region34: #{mauro_mnist_convnet.1} parent=1 // pred_check
      _
    $region35: #{mauro_mnist_convnet.1} parent=1 // pred_check_branch
      %58 = sbr.rel (0) target = $region37
    $region36: #{mauro_mnist_convnet.1} parent=1 // pred_region
      _
    $region37: #{mauro_mnist_convnet.1} parent=1 // pred_fallthru
      _
    // Predicated region
    $region38: #{mauro_mnist_convnet.1} parent=1 // pred_check
      _
    $region39: #{mauro_mnist_convnet.1} parent=1 // pred_check_branch
      %60 = sbr.rel (0) target = $region41
    $region40: #{mauro_mnist_convnet.1} parent=1 // pred_region
      %s62 = ssub.s32 1024, 1024
      %63 = vsyncadd [#allocation5], %s62
      %s64 = sshll.u32 [#allocation6], 4
      %s65 = int_to_ptr.vmem [resolvable:$true] %s64
      %70 = dma.hbm_to_vmem [thread:$0]  %s9, 1024, %s65, [#allocation5], 64, 64, 4
    $region41: #{mauro_mnist_convnet.1} parent=1 // pred_fallthru
      _
    // Predicated region
    $region42: #{mauro_mnist_convnet.1} parent=1 // pred_check
      _
    $region43: #{mauro_mnist_convnet.1} parent=1 // pred_check_branch
      %72 = sbr.rel (0) target = $region45
    $region44: #{mauro_mnist_convnet.1} parent=1 // pred_region
      _
    $region45: #{mauro_mnist_convnet.1} parent=1 // pred_fallthru
      _
    // Predicated region
    $region46: #{mauro_mnist_convnet.1} parent=1 // pred_check
      _
    $region47: #{mauro_mnist_convnet.1} parent=1 // pred_check_branch
      %74 = sbr.rel (0) target = $region49
    $region48: #{mauro_mnist_convnet.1} parent=1 // pred_region
      %s76 = ssub.s32 1024, 1024
      %77 = vsyncadd [#allocation8], %s76
      %s78 = sshll.u32 [#allocation7], 4
      %s79 = int_to_ptr.vmem [resolvable:$true] %s78
      %84 = dma.hbm_to_vmem [thread:$0]  %s11, 1024, %s79, [#allocation8], 64, 64, 4
    $region49: #{mauro_mnist_convnet.1} parent=1 // pred_fallthru
      _
    // Predicated region
    $region50: #{mauro_mnist_convnet.1} parent=1 // pred_check
      _
    $region51: #{mauro_mnist_convnet.1} parent=1 // pred_check_branch
      %86 = sbr.rel (0) target = $region53
    $region52: #{mauro_mnist_convnet.1} parent=1 // pred_region
      _
    $region53: #{mauro_mnist_convnet.1} parent=1 // pred_fallthru
      _
    // Predicated region
    $region54: #{mauro_mnist_convnet.1} parent=1 // pred_check
      _
    $region55: #{mauro_mnist_convnet.1} parent=1 // pred_check_branch
      %88 = sbr.rel (0) target = $region57
    $region56: #{mauro_mnist_convnet.1} parent=1 // pred_region
      %89 = dma.done [#allocation3], 10240
    $region57: #{mauro_mnist_convnet.1} parent=1 // pred_fallthru
      _
    // Predicated region
    $region58: #{mauro_mnist_convnet.1} parent=1 // pred_check
      _
    $region59: #{mauro_mnist_convnet.1} parent=1 // pred_check_branch
      %91 = sbr.rel (0) target = $region61
    $region60: #{mauro_mnist_convnet.1} parent=1 // pred_region
      %92 = dma.done [#allocation5], 16384
    $region61: #{mauro_mnist_convnet.1} parent=1 // pred_fallthru
      _
    // Predicated region
    $region62: #{mauro_mnist_convnet.1} parent=1 // pred_check
      _
    $region63: #{mauro_mnist_convnet.1} parent=1 // pred_check_branch
      %94 = sbr.rel (0) target = $region65
    $region64: #{mauro_mnist_convnet.1} parent=1 // pred_region
      %95 = dma.done [#allocation5], 1024
    $region65: #{mauro_mnist_convnet.1} parent=1 // pred_fallthru
      _
    // Predicated region
    $region66: #{mauro_mnist_convnet.1} parent=1 // pred_check
      _
    $region67: #{mauro_mnist_convnet.1} parent=1 // pred_check_branch
      %97 = sbr.rel (0) target = $region69
    $region68: #{mauro_mnist_convnet.1} parent=1 // pred_region
      %98 = dma.done [#allocation8], 1024
    $region69: #{mauro_mnist_convnet.1} parent=1 // pred_fallthru
      _
    %v100 = vld [vmem:[%s0] sm:$0xf]
    %v101 = vld [vmem:[%s0 + $0x4] sm:$0xf]
    %v102 = vld [vmem:[%s0 + $0x8] sm:$0xf]
    %v103 = vld [vmem:[%s0 + $0xc] sm:$0x3]
    %v104 = vld [vmem:[%s0 + $0x10] sm:$0xf]
    %v105 = vld [vmem:[%s0 + $0x14] sm:$0xf]
    %v106 = vld [vmem:[%s0 + $0x18] sm:$0xf]
    %v107 = vld [vmem:[%s0 + $0x1c] sm:$0x3]
    %v108 = vld [vmem:[%s0 + $0x20] sm:$0xf]
    %v109 = vld [vmem:[%s0 + $0x24] sm:$0xf]
    %v110 = vld [vmem:[%s0 + $0x28] sm:$0xf]
    %v111 = vld [vmem:[%s0 + $0x2c] sm:$0x3]
    %v112 = vld [vmem:[%s0 + $0x30] sm:$0xf]
    %v113 = vld [vmem:[%s0 + $0x34] sm:$0xf]
    %v114 = vld [vmem:[%s0 + $0x38] sm:$0xf]
    %v115 = vld [vmem:[%s0 + $0x3c] sm:$0x3]
    %v116 = vld [vmem:[%s0 + $0x40] sm:$0xf]
    %v117 = vld [vmem:[%s0 + $0x44] sm:$0xf]
    %v118 = vld [vmem:[%s0 + $0x48] sm:$0xf]
    %v119 = vld [vmem:[%s0 + $0x4c] sm:$0x3]
    %v120 = vld [vmem:[%s0 + $0x50] sm:$0xf]
    %v121 = vld [vmem:[%s0 + $0x54] sm:$0xf]
    %v122 = vld [vmem:[%s0 + $0x58] sm:$0xf]
    %v123 = vld [vmem:[%s0 + $0x5c] sm:$0x3]
    %v124 = vld [vmem:[%s0 + $0x60] sm:$0xf]
    %v125 = vld [vmem:[%s0 + $0x64] sm:$0xf]
    %v126 = vld [vmem:[%s0 + $0x68] sm:$0xf]
    %v127 = vld [vmem:[%s0 + $0x6c] sm:$0x3]
    %v128 = vld [vmem:[%s0 + $0x70] sm:$0xf]
    %v129 = vld [vmem:[%s0 + $0x74] sm:$0xf]
    %v130 = vld [vmem:[%s0 + $0x78] sm:$0xf]
    %v131 = vld [vmem:[%s0 + $0x7c] sm:$0x3]
    %v132 = vunpack.c.l.bf16 %v100
    %v133 = vunpack.c.l.bf16 %v101
    %v134 = vunpack.c.l.bf16 %v102
    %v135 = vunpack.c.l.bf16 %v103
    %v136 = vunpack.c.l.bf16 %v104
    %v137 = vunpack.c.l.bf16 %v105
    %v138 = vunpack.c.l.bf16 %v106
    %v139 = vunpack.c.l.bf16 %v107
    %v140 = vunpack.c.l.bf16 %v108
    %v141 = vunpack.c.l.bf16 %v109
    %v142 = vunpack.c.l.bf16 %v110
    %v143 = vunpack.c.l.bf16 %v111
    %v144 = vunpack.c.l.bf16 %v112
    %v145 = vunpack.c.l.bf16 %v113
    %v146 = vunpack.c.l.bf16 %v114
    %v147 = vunpack.c.l.bf16 %v115
    %v148 = vunpack.c.l.bf16 %v116
    %v149 = vunpack.c.l.bf16 %v117
    %v150 = vunpack.c.l.bf16 %v118
    %v151 = vunpack.c.l.bf16 %v119
    %v152 = vunpack.c.l.bf16 %v120
    %v153 = vunpack.c.l.bf16 %v121
    %v154 = vunpack.c.l.bf16 %v122
    %v155 = vunpack.c.l.bf16 %v123
    %v156 = vunpack.c.l.bf16 %v124
    %v157 = vunpack.c.l.bf16 %v125
    %v158 = vunpack.c.l.bf16 %v126
    %v159 = vunpack.c.l.bf16 %v127
    %v160 = vunpack.c.l.bf16 %v128
    %v161 = vunpack.c.l.bf16 %v129
    %v162 = vunpack.c.l.bf16 %v130
    %v163 = vunpack.c.l.bf16 %v131
    %v164 = vpack.c.bf16 %v133, %v132
    %v165 = vpack.c.bf16 %v136, %v134
    %v166 = vpack.c.bf16 %v138, %v137
    %v167 = vpack.c.bf16 %v141, %v140
    %v168 = vpack.c.bf16 %v144, %v142
    %v169 = vpack.c.bf16 %v146, %v145
    %v170 = vpack.c.bf16 %v149, %v148
    %v171 = vpack.c.bf16 %v152, %v150
    %v172 = vpack.c.bf16 %v154, %v153
    %v173 = vpack.c.bf16 %v157, %v156
    %v174 = vpack.c.bf16 %v160, %v158
    %v175 = vpack.c.bf16 %v162, %v161
    %v176 = vld [vmem:[%s1] sm:$0xff]
    %v177 = vld [vmem:[%s1 + $0x8] sm:$0xff]
    %v178 = vld [vmem:[%s1 + $0x10] sm:$0xff]
    %v179 = vld [vmem:[%s1 + $0x18] sm:$0x33]
    %vm212 = vcmask 1046528
    %v213 = vrot.slane %v132, 1
    %v214 = vrot.slane %v133, 1
    %v215 = vsel %vm212, %v213, %v214
    %v216 = vrot.slane %v134, 1
    %v217 = vsel %vm212, %v214, %v216
    %v218 = vrot.slane %v135, 1
    %v219 = vsel %vm212, %v216, %v218
    %v220 = vrot.slane %v136, 1
    %v221 = vrot.slane %v137, 1
    %v222 = vsel %vm212, %v220, %v221
    %v223 = vrot.slane %v138, 1
    %v224 = vsel %vm212, %v221, %v223
    %v225 = vrot.slane %v139, 1
    %v226 = vsel %vm212, %v223, %v225
    %v227 = vrot.slane %v140, 1
    %v228 = vrot.slane %v141, 1
    %v229 = vsel %vm212, %v227, %v228
    %v230 = vrot.slane %v142, 1
    %v231 = vsel %vm212, %v228, %v230
    %v232 = vrot.slane %v143, 1
    %v233 = vsel %vm212, %v230, %v232
    %v234 = vrot.slane %v144, 1
    %v235 = vrot.slane %v145, 1
    %v236 = vsel %vm212, %v234, %v235
    %v237 = vrot.slane %v146, 1
    %v238 = vsel %vm212, %v235, %v237
    %v239 = vrot.slane %v147, 1
    %v240 = vsel %vm212, %v237, %v239
    %v241 = vrot.slane %v148, 1
    %v242 = vrot.slane %v149, 1
    %v243 = vsel %vm212, %v241, %v242
    %v244 = vrot.slane %v150, 1
    %v245 = vsel %vm212, %v242, %v244
    %v246 = vrot.slane %v151, 1
    %v247 = vsel %vm212, %v244, %v246
    %v248 = vrot.slane %v152, 1
    %v249 = vrot.slane %v153, 1
    %v250 = vsel %vm212, %v248, %v249
    %v251 = vrot.slane %v154, 1
    %v252 = vsel %vm212, %v249, %v251
    %v253 = vrot.slane %v155, 1
    %v254 = vsel %vm212, %v251, %v253
    %v255 = vrot.slane %v156, 1
    %v256 = vrot.slane %v157, 1
    %v257 = vsel %vm212, %v255, %v256
    %v258 = vrot.slane %v158, 1
    %v259 = vsel %vm212, %v256, %v258
    %v260 = vrot.slane %v159, 1
    %v261 = vsel %vm212, %v258, %v260
    %v262 = vrot.slane %v160, 1
    %v263 = vrot.slane %v161, 1
    %v264 = vsel %vm212, %v262, %v263
    %v265 = vrot.slane %v162, 1
    %v266 = vsel %vm212, %v263, %v265
    %v267 = vrot.slane %v163, 1
    %v268 = vsel %vm212, %v265, %v267
    %v293 = vpack.c.bf16 %v217, %v215
    %v294 = vpack.c.bf16 %v222, %v219
    %v295 = vpack.c.bf16 %v226, %v224
    %v296 = vpack.c.bf16 %v231, %v229
    %v297 = vpack.c.bf16 %v236, %v233
    %v298 = vpack.c.bf16 %v240, %v238
    %v299 = vpack.c.bf16 %v245, %v243
    %v300 = vpack.c.bf16 %v250, %v247
    %v301 = vpack.c.bf16 %v254, %v252
    %v302 = vpack.c.bf16 %v259, %v257
    %v303 = vpack.c.bf16 %v264, %v261
    %v304 = vpack.c.bf16 %v268, %v266
    %s305 = scalar_lea.vmem %s1, 32
    %v306 = vld [vmem:[%s305] sm:$0xff]
    %v307 = vld [vmem:[%s305 + $0x8] sm:$0xff]
    %v308 = vld [vmem:[%s305 + $0x10] sm:$0xff]
    %v309 = vld [vmem:[%s305 + $0x18] sm:$0x33]
    %v314 = vunpack.c.l.b16 %v306
    %v315 = vunpack.c.h.b16 %v306
    %v316 = vunpack.c.l.b16 %v307
    %v317 = vunpack.c.h.b16 %v307
    %v318 = vunpack.c.l.b16 %v308
    %v319 = vunpack.c.h.b16 %v308
    %v320 = vunpack.c.l.b16 %v309
    %v321 = vunpack.c.h.b16 %v309
    %v322 = vpack.c.b16 %v316, %v314
    %v323 = vpack.c.b16 %v317, %v315
    %v324 = vpack.c.b16 %v320, %v318
    %v325 = vpack.c.b16 %v321, %v319
    %vm328 = vcmask 228352
    %v330 = vsel %vm328, %v293, 0
    %v333 = vsel %vm328, %v294, 0
    %v336 = vsel %vm328, %v295, 0
    %v339 = vsel %vm328, %v296, 0
    %v342 = vsel %vm328, %v297, 0
    %v345 = vsel %vm328, %v298, 0
    %v348 = vsel %vm328, %v299, 0
    %v351 = vsel %vm328, %v300, 0
    %v354 = vsel %vm328, %v301, 0
    %v357 = vsel %vm328, %v302, 0
    %v360 = vsel %vm328, %v303, 0
    %v363 = vsel %vm328, %v304, 0
    %vm365 = vcmask 1045504
    %v367 = vsel %vm365, %v324, 0
    %v370 = vsel %vm365, %v325, 0
    %372 = vmatprep.subr.bf16.mxu0 0
    %373 = vmatpush1.bf16.msra.mxu0 0
    %374 = vmatprep.subr.bf16.mxu0 0
    %375 = vmatpush1.bf16.msra.mxu0 0
    %376 = vmatprep.subr.bf16.mxu0 0
    %377 = vmatpush1.bf16.msra.mxu0 0
    %378 = vmatprep.subr.bf16.mxu0 0
    %379 = vmatpush1.bf16.msra.mxu0 0
    %380 = vmatprep.subr.bf16.mxu0 0
    %381 = vmatpush1.bf16.msra.mxu0 0
    %382 = vmatprep.subr.bf16.mxu0 0
    %383 = vmatpush1.bf16.msra.mxu0 0
    %384 = vmatprep.subr.bf16.mxu0 %v370
    %385 = vmatpush1.bf16.msra.mxu0 %v367
    %386 = vmatprep.subr.bf16.mxu0 %v323
    %387 = vmatpush1.bf16.msra.mxu0 %v322
    %388 = vmatprep.subr.bf16.mxu0 0
    %389 = vmatpush2.bf16.msra.mxu0 0
    %390 = vmatprep.subr.bf16.mxu0 0
    %391 = vmatpush2.bf16.msra.mxu0 0
    %392 = vmatprep.subr.bf16.mxu0 0
    %393 = vmatpush2.bf16.msra.mxu0 0
    %394 = vmatprep.subr.bf16.mxu0 0
    %395 = vmatpush2.bf16.msra.mxu0 0
    %396 = vmatprep.subr.bf16.mxu0 0
    %397 = vmatpush2.bf16.msra.mxu0 0
    %398 = vmatprep.subr.bf16.mxu0 0
    %399 = vmatpush2.bf16.msra.mxu0 0
    %400 = vmatprep.subr.bf16.mxu0 0
    %401 = vmatpush2.bf16.msra.mxu0 0
    %402 = vmatprep.subr.bf16.mxu0 0
    %403 = vmatpush2.bf16.msra.mxu0 0
    %404 = vmatprep.mubr.bf16.mxu0 0
    %405 = vmatmul.mubr.bf16.gmra.mxu0 %v330
    %v406 = vpop.f32.mrf.mxu0
    %v407 = vadd.f32 0.0, %v406
    %v408 = vpop.f32.mrf.mxu0
    %v409 = vadd.f32 0.0, %v408
    %v410 = vpop.f32.mrf.mxu0
    %v411 = vadd.f32 0.0, %v410
    %v412 = vpop.f32.mrf.mxu0
    %v413 = vadd.f32 0.0, %v412
    %414 = vmatprep.mubr.bf16.mxu0 0
    %415 = vmatmul.mubr.bf16.gmra.mxu0 %v333
    %v416 = vpop.f32.mrf.mxu0
    %v417 = vadd.f32 0.0, %v416
    %v418 = vpop.f32.mrf.mxu0
    %v419 = vadd.f32 0.0, %v418
    %v420 = vpop.f32.mrf.mxu0
    %v421 = vadd.f32 0.0, %v420
    %v422 = vpop.f32.mrf.mxu0
    %v423 = vadd.f32 0.0, %v422
    %424 = vmatprep.mubr.bf16.mxu0 0
    %425 = vmatmul.mubr.bf16.gmra.mxu0 %v336
    %v426 = vpop.f32.mrf.mxu0
    %v427 = vadd.f32 0.0, %v426
    %v428 = vpop.f32.mrf.mxu0
    %v429 = vadd.f32 0.0, %v428
    %v430 = vpop.f32.mrf.mxu0
    %v431 = vadd.f32 0.0, %v430
    %v432 = vpop.f32.mrf.mxu0
    %v433 = vadd.f32 0.0, %v432
    %434 = vmatprep.mubr.bf16.mxu0 0
    %435 = vmatmul.mubr.bf16.gmra.mxu0 %v339
    %v436 = vpop.f32.mrf.mxu0
    %v437 = vadd.f32 0.0, %v436
    %v438 = vpop.f32.mrf.mxu0
    %v439 = vadd.f32 0.0, %v438
    %v440 = vpop.f32.mrf.mxu0
    %v441 = vadd.f32 0.0, %v440
    %v442 = vpop.f32.mrf.mxu0
    %v443 = vadd.f32 0.0, %v442
    %444 = vmatprep.mubr.bf16.mxu0 0
    %445 = vmatmul.mubr.bf16.gmra.mxu0 %v342
    %v446 = vpop.f32.mrf.mxu0
    %v447 = vadd.f32 0.0, %v446
    %v448 = vpop.f32.mrf.mxu0
    %v449 = vadd.f32 0.0, %v448
    %v450 = vpop.f32.mrf.mxu0
    %v451 = vadd.f32 0.0, %v450
    %v452 = vpop.f32.mrf.mxu0
    %v453 = vadd.f32 0.0, %v452
    %454 = vmatprep.mubr.bf16.mxu0 0
    %455 = vmatmul.mubr.bf16.gmra.mxu0 %v345
    %v456 = vpop.f32.mrf.mxu0
    %v457 = vadd.f32 0.0, %v456
    %v458 = vpop.f32.mrf.mxu0
    %v459 = vadd.f32 0.0, %v458
    %v460 = vpop.f32.mrf.mxu0
    %v461 = vadd.f32 0.0, %v460
    %v462 = vpop.f32.mrf.mxu0
    %v463 = vadd.f32 0.0, %v462
    %464 = vmatprep.mubr.bf16.mxu0 0
    %465 = vmatmul.mubr.bf16.gmra.mxu0 %v348
    %v466 = vpop.f32.mrf.mxu0
    %v467 = vadd.f32 0.0, %v466
    %v468 = vpop.f32.mrf.mxu0
    %v469 = vadd.f32 0.0, %v468
    %v470 = vpop.f32.mrf.mxu0
    %v471 = vadd.f32 0.0, %v470
    %v472 = vpop.f32.mrf.mxu0
    %v473 = vadd.f32 0.0, %v472
    %474 = vmatprep.mubr.bf16.mxu0 0
    %475 = vmatmul.mubr.bf16.gmra.mxu0 %v351
    %v476 = vpop.f32.mrf.mxu0
    %v477 = vadd.f32 0.0, %v476
    %v478 = vpop.f32.mrf.mxu0
    %v479 = vadd.f32 0.0, %v478
    %v480 = vpop.f32.mrf.mxu0
    %v481 = vadd.f32 0.0, %v480
    %v482 = vpop.f32.mrf.mxu0
    %v483 = vadd.f32 0.0, %v482
    %484 = vmatprep.mubr.bf16.mxu0 0
    %485 = vmatmul.mubr.bf16.gmra.mxu0 %v354
    %v486 = vpop.f32.mrf.mxu0
    %v487 = vadd.f32 0.0, %v486
    %v488 = vpop.f32.mrf.mxu0
    %v489 = vadd.f32 0.0, %v488
    %v490 = vpop.f32.mrf.mxu0
    %v491 = vadd.f32 0.0, %v490
    %v492 = vpop.f32.mrf.mxu0
    %v493 = vadd.f32 0.0, %v492
    %494 = vmatprep.mubr.bf16.mxu0 0
    %495 = vmatmul.mubr.bf16.gmra.mxu0 %v357
    %v496 = vpop.f32.mrf.mxu0
    %v497 = vadd.f32 0.0, %v496
    %v498 = vpop.f32.mrf.mxu0
    %v499 = vadd.f32 0.0, %v498
    %v500 = vpop.f32.mrf.mxu0
    %v501 = vadd.f32 0.0, %v500
    %v502 = vpop.f32.mrf.mxu0
    %v503 = vadd.f32 0.0, %v502
    %504 = vmatprep.mubr.bf16.mxu0 0
    %505 = vmatmul.mubr.bf16.gmra.mxu0 %v360
    %v506 = vpop.f32.mrf.mxu0
    %v507 = vadd.f32 0.0, %v506
    %v508 = vpop.f32.mrf.mxu0
    %v509 = vadd.f32 0.0, %v508
    %v510 = vpop.f32.mrf.mxu0
    %v511 = vadd.f32 0.0, %v510
    %v512 = vpop.f32.mrf.mxu0
    %v513 = vadd.f32 0.0, %v512
    %514 = vmatprep.mubr.bf16.mxu0 0
    %515 = vmatmul.mubr.bf16.gmra.mxu0 %v363
    %v516 = vpop.f32.mrf.mxu0
    %v517 = vadd.f32 0.0, %v516
    %v518 = vpop.f32.mrf.mxu0
    %v519 = vadd.f32 0.0, %v518
    %v520 = vpop.f32.mrf.mxu0
    %v521 = vadd.f32 0.0, %v520
    %v522 = vpop.f32.mrf.mxu0
    %v523 = vadd.f32 0.0, %v522
    %524 = vdwg.mxu0
    %v529 = vunpack.c.l.b16 %v176
    %v530 = vunpack.c.h.b16 %v176
    %v531 = vunpack.c.l.b16 %v177
    %v532 = vunpack.c.h.b16 %v177
    %v533 = vunpack.c.l.b16 %v178
    %v534 = vunpack.c.h.b16 %v178
    %v535 = vunpack.c.l.b16 %v179
    %v536 = vunpack.c.h.b16 %v179
    %v537 = vpack.c.b16 %v531, %v529
    %v538 = vpack.c.b16 %v532, %v530
    %v539 = vpack.c.b16 %v535, %v533
    %v540 = vpack.c.b16 %v536, %v534
    %v544 = vsel %vm328, %v164, 0
    %v547 = vsel %vm328, %v165, 0
    %v550 = vsel %vm328, %v166, 0
    %v553 = vsel %vm328, %v167, 0
    %v556 = vsel %vm328, %v168, 0
    %v559 = vsel %vm328, %v169, 0
    %v562 = vsel %vm328, %v170, 0
    %v565 = vsel %vm328, %v171, 0
    %v568 = vsel %vm328, %v172, 0
    %v571 = vsel %vm328, %v173, 0
    %v574 = vsel %vm328, %v174, 0
    %v577 = vsel %vm328, %v175, 0
    %v580 = vsel %vm365, %v539, 0
    %v583 = vsel %vm365, %v540, 0
    %585 = vmatprep.subr.bf16.mxu0 0
    %586 = vmatpush1.bf16.msra.mxu0 0
    %587 = vmatprep.subr.bf16.mxu0 0
    %588 = vmatpush1.bf16.msra.mxu0 0
    %589 = vmatprep.subr.bf16.mxu0 0
    %590 = vmatpush1.bf16.msra.mxu0 0
    %591 = vmatprep.subr.bf16.mxu0 0
    %592 = vmatpush1.bf16.msra.mxu0 0
    %593 = vmatprep.subr.bf16.mxu0 0
    %594 = vmatpush1.bf16.msra.mxu0 0
    %595 = vmatprep.subr.bf16.mxu0 0
    %596 = vmatpush1.bf16.msra.mxu0 0
    %597 = vmatprep.subr.bf16.mxu0 %v583
    %598 = vmatpush1.bf16.msra.mxu0 %v580
    %599 = vmatprep.subr.bf16.mxu0 %v538
    %600 = vmatpush1.bf16.msra.mxu0 %v537
    %601 = vmatprep.subr.bf16.mxu0 0
    %602 = vmatpush2.bf16.msra.mxu0 0
    %603 = vmatprep.subr.bf16.mxu0 0
    %604 = vmatpush2.bf16.msra.mxu0 0
    %605 = vmatprep.subr.bf16.mxu0 0
    %606 = vmatpush2.bf16.msra.mxu0 0
    %607 = vmatprep.subr.bf16.mxu0 0
    %608 = vmatpush2.bf16.msra.mxu0 0
    %609 = vmatprep.subr.bf16.mxu0 0
    %610 = vmatpush2.bf16.msra.mxu0 0
    %611 = vmatprep.subr.bf16.mxu0 0
    %612 = vmatpush2.bf16.msra.mxu0 0
    %613 = vmatprep.subr.bf16.mxu0 0
    %614 = vmatpush2.bf16.msra.mxu0 0
    %615 = vmatprep.subr.bf16.mxu0 0
    %616 = vmatpush2.bf16.msra.mxu0 0
    %617 = vmatprep.mubr.bf16.mxu0 0
    %618 = vmatmul.mubr.bf16.gmra.mxu0 %v544
    %v619 = vpop.f32.mrf.mxu0
    %v620 = vadd.f32 %v407, %v619
    %v621 = vpop.f32.mrf.mxu0
    %v622 = vadd.f32 %v409, %v621
    %v623 = vpop.f32.mrf.mxu0
    %v624 = vadd.f32 %v411, %v623
    %v625 = vpop.f32.mrf.mxu0
    %v626 = vadd.f32 %v413, %v625
    %627 = vmatprep.mubr.bf16.mxu0 0
    %628 = vmatmul.mubr.bf16.gmra.mxu0 %v547
    %v629 = vpop.f32.mrf.mxu0
    %v630 = vadd.f32 %v417, %v629
    %v631 = vpop.f32.mrf.mxu0
    %v632 = vadd.f32 %v419, %v631
    %v633 = vpop.f32.mrf.mxu0
    %v634 = vadd.f32 %v421, %v633
    %v635 = vpop.f32.mrf.mxu0
    %v636 = vadd.f32 %v423, %v635
    %637 = vmatprep.mubr.bf16.mxu0 0
    %638 = vmatmul.mubr.bf16.gmra.mxu0 %v550
    %v639 = vpop.f32.mrf.mxu0
    %v640 = vadd.f32 %v427, %v639
    %v641 = vpop.f32.mrf.mxu0
    %v642 = vadd.f32 %v429, %v641
    %v643 = vpop.f32.mrf.mxu0
    %v644 = vadd.f32 %v431, %v643
    %v645 = vpop.f32.mrf.mxu0
    %v646 = vadd.f32 %v433, %v645
    %647 = vmatprep.mubr.bf16.mxu0 0
    %648 = vmatmul.mubr.bf16.gmra.mxu0 %v553
    %v649 = vpop.f32.mrf.mxu0
    %v650 = vadd.f32 %v437, %v649
    %v651 = vpop.f32.mrf.mxu0
    %v652 = vadd.f32 %v439, %v651
    %v653 = vpop.f32.mrf.mxu0
    %v654 = vadd.f32 %v441, %v653
    %v655 = vpop.f32.mrf.mxu0
    %v656 = vadd.f32 %v443, %v655
    %657 = vmatprep.mubr.bf16.mxu0 0
    %658 = vmatmul.mubr.bf16.gmra.mxu0 %v556
    %v659 = vpop.f32.mrf.mxu0
    %v660 = vadd.f32 %v447, %v659
    %v661 = vpop.f32.mrf.mxu0
    %v662 = vadd.f32 %v449, %v661
    %v663 = vpop.f32.mrf.mxu0
    %v664 = vadd.f32 %v451, %v663
    %v665 = vpop.f32.mrf.mxu0
    %v666 = vadd.f32 %v453, %v665
    %667 = vmatprep.mubr.bf16.mxu0 0
    %668 = vmatmul.mubr.bf16.gmra.mxu0 %v559
    %v669 = vpop.f32.mrf.mxu0
    %v670 = vadd.f32 %v457, %v669
    %v671 = vpop.f32.mrf.mxu0
    %v672 = vadd.f32 %v459, %v671
    %v673 = vpop.f32.mrf.mxu0
    %v674 = vadd.f32 %v461, %v673
    %v675 = vpop.f32.mrf.mxu0
    %v676 = vadd.f32 %v463, %v675
    %677 = vmatprep.mubr.bf16.mxu0 0
    %678 = vmatmul.mubr.bf16.gmra.mxu0 %v562
    %v679 = vpop.f32.mrf.mxu0
    %v680 = vadd.f32 %v467, %v679
    %v681 = vpop.f32.mrf.mxu0
    %v682 = vadd.f32 %v469, %v681
    %v683 = vpop.f32.mrf.mxu0
    %v684 = vadd.f32 %v471, %v683
    %v685 = vpop.f32.mrf.mxu0
    %v686 = vadd.f32 %v473, %v685
    %687 = vmatprep.mubr.bf16.mxu0 0
    %688 = vmatmul.mubr.bf16.gmra.mxu0 %v565
    %v689 = vpop.f32.mrf.mxu0
    %v690 = vadd.f32 %v477, %v689
    %v691 = vpop.f32.mrf.mxu0
    %v692 = vadd.f32 %v479, %v691
    %v693 = vpop.f32.mrf.mxu0
    %v694 = vadd.f32 %v481, %v693
    %v695 = vpop.f32.mrf.mxu0
    %v696 = vadd.f32 %v483, %v695
    %697 = vmatprep.mubr.bf16.mxu0 0
    %698 = vmatmul.mubr.bf16.gmra.mxu0 %v568
    %v699 = vpop.f32.mrf.mxu0
    %v700 = vadd.f32 %v487, %v699
    %v701 = vpop.f32.mrf.mxu0
    %v702 = vadd.f32 %v489, %v701
    %v703 = vpop.f32.mrf.mxu0
    %v704 = vadd.f32 %v491, %v703
    %v705 = vpop.f32.mrf.mxu0
    %v706 = vadd.f32 %v493, %v705
    %707 = vmatprep.mubr.bf16.mxu0 0
    %708 = vmatmul.mubr.bf16.gmra.mxu0 %v571
    %v709 = vpop.f32.mrf.mxu0
    %v710 = vadd.f32 %v497, %v709
    %v711 = vpop.f32.mrf.mxu0
    %v712 = vadd.f32 %v499, %v711
    %v713 = vpop.f32.mrf.mxu0
    %v714 = vadd.f32 %v501, %v713
    %v715 = vpop.f32.mrf.mxu0
    %v716 = vadd.f32 %v503, %v715
    %717 = vmatprep.mubr.bf16.mxu0 0
    %718 = vmatmul.mubr.bf16.gmra.mxu0 %v574
    %v719 = vpop.f32.mrf.mxu0
    %v720 = vadd.f32 %v507, %v719
    %v721 = vpop.f32.mrf.mxu0
    %v722 = vadd.f32 %v509, %v721
    %v723 = vpop.f32.mrf.mxu0
    %v724 = vadd.f32 %v511, %v723
    %v725 = vpop.f32.mrf.mxu0
    %v726 = vadd.f32 %v513, %v725
    %727 = vmatprep.mubr.bf16.mxu0 0
    %728 = vmatmul.mubr.bf16.gmra.mxu0 %v577
    %v729 = vpop.f32.mrf.mxu0
    %v730 = vadd.f32 %v517, %v729
    %v731 = vpop.f32.mrf.mxu0
    %v732 = vadd.f32 %v519, %v731
    %v733 = vpop.f32.mrf.mxu0
    %v734 = vadd.f32 %v521, %v733
    %v735 = vpop.f32.mrf.mxu0
    %v736 = vadd.f32 %v523, %v735
    %737 = vdwg.mxu0
    %v738 = vrot.slane %v132, 2
    %v739 = vrot.slane %v133, 2
    %v740 = vsel %vm365, %v738, %v739
    %v741 = vrot.slane %v134, 2
    %v742 = vsel %vm365, %v739, %v741
    %v743 = vrot.slane %v135, 2
    %v744 = vsel %vm365, %v741, %v743
    %v745 = vrot.slane %v136, 2
    %v746 = vrot.slane %v137, 2
    %v747 = vsel %vm365, %v745, %v746
    %v748 = vrot.slane %v138, 2
    %v749 = vsel %vm365, %v746, %v748
    %v750 = vrot.slane %v139, 2
    %v751 = vsel %vm365, %v748, %v750
    %v752 = vrot.slane %v140, 2
    %v753 = vrot.slane %v141, 2
    %v754 = vsel %vm365, %v752, %v753
    %v755 = vrot.slane %v142, 2
    %v756 = vsel %vm365, %v753, %v755
    %v757 = vrot.slane %v143, 2
    %v758 = vsel %vm365, %v755, %v757
    %v759 = vrot.slane %v144, 2
    %v760 = vrot.slane %v145, 2
    %v761 = vsel %vm365, %v759, %v760
    %v762 = vrot.slane %v146, 2
    %v763 = vsel %vm365, %v760, %v762
    %v764 = vrot.slane %v147, 2
    %v765 = vsel %vm365, %v762, %v764
    %v766 = vrot.slane %v148, 2
    %v767 = vrot.slane %v149, 2
    %v768 = vsel %vm365, %v766, %v767
    %v769 = vrot.slane %v150, 2
    %v770 = vsel %vm365, %v767, %v769
    %v771 = vrot.slane %v151, 2
    %v772 = vsel %vm365, %v769, %v771
    %v773 = vrot.slane %v152, 2
    %v774 = vrot.slane %v153, 2
    %v775 = vsel %vm365, %v773, %v774
    %v776 = vrot.slane %v154, 2
    %v777 = vsel %vm365, %v774, %v776
    %v778 = vrot.slane %v155, 2
    %v779 = vsel %vm365, %v776, %v778
    %v780 = vrot.slane %v156, 2
    %v781 = vrot.slane %v157, 2
    %v782 = vsel %vm365, %v780, %v781
    %v783 = vrot.slane %v158, 2
    %v784 = vsel %vm365, %v781, %v783
    %v785 = vrot.slane %v159, 2
    %v786 = vsel %vm365, %v783, %v785
    %v787 = vrot.slane %v160, 2
    %v788 = vrot.slane %v161, 2
    %v789 = vsel %vm365, %v787, %v788
    %v790 = vrot.slane %v162, 2
    %v791 = vsel %vm365, %v788, %v790
    %v792 = vrot.slane %v163, 2
    %v793 = vsel %vm365, %v790, %v792
    %v818 = vpack.c.bf16 %v742, %v740
    %v819 = vpack.c.bf16 %v747, %v744
    %v820 = vpack.c.bf16 %v751, %v749
    %v821 = vpack.c.bf16 %v756, %v754
    %v822 = vpack.c.bf16 %v761, %v758
    %v823 = vpack.c.bf16 %v765, %v763
    %v824 = vpack.c.bf16 %v770, %v768
    %v825 = vpack.c.bf16 %v775, %v772
    %v826 = vpack.c.bf16 %v779, %v777
    %v827 = vpack.c.bf16 %v784, %v782
    %v828 = vpack.c.bf16 %v789, %v786
    %v829 = vpack.c.bf16 %v793, %v791
    %s830 = scalar_lea.vmem %s1, 64
    %v831 = vld [vmem:[%s830] sm:$0xff]
    %v832 = vld [vmem:[%s830 + $0x8] sm:$0xff]
    %v833 = vld [vmem:[%s830 + $0x10] sm:$0xff]
    %v834 = vld [vmem:[%s830 + $0x18] sm:$0x33]
    %v839 = vunpack.c.l.b16 %v831
    %v840 = vunpack.c.h.b16 %v831
    %v841 = vunpack.c.l.b16 %v832
    %v842 = vunpack.c.h.b16 %v832
    %v843 = vunpack.c.l.b16 %v833
    %v844 = vunpack.c.h.b16 %v833
    %v845 = vunpack.c.l.b16 %v834
    %v846 = vunpack.c.h.b16 %v834
    %v847 = vpack.c.b16 %v841, %v839
    %v848 = vpack.c.b16 %v842, %v840
    %v849 = vpack.c.b16 %v845, %v843
    %v850 = vpack.c.b16 %v846, %v844
    %v854 = vsel %vm328, %v818, 0
    %v857 = vsel %vm328, %v819, 0
    %v860 = vsel %vm328, %v820, 0
    %v863 = vsel %vm328, %v821, 0
    %v866 = vsel %vm328, %v822, 0
    %v869 = vsel %vm328, %v823, 0
    %v872 = vsel %vm328, %v824, 0
    %v875 = vsel %vm328, %v825, 0
    %v878 = vsel %vm328, %v826, 0
    %v881 = vsel %vm328, %v827, 0
    %v884 = vsel %vm328, %v828, 0
    %v887 = vsel %vm328, %v829, 0
    %v890 = vsel %vm365, %v849, 0
    %v893 = vsel %vm365, %v850, 0
    %895 = vmatprep.subr.bf16.mxu0 0
    %896 = vmatpush1.bf16.msra.mxu0 0
    %897 = vmatprep.subr.bf16.mxu0 0
    %898 = vmatpush1.bf16.msra.mxu0 0
    %899 = vmatprep.subr.bf16.mxu0 0
    %900 = vmatpush1.bf16.msra.mxu0 0
    %901 = vmatprep.subr.bf16.mxu0 0
    %902 = vmatpush1.bf16.msra.mxu0 0
    %903 = vmatprep.subr.bf16.mxu0 0
    %904 = vmatpush1.bf16.msra.mxu0 0
    %905 = vmatprep.subr.bf16.mxu0 0
    %906 = vmatpush1.bf16.msra.mxu0 0
    %907 = vmatprep.subr.bf16.mxu0 %v893
    %908 = vmatpush1.bf16.msra.mxu0 %v890
    %909 = vmatprep.subr.bf16.mxu0 %v848
    %910 = vmatpush1.bf16.msra.mxu0 %v847
    %911 = vmatprep.subr.bf16.mxu0 0
    %912 = vmatpush2.bf16.msra.mxu0 0
    %913 = vmatprep.subr.bf16.mxu0 0
    %914 = vmatpush2.bf16.msra.mxu0 0
    %915 = vmatprep.subr.bf16.mxu0 0
    %916 = vmatpush2.bf16.msra.mxu0 0
    %917 = vmatprep.subr.bf16.mxu0 0
    %918 = vmatpush2.bf16.msra.mxu0 0
    %919 = vmatprep.subr.bf16.mxu0 0
    %920 = vmatpush2.bf16.msra.mxu0 0
    %921 = vmatprep.subr.bf16.mxu0 0
    %922 = vmatpush2.bf16.msra.mxu0 0
    %923 = vmatprep.subr.bf16.mxu0 0
    %924 = vmatpush2.bf16.msra.mxu0 0
    %925 = vmatprep.subr.bf16.mxu0 0
    %926 = vmatpush2.bf16.msra.mxu0 0
    %927 = vmatprep.mubr.bf16.mxu0 0
    %928 = vmatmul.mubr.bf16.gmra.mxu0 %v854
    %v929 = vpop.f32.mrf.mxu0
    %v930 = vadd.f32 0.0, %v929
    %v931 = vpop.f32.mrf.mxu0
    %v932 = vadd.f32 0.0, %v931
    %v933 = vpop.f32.mrf.mxu0
    %v934 = vadd.f32 0.0, %v933
    %v935 = vpop.f32.mrf.mxu0
    %v936 = vadd.f32 0.0, %v935
    %937 = vmatprep.mubr.bf16.mxu0 0
    %938 = vmatmul.mubr.bf16.gmra.mxu0 %v857
    %v939 = vpop.f32.mrf.mxu0
    %v940 = vadd.f32 0.0, %v939
    %v941 = vpop.f32.mrf.mxu0
    %v942 = vadd.f32 0.0, %v941
    %v943 = vpop.f32.mrf.mxu0
    %v944 = vadd.f32 0.0, %v943
    %v945 = vpop.f32.mrf.mxu0
    %v946 = vadd.f32 0.0, %v945
    %947 = vmatprep.mubr.bf16.mxu0 0
    %948 = vmatmul.mubr.bf16.gmra.mxu0 %v860
    %v949 = vpop.f32.mrf.mxu0
    %v950 = vadd.f32 0.0, %v949
    %v951 = vpop.f32.mrf.mxu0
    %v952 = vadd.f32 0.0, %v951
    %v953 = vpop.f32.mrf.mxu0
    %v954 = vadd.f32 0.0, %v953
    %v955 = vpop.f32.mrf.mxu0
    %v956 = vadd.f32 0.0, %v955
    %957 = vmatprep.mubr.bf16.mxu0 0
    %958 = vmatmul.mubr.bf16.gmra.mxu0 %v863
    %v959 = vpop.f32.mrf.mxu0
    %v960 = vadd.f32 0.0, %v959
    %v961 = vpop.f32.mrf.mxu0
    %v962 = vadd.f32 0.0, %v961
    %v963 = vpop.f32.mrf.mxu0
    %v964 = vadd.f32 0.0, %v963
    %v965 = vpop.f32.mrf.mxu0
    %v966 = vadd.f32 0.0, %v965
    %967 = vmatprep.mubr.bf16.mxu0 0
    %968 = vmatmul.mubr.bf16.gmra.mxu0 %v866
    %v969 = vpop.f32.mrf.mxu0
    %v970 = vadd.f32 0.0, %v969
    %v971 = vpop.f32.mrf.mxu0
    %v972 = vadd.f32 0.0, %v971
    %v973 = vpop.f32.mrf.mxu0
    %v974 = vadd.f32 0.0, %v973
    %v975 = vpop.f32.mrf.mxu0
    %v976 = vadd.f32 0.0, %v975
    %977 = vmatprep.mubr.bf16.mxu0 0
    %978 = vmatmul.mubr.bf16.gmra.mxu0 %v869
    %v979 = vpop.f32.mrf.mxu0
    %v980 = vadd.f32 0.0, %v979
    %v981 = vpop.f32.mrf.mxu0
    %v982 = vadd.f32 0.0, %v981
    %v983 = vpop.f32.mrf.mxu0
    %v984 = vadd.f32 0.0, %v983
    %v985 = vpop.f32.mrf.mxu0
    %v986 = vadd.f32 0.0, %v985
    %987 = vmatprep.mubr.bf16.mxu0 0
    %988 = vmatmul.mubr.bf16.gmra.mxu0 %v872
    %v989 = vpop.f32.mrf.mxu0
    %v990 = vadd.f32 0.0, %v989
    %v991 = vpop.f32.mrf.mxu0
    %v992 = vadd.f32 0.0, %v991
    %v993 = vpop.f32.mrf.mxu0
    %v994 = vadd.f32 0.0, %v993
    %v995 = vpop.f32.mrf.mxu0
    %v996 = vadd.f32 0.0, %v995
    %997 = vmatprep.mubr.bf16.mxu0 0
    %998 = vmatmul.mubr.bf16.gmra.mxu0 %v875
    %v999 = vpop.f32.mrf.mxu0
    %v1000 = vadd.f32 0.0, %v999
    %v1001 = vpop.f32.mrf.mxu0
    %v1002 = vadd.f32 0.0, %v1001
    %v1003 = vpop.f32.mrf.mxu0
    %v1004 = vadd.f32 0.0, %v1003
    %v1005 = vpop.f32.mrf.mxu0
    %v1006 = vadd.f32 0.0, %v1005
    %1007 = vmatprep.mubr.bf16.mxu0 0
    %1008 = vmatmul.mubr.bf16.gmra.mxu0 %v878
    %v1009 = vpop.f32.mrf.mxu0
    %v1010 = vadd.f32 0.0, %v1009
    %v1011 = vpop.f32.mrf.mxu0
    %v1012 = vadd.f32 0.0, %v1011
    %v1013 = vpop.f32.mrf.mxu0
    %v1014 = vadd.f32 0.0, %v1013
    %v1015 = vpop.f32.mrf.mxu0
    %v1016 = vadd.f32 0.0, %v1015
    %1017 = vmatprep.mubr.bf16.mxu0 0
    %1018 = vmatmul.mubr.bf16.gmra.mxu0 %v881
    %v1019 = vpop.f32.mrf.mxu0
    %v1020 = vadd.f32 0.0, %v1019
    %v1021 = vpop.f32.mrf.mxu0
    %v1022 = vadd.f32 0.0, %v1021
    %v1023 = vpop.f32.mrf.mxu0
    %v1024 = vadd.f32 0.0, %v1023
    %v1025 = vpop.f32.mrf.mxu0
    %v1026 = vadd.f32 0.0, %v1025
    %1027 = vmatprep.mubr.bf16.mxu0 0
    %1028 = vmatmul.mubr.bf16.gmra.mxu0 %v884
    %v1029 = vpop.f32.mrf.mxu0
    %v1030 = vadd.f32 0.0, %v1029
    %v1031 = vpop.f32.mrf.mxu0
    %v1032 = vadd.f32 0.0, %v1031
    %v1033 = vpop.f32.mrf.mxu0
    %v1034 = vadd.f32 0.0, %v1033
    %v1035 = vpop.f32.mrf.mxu0
    %v1036 = vadd.f32 0.0, %v1035
    %1037 = vmatprep.mubr.bf16.mxu0 0
    %1038 = vmatmul.mubr.bf16.gmra.mxu0 %v887
    %v1039 = vpop.f32.mrf.mxu0
    %v1040 = vadd.f32 0.0, %v1039
    %v1041 = vpop.f32.mrf.mxu0
    %v1042 = vadd.f32 0.0, %v1041
    %v1043 = vpop.f32.mrf.mxu0
    %v1044 = vadd.f32 0.0, %v1043
    %v1045 = vpop.f32.mrf.mxu0
    %v1046 = vadd.f32 0.0, %v1045
    %1047 = vdwg.mxu0
    %v1048 = vadd.f32 %v620, %v930
    %v1049 = vadd.f32 %v622, %v932
    %v1050 = vadd.f32 %v624, %v934
    %v1051 = vadd.f32 %v626, %v936
    %v1052 = vadd.f32 %v630, %v940
    %v1053 = vadd.f32 %v632, %v942
    %v1054 = vadd.f32 %v634, %v944
    %v1055 = vadd.f32 %v636, %v946
    %v1056 = vadd.f32 %v640, %v950
    %v1057 = vadd.f32 %v642, %v952
    %v1058 = vadd.f32 %v644, %v954
    %v1059 = vadd.f32 %v646, %v956
    %v1060 = vadd.f32 %v650, %v960
    %v1061 = vadd.f32 %v652, %v962
    %v1062 = vadd.f32 %v654, %v964
    %v1063 = vadd.f32 %v656, %v966
    %v1064 = vadd.f32 %v660, %v970
    %v1065 = vadd.f32 %v662, %v972
    %v1066 = vadd.f32 %v664, %v974
    %v1067 = vadd.f32 %v666, %v976
    %v1068 = vadd.f32 %v670, %v980
    %v1069 = vadd.f32 %v672, %v982
    %v1070 = vadd.f32 %v674, %v984
    %v1071 = vadd.f32 %v676, %v986
    %v1072 = vadd.f32 %v680, %v990
    %v1073 = vadd.f32 %v682, %v992
    %v1074 = vadd.f32 %v684, %v994
    %v1075 = vadd.f32 %v686, %v996
    %v1076 = vadd.f32 %v690, %v1000
    %v1077 = vadd.f32 %v692, %v1002
    %v1078 = vadd.f32 %v694, %v1004
    %v1079 = vadd.f32 %v696, %v1006
    %v1080 = vadd.f32 %v700, %v1010
    %v1081 = vadd.f32 %v702, %v1012
    %v1082 = vadd.f32 %v704, %v1014
    %v1083 = vadd.f32 %v706, %v1016
    %v1084 = vadd.f32 %v710, %v1020
    %v1085 = vadd.f32 %v712, %v1022
    %v1086 = vadd.f32 %v714, %v1024
    %v1087 = vadd.f32 %v716, %v1026
    %v1088 = vadd.f32 %v720, %v1030
    %v1089 = vadd.f32 %v722, %v1032
    %v1090 = vadd.f32 %v724, %v1034
    %v1091 = vadd.f32 %v726, %v1036
    %v1092 = vadd.f32 %v730, %v1040
    %v1093 = vadd.f32 %v732, %v1042
    %v1094 = vadd.f32 %v734, %v1044
    %v1095 = vadd.f32 %v736, %v1046
    %vm1096 = vcmask 1044480
    %v1097 = vrot.slane %v132, 3
    %v1098 = vrot.slane %v133, 3
    %v1099 = vsel %vm1096, %v1097, %v1098
    %v1100 = vrot.slane %v134, 3
    %v1101 = vsel %vm1096, %v1098, %v1100
    %v1102 = vrot.slane %v135, 3
    %v1103 = vsel %vm1096, %v1100, %v1102
    %v1104 = vrot.slane %v136, 3
    %v1105 = vrot.slane %v137, 3
    %v1106 = vsel %vm1096, %v1104, %v1105
    %v1107 = vrot.slane %v138, 3
    %v1108 = vsel %vm1096, %v1105, %v1107
    %v1109 = vrot.slane %v139, 3
    %v1110 = vsel %vm1096, %v1107, %v1109
    %v1111 = vrot.slane %v140, 3
    %v1112 = vrot.slane %v141, 3
    %v1113 = vsel %vm1096, %v1111, %v1112
    %v1114 = vrot.slane %v142, 3
    %v1115 = vsel %vm1096, %v1112, %v1114
    %v1116 = vrot.slane %v143, 3
    %v1117 = vsel %vm1096, %v1114, %v1116
    %v1118 = vrot.slane %v144, 3
    %v1119 = vrot.slane %v145, 3
    %v1120 = vsel %vm1096, %v1118, %v1119
    %v1121 = vrot.slane %v146, 3
    %v1122 = vsel %vm1096, %v1119, %v1121
    %v1123 = vrot.slane %v147, 3
    %v1124 = vsel %vm1096, %v1121, %v1123
    %v1125 = vrot.slane %v148, 3
    %v1126 = vrot.slane %v149, 3
    %v1127 = vsel %vm1096, %v1125, %v1126
    %v1128 = vrot.slane %v150, 3
    %v1129 = vsel %vm1096, %v1126, %v1128
    %v1130 = vrot.slane %v151, 3
    %v1131 = vsel %vm1096, %v1128, %v1130
    %v1132 = vrot.slane %v152, 3
    %v1133 = vrot.slane %v153, 3
    %v1134 = vsel %vm1096, %v1132, %v1133
    %v1135 = vrot.slane %v154, 3
    %v1136 = vsel %vm1096, %v1133, %v1135
    %v1137 = vrot.slane %v155, 3
    %v1138 = vsel %vm1096, %v1135, %v1137
    %v1139 = vrot.slane %v156, 3
    %v1140 = vrot.slane %v157, 3
    %v1141 = vsel %vm1096, %v1139, %v1140
    %v1142 = vrot.slane %v158, 3
    %v1143 = vsel %vm1096, %v1140, %v1142
    %v1144 = vrot.slane %v159, 3
    %v1145 = vsel %vm1096, %v1142, %v1144
    %v1146 = vrot.slane %v160, 3
    %v1147 = vrot.slane %v161, 3
    %v1148 = vsel %vm1096, %v1146, %v1147
    %v1149 = vrot.slane %v162, 3
    %v1150 = vsel %vm1096, %v1147, %v1149
    %v1151 = vrot.slane %v163, 3
    %v1152 = vsel %vm1096, %v1149, %v1151
    %v1177 = vpack.c.bf16 %v1101, %v1099
    %v1178 = vpack.c.bf16 %v1106, %v1103
    %v1179 = vpack.c.bf16 %v1110, %v1108
    %v1180 = vpack.c.bf16 %v1115, %v1113
    %v1181 = vpack.c.bf16 %v1120, %v1117
    %v1182 = vpack.c.bf16 %v1124, %v1122
    %v1183 = vpack.c.bf16 %v1129, %v1127
    %v1184 = vpack.c.bf16 %v1134, %v1131
    %v1185 = vpack.c.bf16 %v1138, %v1136
    %v1186 = vpack.c.bf16 %v1143, %v1141
    %v1187 = vpack.c.bf16 %v1148, %v1145
    %v1188 = vpack.c.bf16 %v1152, %v1150
    %s1189 = scalar_lea.vmem %s1, 96
    %v1190 = vld [vmem:[%s1189] sm:$0xff]
    %v1191 = vld [vmem:[%s1189 + $0x8] sm:$0xff]
    %v1192 = vld [vmem:[%s1189 + $0x10] sm:$0xff]
    %v1193 = vld [vmem:[%s1189 + $0x18] sm:$0x33]
    %v1198 = vunpack.c.l.b16 %v1190
    %v1199 = vunpack.c.h.b16 %v1190
    %v1200 = vunpack.c.l.b16 %v1191
    %v1201 = vunpack.c.h.b16 %v1191
    %v1202 = vunpack.c.l.b16 %v1192
    %v1203 = vunpack.c.h.b16 %v1192
    %v1204 = vunpack.c.l.b16 %v1193
    %v1205 = vunpack.c.h.b16 %v1193
    %v1206 = vpack.c.b16 %v1200, %v1198
    %v1207 = vpack.c.b16 %v1201, %v1199
    %v1208 = vpack.c.b16 %v1204, %v1202
    %v1209 = vpack.c.b16 %v1205, %v1203
    %v1213 = vsel %vm328, %v1177, 0
    %v1216 = vsel %vm328, %v1178, 0
    %v1219 = vsel %vm328, %v1179, 0
    %v1222 = vsel %vm328, %v1180, 0
    %v1225 = vsel %vm328, %v1181, 0
    %v1228 = vsel %vm328, %v1182, 0
    %v1231 = vsel %vm328, %v1183, 0
    %v1234 = vsel %vm328, %v1184, 0
    %v1237 = vsel %vm328, %v1185, 0
    %v1240 = vsel %vm328, %v1186, 0
    %v1243 = vsel %vm328, %v1187, 0
    %v1246 = vsel %vm328, %v1188, 0
    %v1249 = vsel %vm365, %v1208, 0
    %v1252 = vsel %vm365, %v1209, 0
    %1254 = vmatprep.subr.bf16.mxu0 0
    %1255 = vmatpush1.bf16.msra.mxu0 0
    %1256 = vmatprep.subr.bf16.mxu0 0
    %1257 = vmatpush1.bf16.msra.mxu0 0
    %1258 = vmatprep.subr.bf16.mxu0 0
    %1259 = vmatpush1.bf16.msra.mxu0 0
    %1260 = vmatprep.subr.bf16.mxu0 0
    %1261 = vmatpush1.bf16.msra.mxu0 0
    %1262 = vmatprep.subr.bf16.mxu0 0
    %1263 = vmatpush1.bf16.msra.mxu0 0
    %1264 = vmatprep.subr.bf16.mxu0 0
    %1265 = vmatpush1.bf16.msra.mxu0 0
    %1266 = vmatprep.subr.bf16.mxu0 %v1252
    %1267 = vmatpush1.bf16.msra.mxu0 %v1249
    %1268 = vmatprep.subr.bf16.mxu0 %v1207
    %1269 = vmatpush1.bf16.msra.mxu0 %v1206
    %1270 = vmatprep.subr.bf16.mxu0 0
    %1271 = vmatpush2.bf16.msra.mxu0 0
    %1272 = vmatprep.subr.bf16.mxu0 0
    %1273 = vmatpush2.bf16.msra.mxu0 0
    %1274 = vmatprep.subr.bf16.mxu0 0
    %1275 = vmatpush2.bf16.msra.mxu0 0
    %1276 = vmatprep.subr.bf16.mxu0 0
    %1277 = vmatpush2.bf16.msra.mxu0 0
    %1278 = vmatprep.subr.bf16.mxu0 0
    %1279 = vmatpush2.bf16.msra.mxu0 0
    %1280 = vmatprep.subr.bf16.mxu0 0
    %1281 = vmatpush2.bf16.msra.mxu0 0
    %1282 = vmatprep.subr.bf16.mxu0 0
    %1283 = vmatpush2.bf16.msra.mxu0 0
    %1284 = vmatprep.subr.bf16.mxu0 0
    %1285 = vmatpush2.bf16.msra.mxu0 0
    %1286 = vmatprep.mubr.bf16.mxu0 0
    %1287 = vmatmul.mubr.bf16.gmra.mxu0 %v1213
    %v1288 = vpop.f32.mrf.mxu0
    %v1289 = vadd.f32 0.0, %v1288
    %v1290 = vpop.f32.mrf.mxu0
    %v1291 = vadd.f32 0.0, %v1290
    %v1292 = vpop.f32.mrf.mxu0
    %v1293 = vadd.f32 0.0, %v1292
    %v1294 = vpop.f32.mrf.mxu0
    %v1295 = vadd.f32 0.0, %v1294
    %1296 = vmatprep.mubr.bf16.mxu0 0
    %1297 = vmatmul.mubr.bf16.gmra.mxu0 %v1216
    %v1298 = vpop.f32.mrf.mxu0
    %v1299 = vadd.f32 0.0, %v1298
    %v1300 = vpop.f32.mrf.mxu0
    %v1301 = vadd.f32 0.0, %v1300
    %v1302 = vpop.f32.mrf.mxu0
    %v1303 = vadd.f32 0.0, %v1302
    %v1304 = vpop.f32.mrf.mxu0
    %v1305 = vadd.f32 0.0, %v1304
    %1306 = vmatprep.mubr.bf16.mxu0 0
    %1307 = vmatmul.mubr.bf16.gmra.mxu0 %v1219
    %v1308 = vpop.f32.mrf.mxu0
    %v1309 = vadd.f32 0.0, %v1308
    %v1310 = vpop.f32.mrf.mxu0
    %v1311 = vadd.f32 0.0, %v1310
    %v1312 = vpop.f32.mrf.mxu0
    %v1313 = vadd.f32 0.0, %v1312
    %v1314 = vpop.f32.mrf.mxu0
    %v1315 = vadd.f32 0.0, %v1314
    %1316 = vmatprep.mubr.bf16.mxu0 0
    %1317 = vmatmul.mubr.bf16.gmra.mxu0 %v1222
    %v1318 = vpop.f32.mrf.mxu0
    %v1319 = vadd.f32 0.0, %v1318
    %v1320 = vpop.f32.mrf.mxu0
    %v1321 = vadd.f32 0.0, %v1320
    %v1322 = vpop.f32.mrf.mxu0
    %v1323 = vadd.f32 0.0, %v1322
    %v1324 = vpop.f32.mrf.mxu0
    %v1325 = vadd.f32 0.0, %v1324
    %1326 = vmatprep.mubr.bf16.mxu0 0
    %1327 = vmatmul.mubr.bf16.gmra.mxu0 %v1225
    %v1328 = vpop.f32.mrf.mxu0
    %v1329 = vadd.f32 0.0, %v1328
    %v1330 = vpop.f32.mrf.mxu0
    %v1331 = vadd.f32 0.0, %v1330
    %v1332 = vpop.f32.mrf.mxu0
    %v1333 = vadd.f32 0.0, %v1332
    %v1334 = vpop.f32.mrf.mxu0
    %v1335 = vadd.f32 0.0, %v1334
    %1336 = vmatprep.mubr.bf16.mxu0 0
    %1337 = vmatmul.mubr.bf16.gmra.mxu0 %v1228
    %v1338 = vpop.f32.mrf.mxu0
    %v1339 = vadd.f32 0.0, %v1338
    %v1340 = vpop.f32.mrf.mxu0
    %v1341 = vadd.f32 0.0, %v1340
    %v1342 = vpop.f32.mrf.mxu0
    %v1343 = vadd.f32 0.0, %v1342
    %v1344 = vpop.f32.mrf.mxu0
    %v1345 = vadd.f32 0.0, %v1344
    %1346 = vmatprep.mubr.bf16.mxu0 0
    %1347 = vmatmul.mubr.bf16.gmra.mxu0 %v1231
    %v1348 = vpop.f32.mrf.mxu0
    %v1349 = vadd.f32 0.0, %v1348
    %v1350 = vpop.f32.mrf.mxu0
    %v1351 = vadd.f32 0.0, %v1350
    %v1352 = vpop.f32.mrf.mxu0
    %v1353 = vadd.f32 0.0, %v1352
    %v1354 = vpop.f32.mrf.mxu0
    %v1355 = vadd.f32 0.0, %v1354
    %1356 = vmatprep.mubr.bf16.mxu0 0
    %1357 = vmatmul.mubr.bf16.gmra.mxu0 %v1234
    %v1358 = vpop.f32.mrf.mxu0
    %v1359 = vadd.f32 0.0, %v1358
    %v1360 = vpop.f32.mrf.mxu0
    %v1361 = vadd.f32 0.0, %v1360
    %v1362 = vpop.f32.mrf.mxu0
    %v1363 = vadd.f32 0.0, %v1362
    %v1364 = vpop.f32.mrf.mxu0
    %v1365 = vadd.f32 0.0, %v1364
    %1366 = vmatprep.mubr.bf16.mxu0 0
    %1367 = vmatmul.mubr.bf16.gmra.mxu0 %v1237
    %v1368 = vpop.f32.mrf.mxu0
    %v1369 = vadd.f32 0.0, %v1368
    %v1370 = vpop.f32.mrf.mxu0
    %v1371 = vadd.f32 0.0, %v1370
    %v1372 = vpop.f32.mrf.mxu0
    %v1373 = vadd.f32 0.0, %v1372
    %v1374 = vpop.f32.mrf.mxu0
    %v1375 = vadd.f32 0.0, %v1374
    %1376 = vmatprep.mubr.bf16.mxu0 0
    %1377 = vmatmul.mubr.bf16.gmra.mxu0 %v1240
    %v1378 = vpop.f32.mrf.mxu0
    %v1379 = vadd.f32 0.0, %v1378
    %v1380 = vpop.f32.mrf.mxu0
    %v1381 = vadd.f32 0.0, %v1380
    %v1382 = vpop.f32.mrf.mxu0
    %v1383 = vadd.f32 0.0, %v1382
    %v1384 = vpop.f32.mrf.mxu0
    %v1385 = vadd.f32 0.0, %v1384
    %1386 = vmatprep.mubr.bf16.mxu0 0
    %1387 = vmatmul.mubr.bf16.gmra.mxu0 %v1243
    %v1388 = vpop.f32.mrf.mxu0
    %v1389 = vadd.f32 0.0, %v1388
    %v1390 = vpop.f32.mrf.mxu0
    %v1391 = vadd.f32 0.0, %v1390
    %v1392 = vpop.f32.mrf.mxu0
    %v1393 = vadd.f32 0.0, %v1392
    %v1394 = vpop.f32.mrf.mxu0
    %v1395 = vadd.f32 0.0, %v1394
    %1396 = vmatprep.mubr.bf16.mxu0 0
    %1397 = vmatmul.mubr.bf16.gmra.mxu0 %v1246
    %v1398 = vpop.f32.mrf.mxu0
    %v1399 = vadd.f32 0.0, %v1398
    %v1400 = vpop.f32.mrf.mxu0
    %v1401 = vadd.f32 0.0, %v1400
    %v1402 = vpop.f32.mrf.mxu0
    %v1403 = vadd.f32 0.0, %v1402
    %v1404 = vpop.f32.mrf.mxu0
    %v1405 = vadd.f32 0.0, %v1404
    %1406 = vdwg.mxu0
    %v1407 = vadd.f32 %v1048, %v1289
    %v1408 = vadd.f32 %v1049, %v1291
    %v1409 = vadd.f32 %v1050, %v1293
    %v1410 = vadd.f32 %v1051, %v1295
    %v1411 = vadd.f32 %v1052, %v1299
    %v1412 = vadd.f32 %v1053, %v1301
    %v1413 = vadd.f32 %v1054, %v1303
    %v1414 = vadd.f32 %v1055, %v1305
    %v1415 = vadd.f32 %v1056, %v1309
    %v1416 = vadd.f32 %v1057, %v1311
    %v1417 = vadd.f32 %v1058, %v1313
    %v1418 = vadd.f32 %v1059, %v1315
    %v1419 = vadd.f32 %v1060, %v1319
    %v1420 = vadd.f32 %v1061, %v1321
    %v1421 = vadd.f32 %v1062, %v1323
    %v1422 = vadd.f32 %v1063, %v1325
    %v1423 = vadd.f32 %v1064, %v1329
    %v1424 = vadd.f32 %v1065, %v1331
    %v1425 = vadd.f32 %v1066, %v1333
    %v1426 = vadd.f32 %v1067, %v1335
    %v1427 = vadd.f32 %v1068, %v1339
    %v1428 = vadd.f32 %v1069, %v1341
    %v1429 = vadd.f32 %v1070, %v1343
    %v1430 = vadd.f32 %v1071, %v1345
    %v1431 = vadd.f32 %v1072, %v1349
    %v1432 = vadd.f32 %v1073, %v1351
    %v1433 = vadd.f32 %v1074, %v1353
    %v1434 = vadd.f32 %v1075, %v1355
    %v1435 = vadd.f32 %v1076, %v1359
    %v1436 = vadd.f32 %v1077, %v1361
    %v1437 = vadd.f32 %v1078, %v1363
    %v1438 = vadd.f32 %v1079, %v1365
    %v1439 = vadd.f32 %v1080, %v1369
    %v1440 = vadd.f32 %v1081, %v1371
    %v1441 = vadd.f32 %v1082, %v1373
    %v1442 = vadd.f32 %v1083, %v1375
    %v1443 = vadd.f32 %v1084, %v1379
    %v1444 = vadd.f32 %v1085, %v1381
    %v1445 = vadd.f32 %v1086, %v1383
    %v1446 = vadd.f32 %v1087, %v1385
    %v1447 = vadd.f32 %v1088, %v1389
    %v1448 = vadd.f32 %v1089, %v1391
    %v1449 = vadd.f32 %v1090, %v1393
    %v1450 = vadd.f32 %v1091, %v1395
    %v1451 = vadd.f32 %v1092, %v1399
    %v1452 = vadd.f32 %v1093, %v1401
    %v1453 = vadd.f32 %v1094, %v1403
    %v1454 = vadd.f32 %v1095, %v1405
    %vm1455 = vcmask 1043456
    %v1456 = vrot.slane %v132, 4
    %v1457 = vrot.slane %v133, 4
    %v1458 = vsel %vm1455, %v1456, %v1457
    %v1459 = vrot.slane %v134, 4
    %v1460 = vsel %vm1455, %v1457, %v1459
    %v1461 = vrot.slane %v135, 4
    %v1462 = vsel %vm1455, %v1459, %v1461
    %v1463 = vrot.slane %v136, 4
    %v1464 = vrot.slane %v137, 4
    %v1465 = vsel %vm1455, %v1463, %v1464
    %v1466 = vrot.slane %v138, 4
    %v1467 = vsel %vm1455, %v1464, %v1466
    %v1468 = vrot.slane %v139, 4
    %v1469 = vsel %vm1455, %v1466, %v1468
    %v1470 = vrot.slane %v140, 4
    %v1471 = vrot.slane %v141, 4
    %v1472 = vsel %vm1455, %v1470, %v1471
    %v1473 = vrot.slane %v142, 4
    %v1474 = vsel %vm1455, %v1471, %v1473
    %v1475 = vrot.slane %v143, 4
    %v1476 = vsel %vm1455, %v1473, %v1475
    %v1477 = vrot.slane %v144, 4
    %v1478 = vrot.slane %v145, 4
    %v1479 = vsel %vm1455, %v1477, %v1478
    %v1480 = vrot.slane %v146, 4
    %v1481 = vsel %vm1455, %v1478, %v1480
    %v1482 = vrot.slane %v147, 4
    %v1483 = vsel %vm1455, %v1480, %v1482
    %v1484 = vrot.slane %v148, 4
    %v1485 = vrot.slane %v149, 4
    %v1486 = vsel %vm1455, %v1484, %v1485
    %v1487 = vrot.slane %v150, 4
    %v1488 = vsel %vm1455, %v1485, %v1487
    %v1489 = vrot.slane %v151, 4
    %v1490 = vsel %vm1455, %v1487, %v1489
    %v1491 = vrot.slane %v152, 4
    %v1492 = vrot.slane %v153, 4
    %v1493 = vsel %vm1455, %v1491, %v1492
    %v1494 = vrot.slane %v154, 4
    %v1495 = vsel %vm1455, %v1492, %v1494
    %v1496 = vrot.slane %v155, 4
    %v1497 = vsel %vm1455, %v1494, %v1496
    %v1498 = vrot.slane %v156, 4
    %v1499 = vrot.slane %v157, 4
    %v1500 = vsel %vm1455, %v1498, %v1499
    %v1501 = vrot.slane %v158, 4
    %v1502 = vsel %vm1455, %v1499, %v1501
    %v1503 = vrot.slane %v159, 4
    %v1504 = vsel %vm1455, %v1501, %v1503
    %v1505 = vrot.slane %v160, 4
    %v1506 = vrot.slane %v161, 4
    %v1507 = vsel %vm1455, %v1505, %v1506
    %v1508 = vrot.slane %v162, 4
    %v1509 = vsel %vm1455, %v1506, %v1508
    %v1510 = vrot.slane %v163, 4
    %v1511 = vsel %vm1455, %v1508, %v1510
    %v1536 = vpack.c.bf16 %v1460, %v1458
    %v1537 = vpack.c.bf16 %v1465, %v1462
    %v1538 = vpack.c.bf16 %v1469, %v1467
    %v1539 = vpack.c.bf16 %v1474, %v1472
    %v1540 = vpack.c.bf16 %v1479, %v1476
    %v1541 = vpack.c.bf16 %v1483, %v1481
    %v1542 = vpack.c.bf16 %v1488, %v1486
    %v1543 = vpack.c.bf16 %v1493, %v1490
    %v1544 = vpack.c.bf16 %v1497, %v1495
    %v1545 = vpack.c.bf16 %v1502, %v1500
    %v1546 = vpack.c.bf16 %v1507, %v1504
    %v1547 = vpack.c.bf16 %v1511, %v1509
    %s1548 = scalar_lea.vmem %s1, 128
    %v1549 = vld [vmem:[%s1548] sm:$0xff]
    %v1550 = vld [vmem:[%s1548 + $0x8] sm:$0xff]
    %v1551 = vld [vmem:[%s1548 + $0x10] sm:$0xff]
    %v1552 = vld [vmem:[%s1548 + $0x18] sm:$0x33]
    %v1557 = vunpack.c.l.b16 %v1549
    %v1558 = vunpack.c.h.b16 %v1549
    %v1559 = vunpack.c.l.b16 %v1550
    %v1560 = vunpack.c.h.b16 %v1550
    %v1561 = vunpack.c.l.b16 %v1551
    %v1562 = vunpack.c.h.b16 %v1551
    %v1563 = vunpack.c.l.b16 %v1552
    %v1564 = vunpack.c.h.b16 %v1552
    %v1565 = vpack.c.b16 %v1559, %v1557
    %v1566 = vpack.c.b16 %v1560, %v1558
    %v1567 = vpack.c.b16 %v1563, %v1561
    %v1568 = vpack.c.b16 %v1564, %v1562
    %v1572 = vsel %vm328, %v1536, 0
    %v1575 = vsel %vm328, %v1537, 0
    %v1578 = vsel %vm328, %v1538, 0
    %v1581 = vsel %vm328, %v1539, 0
    %v1584 = vsel %vm328, %v1540, 0
    %v1587 = vsel %vm328, %v1541, 0
    %v1590 = vsel %vm328, %v1542, 0
    %v1593 = vsel %vm328, %v1543, 0
    %v1596 = vsel %vm328, %v1544, 0
    %v1599 = vsel %vm328, %v1545, 0
    %v1602 = vsel %vm328, %v1546, 0
    %v1605 = vsel %vm328, %v1547, 0
    %v1608 = vsel %vm365, %v1567, 0
    %v1611 = vsel %vm365, %v1568, 0
    %1613 = vmatprep.subr.bf16.mxu0 0
    %1614 = vmatpush1.bf16.msra.mxu0 0
    %1615 = vmatprep.subr.bf16.mxu0 0
    %1616 = vmatpush1.bf16.msra.mxu0 0
    %1617 = vmatprep.subr.bf16.mxu0 0
    %1618 = vmatpush1.bf16.msra.mxu0 0
    %1619 = vmatprep.subr.bf16.mxu0 0
    %1620 = vmatpush1.bf16.msra.mxu0 0
    %1621 = vmatprep.subr.bf16.mxu0 0
    %1622 = vmatpush1.bf16.msra.mxu0 0
    %1623 = vmatprep.subr.bf16.mxu0 0
    %1624 = vmatpush1.bf16.msra.mxu0 0
    %1625 = vmatprep.subr.bf16.mxu0 %v1611
    %1626 = vmatpush1.bf16.msra.mxu0 %v1608
    %1627 = vmatprep.subr.bf16.mxu0 %v1566
    %1628 = vmatpush1.bf16.msra.mxu0 %v1565
    %1629 = vmatprep.subr.bf16.mxu0 0
    %1630 = vmatpush2.bf16.msra.mxu0 0
    %1631 = vmatprep.subr.bf16.mxu0 0
    %1632 = vmatpush2.bf16.msra.mxu0 0
    %1633 = vmatprep.subr.bf16.mxu0 0
    %1634 = vmatpush2.bf16.msra.mxu0 0
    %1635 = vmatprep.subr.bf16.mxu0 0
    %1636 = vmatpush2.bf16.msra.mxu0 0
    %1637 = vmatprep.subr.bf16.mxu0 0
    %1638 = vmatpush2.bf16.msra.mxu0 0
    %1639 = vmatprep.subr.bf16.mxu0 0
    %1640 = vmatpush2.bf16.msra.mxu0 0
    %1641 = vmatprep.subr.bf16.mxu0 0
    %1642 = vmatpush2.bf16.msra.mxu0 0
    %1643 = vmatprep.subr.bf16.mxu0 0
    %1644 = vmatpush2.bf16.msra.mxu0 0
    %1645 = vmatprep.mubr.bf16.mxu0 0
    %1646 = vmatmul.mubr.bf16.gmra.mxu0 %v1572
    %v1647 = vpop.f32.mrf.mxu0
    %v1648 = vadd.f32 0.0, %v1647
    %v1649 = vpop.f32.mrf.mxu0
    %v1650 = vadd.f32 0.0, %v1649
    %v1651 = vpop.f32.mrf.mxu0
    %v1652 = vadd.f32 0.0, %v1651
    %v1653 = vpop.f32.mrf.mxu0
    %v1654 = vadd.f32 0.0, %v1653
    %1655 = vmatprep.mubr.bf16.mxu0 0
    %1656 = vmatmul.mubr.bf16.gmra.mxu0 %v1575
    %v1657 = vpop.f32.mrf.mxu0
    %v1658 = vadd.f32 0.0, %v1657
    %v1659 = vpop.f32.mrf.mxu0
    %v1660 = vadd.f32 0.0, %v1659
    %v1661 = vpop.f32.mrf.mxu0
    %v1662 = vadd.f32 0.0, %v1661
    %v1663 = vpop.f32.mrf.mxu0
    %v1664 = vadd.f32 0.0, %v1663
    %1665 = vmatprep.mubr.bf16.mxu0 0
    %1666 = vmatmul.mubr.bf16.gmra.mxu0 %v1578
    %v1667 = vpop.f32.mrf.mxu0
    %v1668 = vadd.f32 0.0, %v1667
    %v1669 = vpop.f32.mrf.mxu0
    %v1670 = vadd.f32 0.0, %v1669
    %v1671 = vpop.f32.mrf.mxu0
    %v1672 = vadd.f32 0.0, %v1671
    %v1673 = vpop.f32.mrf.mxu0
    %v1674 = vadd.f32 0.0, %v1673
    %1675 = vmatprep.mubr.bf16.mxu0 0
    %1676 = vmatmul.mubr.bf16.gmra.mxu0 %v1581
    %v1677 = vpop.f32.mrf.mxu0
    %v1678 = vadd.f32 0.0, %v1677
    %v1679 = vpop.f32.mrf.mxu0
    %v1680 = vadd.f32 0.0, %v1679
    %v1681 = vpop.f32.mrf.mxu0
    %v1682 = vadd.f32 0.0, %v1681
    %v1683 = vpop.f32.mrf.mxu0
    %v1684 = vadd.f32 0.0, %v1683
    %1685 = vmatprep.mubr.bf16.mxu0 0
    %1686 = vmatmul.mubr.bf16.gmra.mxu0 %v1584
    %v1687 = vpop.f32.mrf.mxu0
    %v1688 = vadd.f32 0.0, %v1687
    %v1689 = vpop.f32.mrf.mxu0
    %v1690 = vadd.f32 0.0, %v1689
    %v1691 = vpop.f32.mrf.mxu0
    %v1692 = vadd.f32 0.0, %v1691
    %v1693 = vpop.f32.mrf.mxu0
    %v1694 = vadd.f32 0.0, %v1693
    %1695 = vmatprep.mubr.bf16.mxu0 0
    %1696 = vmatmul.mubr.bf16.gmra.mxu0 %v1587
    %v1697 = vpop.f32.mrf.mxu0
    %v1698 = vadd.f32 0.0, %v1697
    %v1699 = vpop.f32.mrf.mxu0
    %v1700 = vadd.f32 0.0, %v1699
    %v1701 = vpop.f32.mrf.mxu0
    %v1702 = vadd.f32 0.0, %v1701
    %v1703 = vpop.f32.mrf.mxu0
    %v1704 = vadd.f32 0.0, %v1703
    %1705 = vmatprep.mubr.bf16.mxu0 0
    %1706 = vmatmul.mubr.bf16.gmra.mxu0 %v1590
    %v1707 = vpop.f32.mrf.mxu0
    %v1708 = vadd.f32 0.0, %v1707
    %v1709 = vpop.f32.mrf.mxu0
    %v1710 = vadd.f32 0.0, %v1709
    %v1711 = vpop.f32.mrf.mxu0
    %v1712 = vadd.f32 0.0, %v1711
    %v1713 = vpop.f32.mrf.mxu0
    %v1714 = vadd.f32 0.0, %v1713
    %1715 = vmatprep.mubr.bf16.mxu0 0
    %1716 = vmatmul.mubr.bf16.gmra.mxu0 %v1593
    %v1717 = vpop.f32.mrf.mxu0
    %v1718 = vadd.f32 0.0, %v1717
    %v1719 = vpop.f32.mrf.mxu0
    %v1720 = vadd.f32 0.0, %v1719
    %v1721 = vpop.f32.mrf.mxu0
    %v1722 = vadd.f32 0.0, %v1721
    %v1723 = vpop.f32.mrf.mxu0
    %v1724 = vadd.f32 0.0, %v1723
    %1725 = vmatprep.mubr.bf16.mxu0 0
    %1726 = vmatmul.mubr.bf16.gmra.mxu0 %v1596
    %v1727 = vpop.f32.mrf.mxu0
    %v1728 = vadd.f32 0.0, %v1727
    %v1729 = vpop.f32.mrf.mxu0
    %v1730 = vadd.f32 0.0, %v1729
    %v1731 = vpop.f32.mrf.mxu0
    %v1732 = vadd.f32 0.0, %v1731
    %v1733 = vpop.f32.mrf.mxu0
    %v1734 = vadd.f32 0.0, %v1733
    %1735 = vmatprep.mubr.bf16.mxu0 0
    %1736 = vmatmul.mubr.bf16.gmra.mxu0 %v1599
    %v1737 = vpop.f32.mrf.mxu0
    %v1738 = vadd.f32 0.0, %v1737
    %v1739 = vpop.f32.mrf.mxu0
    %v1740 = vadd.f32 0.0, %v1739
    %v1741 = vpop.f32.mrf.mxu0
    %v1742 = vadd.f32 0.0, %v1741
    %v1743 = vpop.f32.mrf.mxu0
    %v1744 = vadd.f32 0.0, %v1743
    %1745 = vmatprep.mubr.bf16.mxu0 0
    %1746 = vmatmul.mubr.bf16.gmra.mxu0 %v1602
    %v1747 = vpop.f32.mrf.mxu0
    %v1748 = vadd.f32 0.0, %v1747
    %v1749 = vpop.f32.mrf.mxu0
    %v1750 = vadd.f32 0.0, %v1749
    %v1751 = vpop.f32.mrf.mxu0
    %v1752 = vadd.f32 0.0, %v1751
    %v1753 = vpop.f32.mrf.mxu0
    %v1754 = vadd.f32 0.0, %v1753
    %1755 = vmatprep.mubr.bf16.mxu0 0
    %1756 = vmatmul.mubr.bf16.gmra.mxu0 %v1605
    %v1757 = vpop.f32.mrf.mxu0
    %v1758 = vadd.f32 0.0, %v1757
    %v1759 = vpop.f32.mrf.mxu0
    %v1760 = vadd.f32 0.0, %v1759
    %v1761 = vpop.f32.mrf.mxu0
    %v1762 = vadd.f32 0.0, %v1761
    %v1763 = vpop.f32.mrf.mxu0
    %v1764 = vadd.f32 0.0, %v1763
    %1765 = vdwg.mxu0
    %v1766 = vadd.f32 %v1407, %v1648
    %v1767 = vadd.f32 %v1408, %v1650
    %v1768 = vadd.f32 %v1409, %v1652
    %v1769 = vadd.f32 %v1410, %v1654
    %v1770 = vadd.f32 %v1411, %v1658
    %v1771 = vadd.f32 %v1412, %v1660
    %v1772 = vadd.f32 %v1413, %v1662
    %v1773 = vadd.f32 %v1414, %v1664
    %v1774 = vadd.f32 %v1415, %v1668
    %v1775 = vadd.f32 %v1416, %v1670
    %v1776 = vadd.f32 %v1417, %v1672
    %v1777 = vadd.f32 %v1418, %v1674
    %v1778 = vadd.f32 %v1419, %v1678
    %v1779 = vadd.f32 %v1420, %v1680
    %v1780 = vadd.f32 %v1421, %v1682
    %v1781 = vadd.f32 %v1422, %v1684
    %v1782 = vadd.f32 %v1423, %v1688
    %v1783 = vadd.f32 %v1424, %v1690
    %v1784 = vadd.f32 %v1425, %v1692
    %v1785 = vadd.f32 %v1426, %v1694
    %v1786 = vadd.f32 %v1427, %v1698
    %v1787 = vadd.f32 %v1428, %v1700
    %v1788 = vadd.f32 %v1429, %v1702
    %v1789 = vadd.f32 %v1430, %v1704
    %v1790 = vadd.f32 %v1431, %v1708
    %v1791 = vadd.f32 %v1432, %v1710
    %v1792 = vadd.f32 %v1433, %v1712
    %v1793 = vadd.f32 %v1434, %v1714
    %v1794 = vadd.f32 %v1435, %v1718
    %v1795 = vadd.f32 %v1436, %v1720
    %v1796 = vadd.f32 %v1437, %v1722
    %v1797 = vadd.f32 %v1438, %v1724
    %v1798 = vadd.f32 %v1439, %v1728
    %v1799 = vadd.f32 %v1440, %v1730
    %v1800 = vadd.f32 %v1441, %v1732
    %v1801 = vadd.f32 %v1442, %v1734
    %v1802 = vadd.f32 %v1443, %v1738
    %v1803 = vadd.f32 %v1444, %v1740
    %v1804 = vadd.f32 %v1445, %v1742
    %v1805 = vadd.f32 %v1446, %v1744
    %v1806 = vadd.f32 %v1447, %v1748
    %v1807 = vadd.f32 %v1448, %v1750
    %v1808 = vadd.f32 %v1449, %v1752
    %v1809 = vadd.f32 %v1450, %v1754
    %v1810 = vadd.f32 %v1451, %v1758
    %v1811 = vadd.f32 %v1452, %v1760
    %v1812 = vadd.f32 %v1453, %v1762
    %v1813 = vadd.f32 %v1454, %v1764
    %v1814 = vmax.f32 %v1766, %v1767
    %v1815 = vmax.f32 %v1768, %v1769
    %v1816 = vmax.f32 %v1770, %v1771
    %v1817 = vmax.f32 %v1772, %v1773
    %v1818 = vmax.f32 %v1774, %v1775
    %v1819 = vmax.f32 %v1776, %v1777
    %v1820 = vmax.f32 %v1778, %v1779
    %v1821 = vmax.f32 %v1780, %v1781
    %v1822 = vmax.f32 %v1782, %v1783
    %v1823 = vmax.f32 %v1784, %v1785
    %v1824 = vmax.f32 %v1786, %v1787
    %v1825 = vmax.f32 %v1788, %v1789
    %v1826 = vmax.f32 %v1790, %v1791
    %v1827 = vmax.f32 %v1792, %v1793
    %v1828 = vmax.f32 %v1794, %v1795
    %v1829 = vmax.f32 %v1796, %v1797
    %v1830 = vmax.f32 %v1798, %v1799
    %v1831 = vmax.f32 %v1800, %v1801
    %v1832 = vmax.f32 %v1802, %v1803
    %v1833 = vmax.f32 %v1804, %v1805
    %v1834 = vmax.f32 %v1806, %v1807
    %v1835 = vmax.f32 %v1808, %v1809
    %v1836 = vmax.f32 %v1810, %v1811
    %v1837 = vmax.f32 %v1812, %v1813
    %v1838 = vld [vmem:[%s2] sm:$0x1]
    %v1840 = vlaneseq
    %v1841 = vshrl.u32 %v1840, 7
    %v1842 = vsub.s32 0, %v1841
    %v1843 = vrot.slane %v1838, %v1842
    %v1845 = vadd.f32 %v1814, %v1843
    %v1846 = vadd.f32 %v1815, %v1843
    %v1847 = vadd.f32 %v1816, %v1843
    %v1848 = vadd.f32 %v1817, %v1843
    %v1849 = vadd.f32 %v1818, %v1843
    %v1850 = vadd.f32 %v1819, %v1843
    %v1851 = vadd.f32 %v1820, %v1843
    %v1852 = vadd.f32 %v1821, %v1843
    %v1853 = vadd.f32 %v1822, %v1843
    %v1854 = vadd.f32 %v1823, %v1843
    %v1855 = vadd.f32 %v1824, %v1843
    %v1856 = vadd.f32 %v1825, %v1843
    %v1857 = vadd.f32 %v1826, %v1843
    %v1858 = vadd.f32 %v1827, %v1843
    %v1859 = vadd.f32 %v1828, %v1843
    %v1860 = vadd.f32 %v1829, %v1843
    %v1861 = vadd.f32 %v1830, %v1843
    %v1862 = vadd.f32 %v1831, %v1843
    %v1863 = vadd.f32 %v1832, %v1843
    %v1864 = vadd.f32 %v1833, %v1843
    %v1865 = vadd.f32 %v1834, %v1843
    %v1866 = vadd.f32 %v1835, %v1843
    %v1867 = vadd.f32 %v1836, %v1843
    %v1868 = vadd.f32 %v1837, %v1843
    %v1869 = vmax.f32 %v1845, 0.0
    %v1870 = vmax.f32 %v1846, 0.0
    %v1871 = vmax.f32 %v1847, 0.0
    %v1872 = vmax.f32 %v1848, 0.0
    %v1873 = vmax.f32 %v1849, 0.0
    %v1874 = vmax.f32 %v1850, 0.0
    %v1875 = vmax.f32 %v1851, 0.0
    %v1876 = vmax.f32 %v1852, 0.0
    %v1877 = vmax.f32 %v1853, 0.0
    %v1878 = vmax.f32 %v1854, 0.0
    %v1879 = vmax.f32 %v1855, 0.0
    %v1880 = vmax.f32 %v1856, 0.0
    %v1881 = vmax.f32 %v1857, 0.0
    %v1882 = vmax.f32 %v1858, 0.0
    %v1883 = vmax.f32 %v1859, 0.0
    %v1884 = vmax.f32 %v1860, 0.0
    %v1885 = vmax.f32 %v1861, 0.0
    %v1886 = vmax.f32 %v1862, 0.0
    %v1887 = vmax.f32 %v1863, 0.0
    %v1888 = vmax.f32 %v1864, 0.0
    %v1889 = vmax.f32 %v1865, 0.0
    %v1890 = vmax.f32 %v1866, 0.0
    %v1891 = vmax.f32 %v1867, 0.0
    %v1892 = vmax.f32 %v1868, 0.0
    %v1901 = vrot.slane %v1869, 1
    %v1902 = vrot.slane %v1872, 1
    %v1903 = vrot.slane %v1875, 1
    %v1904 = vrot.slane %v1878, 1
    %v1905 = vrot.slane %v1881, 1
    %v1906 = vrot.slane %v1884, 1
    %v1907 = vrot.slane %v1887, 1
    %v1908 = vrot.slane %v1890, 1
    %v1917 = vmax.f32 %v1869, %v1901
    %v1918 = vmax.f32 %v1872, %v1902
    %v1919 = vmax.f32 %v1875, %v1903
    %v1920 = vmax.f32 %v1878, %v1904
    %v1921 = vmax.f32 %v1881, %v1905
    %v1922 = vmax.f32 %v1884, %v1906
    %v1923 = vmax.f32 %v1887, %v1907
    %v1924 = vmax.f32 %v1890, %v1908
    %v1933 = vrot.slane %v1870, 1
    %v1934 = vrot.slane %v1873, 1
    %v1935 = vrot.slane %v1876, 1
    %v1936 = vrot.slane %v1879, 1
    %v1937 = vrot.slane %v1882, 1
    %v1938 = vrot.slane %v1885, 1
    %v1939 = vrot.slane %v1888, 1
    %v1940 = vrot.slane %v1891, 1
    %v1949 = vmax.f32 %v1870, %v1933
    %v1950 = vmax.f32 %v1873, %v1934
    %v1951 = vmax.f32 %v1876, %v1935
    %v1952 = vmax.f32 %v1879, %v1936
    %v1953 = vmax.f32 %v1882, %v1937
    %v1954 = vmax.f32 %v1885, %v1938
    %v1955 = vmax.f32 %v1888, %v1939
    %v1956 = vmax.f32 %v1891, %v1940
    %v1965 = vrot.slane %v1871, 1
    %v1966 = vrot.slane %v1874, 1
    %v1967 = vrot.slane %v1877, 1
    %v1968 = vrot.slane %v1880, 1
    %v1969 = vrot.slane %v1883, 1
    %v1970 = vrot.slane %v1886, 1
    %v1971 = vrot.slane %v1889, 1
    %v1972 = vrot.slane %v1892, 1
    %v1981 = vmax.f32 %v1871, %v1965
    %v1982 = vmax.f32 %v1874, %v1966
    %v1983 = vmax.f32 %v1877, %v1967
    %v1984 = vmax.f32 %v1880, %v1968
    %v1985 = vmax.f32 %v1883, %v1969
    %v1986 = vmax.f32 %v1886, %v1970
    %v1987 = vmax.f32 %v1889, %v1971
    %v1988 = vmax.f32 %v1892, %v1972
    %v1997 = vrot.slane %v1917, 1
    %v1998 = vrot.slane %v1918, 1
    %v1999 = vrot.slane %v1919, 1
    %v2000 = vrot.slane %v1920, 1
    %v2001 = vrot.slane %v1921, 1
    %v2002 = vrot.slane %v1922, 1
    %v2003 = vrot.slane %v1923, 1
    %v2004 = vrot.slane %v1924, 1
    %v2013 = vrot.slane %v1917, 2
    %v2014 = vrot.slane %v1918, 2
    %v2015 = vrot.slane %v1919, 2
    %v2016 = vrot.slane %v1920, 2
    %v2017 = vrot.slane %v1921, 2
    %v2018 = vrot.slane %v1922, 2
    %v2019 = vrot.slane %v1923, 2
    %v2020 = vrot.slane %v1924, 2
    %v2029 = vrot.slane %v1917, 3
    %v2030 = vrot.slane %v1918, 3
    %v2031 = vrot.slane %v1919, 3
    %v2032 = vrot.slane %v1920, 3
    %v2033 = vrot.slane %v1921, 3
    %v2034 = vrot.slane %v1922, 3
    %v2035 = vrot.slane %v1923, 3
    %v2036 = vrot.slane %v1924, 3
    %v2053 = vrot.slane %v1949, 4
    %v2054 = vrot.slane %v1950, 4
    %v2055 = vrot.slane %v1951, 4
    %v2056 = vrot.slane %v1952, 4
    %v2057 = vrot.slane %v1953, 4
    %v2058 = vrot.slane %v1954, 4
    %v2059 = vrot.slane %v1955, 4
    %v2060 = vrot.slane %v1956, 4
    %v2069 = vrot.slane %v1949, 5
    %v2070 = vrot.slane %v1950, 5
    %v2071 = vrot.slane %v1951, 5
    %v2072 = vrot.slane %v1952, 5
    %v2073 = vrot.slane %v1953, 5
    %v2074 = vrot.slane %v1954, 5
    %v2075 = vrot.slane %v1955, 5
    %v2076 = vrot.slane %v1956, 5
    %v2085 = vrot.slane %v1949, 6
    %v2086 = vrot.slane %v1950, 6
    %v2087 = vrot.slane %v1951, 6
    %v2088 = vrot.slane %v1952, 6
    %v2089 = vrot.slane %v1953, 6
    %v2090 = vrot.slane %v1954, 6
    %v2091 = vrot.slane %v1955, 6
    %v2092 = vrot.slane %v1956, 6
    %v2101 = vrot.slane %v1949, 7
    %v2102 = vrot.slane %v1950, 7
    %v2103 = vrot.slane %v1951, 7
    %v2104 = vrot.slane %v1952, 7
    %v2105 = vrot.slane %v1953, 7
    %v2106 = vrot.slane %v1954, 7
    %v2107 = vrot.slane %v1955, 7
    %v2108 = vrot.slane %v1956, 7
    %v2125 = vrot.slane %v1981, 1
    %v2126 = vrot.slane %v1982, 1
    %v2127 = vrot.slane %v1983, 1
    %v2128 = vrot.slane %v1984, 1
    %v2129 = vrot.slane %v1985, 1
    %v2130 = vrot.slane %v1986, 1
    %v2131 = vrot.slane %v1987, 1
    %v2132 = vrot.slane %v1988, 1
    %v2141 = vrot.slane %v1981, 2
    %v2142 = vrot.slane %v1982, 2
    %v2143 = vrot.slane %v1983, 2
    %v2144 = vrot.slane %v1984, 2
    %v2145 = vrot.slane %v1985, 2
    %v2146 = vrot.slane %v1986, 2
    %v2147 = vrot.slane %v1987, 2
    %v2148 = vrot.slane %v1988, 2
    %v2157 = vrot.slane %v1981, 3
    %v2158 = vrot.slane %v1982, 3
    %v2159 = vrot.slane %v1983, 3
    %v2160 = vrot.slane %v1984, 3
    %v2161 = vrot.slane %v1985, 3
    %v2162 = vrot.slane %v1986, 3
    %v2163 = vrot.slane %v1987, 3
    %v2164 = vrot.slane %v1988, 3
    %vm2173 = vcmask 1040384
    %v2174 = vsel %vm2173, %v1917, %v1997
    %v2175 = vsel %vm2173, %v1918, %v1998
    %v2176 = vsel %vm2173, %v1919, %v1999
    %v2177 = vsel %vm2173, %v1920, %v2000
    %v2178 = vsel %vm2173, %v1921, %v2001
    %v2179 = vsel %vm2173, %v1922, %v2002
    %v2180 = vsel %vm2173, %v1923, %v2003
    %v2181 = vsel %vm2173, %v1924, %v2004
    %vm2182 = vcmask 1041408
    %v2183 = vsel %vm2182, %v2174, %v2013
    %v2184 = vsel %vm2182, %v2175, %v2014
    %v2185 = vsel %vm2182, %v2176, %v2015
    %v2186 = vsel %vm2182, %v2177, %v2016
    %v2187 = vsel %vm2182, %v2178, %v2017
    %v2188 = vsel %vm2182, %v2179, %v2018
    %v2189 = vsel %vm2182, %v2180, %v2019
    %v2190 = vsel %vm2182, %v2181, %v2020
    %vm2191 = vcmask 1042432
    %v2192 = vsel %vm2191, %v2183, %v2029
    %v2193 = vsel %vm2191, %v2184, %v2030
    %v2194 = vsel %vm2191, %v2185, %v2031
    %v2195 = vsel %vm2191, %v2186, %v2032
    %v2196 = vsel %vm2191, %v2187, %v2033
    %v2197 = vsel %vm2191, %v2188, %v2034
    %v2198 = vsel %vm2191, %v2189, %v2035
    %v2199 = vsel %vm2191, %v2190, %v2036
    %v2200 = vsel %vm1455, %v2192, %v2053
    %v2201 = vsel %vm1455, %v2193, %v2054
    %v2202 = vsel %vm1455, %v2194, %v2055
    %v2203 = vsel %vm1455, %v2195, %v2056
    %v2204 = vsel %vm1455, %v2196, %v2057
    %v2205 = vsel %vm1455, %v2197, %v2058
    %v2206 = vsel %vm1455, %v2198, %v2059
    %v2207 = vsel %vm1455, %v2199, %v2060
    %v2208 = vsel %vm1096, %v2200, %v2069
    %v2209 = vsel %vm1096, %v2201, %v2070
    %v2210 = vsel %vm1096, %v2202, %v2071
    %v2211 = vsel %vm1096, %v2203, %v2072
    %v2212 = vsel %vm1096, %v2204, %v2073
    %v2213 = vsel %vm1096, %v2205, %v2074
    %v2214 = vsel %vm1096, %v2206, %v2075
    %v2215 = vsel %vm1096, %v2207, %v2076
    %v2216 = vsel %vm365, %v2208, %v2085
    %v2217 = vsel %vm365, %v2209, %v2086
    %v2218 = vsel %vm365, %v2210, %v2087
    %v2219 = vsel %vm365, %v2211, %v2088
    %v2220 = vsel %vm365, %v2212, %v2089
    %v2221 = vsel %vm365, %v2213, %v2090
    %v2222 = vsel %vm365, %v2214, %v2091
    %v2223 = vsel %vm365, %v2215, %v2092
    %v2224 = vsel %vm212, %v2216, %v2101
    %v2225 = vsel %vm212, %v2217, %v2102
    %v2226 = vsel %vm212, %v2218, %v2103
    %v2227 = vsel %vm212, %v2219, %v2104
    %v2228 = vsel %vm212, %v2220, %v2105
    %v2229 = vsel %vm212, %v2221, %v2106
    %v2230 = vsel %vm212, %v2222, %v2107
    %v2231 = vsel %vm212, %v2223, %v2108
    %v2232 = vsel %vm2173, %v1981, %v2125
    %v2233 = vsel %vm2173, %v1982, %v2126
    %v2234 = vsel %vm2173, %v1983, %v2127
    %v2235 = vsel %vm2173, %v1984, %v2128
    %v2236 = vsel %vm2173, %v1985, %v2129
    %v2237 = vsel %vm2173, %v1986, %v2130
    %v2238 = vsel %vm2173, %v1987, %v2131
    %v2239 = vsel %vm2173, %v1988, %v2132
    %v2240 = vsel %vm2182, %v2232, %v2141
    %v2241 = vsel %vm2182, %v2233, %v2142
    %v2242 = vsel %vm2182, %v2234, %v2143
    %v2243 = vsel %vm2182, %v2235, %v2144
    %v2244 = vsel %vm2182, %v2236, %v2145
    %v2245 = vsel %vm2182, %v2237, %v2146
    %v2246 = vsel %vm2182, %v2238, %v2147
    %v2247 = vsel %vm2182, %v2239, %v2148
    %v2248 = vsel %vm2191, %v2240, %v2157
    %v2249 = vsel %vm2191, %v2241, %v2158
    %v2250 = vsel %vm2191, %v2242, %v2159
    %v2251 = vsel %vm2191, %v2243, %v2160
    %v2252 = vsel %vm2191, %v2244, %v2161
    %v2253 = vsel %vm2191, %v2245, %v2162
    %v2254 = vsel %vm2191, %v2246, %v2163
    %v2255 = vsel %vm2191, %v2247, %v2164
    %v2256 = vpack.c.bf16 %v2225, %v2224
    %v2257 = vpack.c.bf16 %v2227, %v2226
    %v2258 = vpack.c.bf16 %v2229, %v2228
    %v2259 = vpack.c.bf16 %v2231, %v2230
    %v2260 = vld [vmem:[#allocation2] sm:$0xff]
    %v2261 = vld [vmem:[#allocation2 + $0x8] sm:$0xff]
    %v2262 = vld [vmem:[#allocation2 + $0x10] sm:$0xff]
    %v2263 = vld [vmem:[#allocation2 + $0x18] sm:$0xff]
    %v2264 = vld [vmem:[#allocation2 + $0x20] sm:$0xff]
    %v2265 = vld [vmem:[#allocation2 + $0x28] sm:$0xff]
    %v2266 = vld [vmem:[#allocation2 + $0x30] sm:$0xff]
    %v2267 = vld [vmem:[#allocation2 + $0x38] sm:$0xff]
    %v2268 = vld [vmem:[#allocation2 + $0x40] sm:$0xff]
    %v2269 = vld [vmem:[#allocation2 + $0x48] sm:$0xff]
    %v2270 = vld [vmem:[#allocation2 + $0x50] sm:$0xff]
    %v2271 = vld [vmem:[#allocation2 + $0x58] sm:$0xff]
    %v2272 = vld [vmem:[#allocation2 + $0x60] sm:$0xff]
    %v2273 = vld [vmem:[#allocation2 + $0x68] sm:$0xff]
    %v2274 = vld [vmem:[#allocation2 + $0x70] sm:$0xff]
    %v2275 = vld [vmem:[#allocation2 + $0x78] sm:$0xff]
    %v2292 = vrot.slane %v2224, 1
    %v2293 = vrot.slane %v2248, 1
    %v2294 = vsel %vm212, %v2292, %v2293
    %v2295 = vrot.slane %v2225, 1
    %v2296 = vrot.slane %v2249, 1
    %v2297 = vsel %vm212, %v2295, %v2296
    %v2298 = vrot.slane %v2226, 1
    %v2299 = vrot.slane %v2250, 1
    %v2300 = vsel %vm212, %v2298, %v2299
    %v2301 = vrot.slane %v2227, 1
    %v2302 = vrot.slane %v2251, 1
    %v2303 = vsel %vm212, %v2301, %v2302
    %v2304 = vrot.slane %v2228, 1
    %v2305 = vrot.slane %v2252, 1
    %v2306 = vsel %vm212, %v2304, %v2305
    %v2307 = vrot.slane %v2229, 1
    %v2308 = vrot.slane %v2253, 1
    %v2309 = vsel %vm212, %v2307, %v2308
    %v2310 = vrot.slane %v2230, 1
    %v2311 = vrot.slane %v2254, 1
    %v2312 = vsel %vm212, %v2310, %v2311
    %v2313 = vrot.slane %v2231, 1
    %v2314 = vrot.slane %v2255, 1
    %v2315 = vsel %vm212, %v2313, %v2314
    %v2324 = vpack.c.bf16 %v2297, %v2294
    %v2325 = vpack.c.bf16 %v2303, %v2300
    %v2326 = vpack.c.bf16 %v2309, %v2306
    %v2327 = vpack.c.bf16 %v2315, %v2312
    %s2328 = scalar_lea.vmem [#allocation2], 128
    %v2329 = vld [vmem:[%s2328] sm:$0xff]
    %v2330 = vld [vmem:[%s2328 + $0x8] sm:$0xff]
    %v2331 = vld [vmem:[%s2328 + $0x10] sm:$0xff]
    %v2332 = vld [vmem:[%s2328 + $0x18] sm:$0xff]
    %v2333 = vld [vmem:[%s2328 + $0x20] sm:$0xff]
    %v2334 = vld [vmem:[%s2328 + $0x28] sm:$0xff]
    %v2335 = vld [vmem:[%s2328 + $0x30] sm:$0xff]
    %v2336 = vld [vmem:[%s2328 + $0x38] sm:$0xff]
    %v2337 = vld [vmem:[%s2328 + $0x40] sm:$0xff]
    %v2338 = vld [vmem:[%s2328 + $0x48] sm:$0xff]
    %v2339 = vld [vmem:[%s2328 + $0x50] sm:$0xff]
    %v2340 = vld [vmem:[%s2328 + $0x58] sm:$0xff]
    %v2341 = vld [vmem:[%s2328 + $0x60] sm:$0xff]
    %v2342 = vld [vmem:[%s2328 + $0x68] sm:$0xff]
    %v2343 = vld [vmem:[%s2328 + $0x70] sm:$0xff]
    %v2344 = vld [vmem:[%s2328 + $0x78] sm:$0xff]
    %v2361 = vunpack.c.l.b16 %v2329
    %v2362 = vunpack.c.h.b16 %v2329
    %v2363 = vunpack.c.l.b16 %v2330
    %v2364 = vunpack.c.h.b16 %v2330
    %v2365 = vunpack.c.l.b16 %v2331
    %v2366 = vunpack.c.h.b16 %v2331
    %v2367 = vunpack.c.l.b16 %v2332
    %v2368 = vunpack.c.h.b16 %v2332
    %v2369 = vunpack.c.l.b16 %v2333
    %v2370 = vunpack.c.h.b16 %v2333
    %v2371 = vunpack.c.l.b16 %v2334
    %v2372 = vunpack.c.h.b16 %v2334
    %v2373 = vunpack.c.l.b16 %v2335
    %v2374 = vunpack.c.h.b16 %v2335
    %v2375 = vunpack.c.l.b16 %v2336
    %v2376 = vunpack.c.h.b16 %v2336
    %v2377 = vunpack.c.l.b16 %v2337
    %v2378 = vunpack.c.h.b16 %v2337
    %v2379 = vunpack.c.l.b16 %v2338
    %v2380 = vunpack.c.h.b16 %v2338
    %v2381 = vunpack.c.l.b16 %v2339
    %v2382 = vunpack.c.h.b16 %v2339
    %v2383 = vunpack.c.l.b16 %v2340
    %v2384 = vunpack.c.h.b16 %v2340
    %v2385 = vunpack.c.l.b16 %v2341
    %v2386 = vunpack.c.h.b16 %v2341
    %v2387 = vunpack.c.l.b16 %v2342
    %v2388 = vunpack.c.h.b16 %v2342
    %v2389 = vunpack.c.l.b16 %v2343
    %v2390 = vunpack.c.h.b16 %v2343
    %v2391 = vunpack.c.l.b16 %v2344
    %v2392 = vunpack.c.h.b16 %v2344
    %v2393 = vpack.c.b16 %v2363, %v2361
    %v2394 = vpack.c.b16 %v2364, %v2362
    %v2395 = vpack.c.b16 %v2367, %v2365
    %v2396 = vpack.c.b16 %v2368, %v2366
    %v2397 = vpack.c.b16 %v2371, %v2369
    %v2398 = vpack.c.b16 %v2372, %v2370
    %v2399 = vpack.c.b16 %v2375, %v2373
    %v2400 = vpack.c.b16 %v2376, %v2374
    %v2401 = vpack.c.b16 %v2379, %v2377
    %v2402 = vpack.c.b16 %v2380, %v2378
    %v2403 = vpack.c.b16 %v2383, %v2381
    %v2404 = vpack.c.b16 %v2384, %v2382
    %v2405 = vpack.c.b16 %v2387, %v2385
    %v2406 = vpack.c.b16 %v2388, %v2386
    %v2407 = vpack.c.b16 %v2391, %v2389
    %v2408 = vpack.c.b16 %v2392, %v2390
    %2425 = vmatprep.subr.bf16.mxu0 %v2408
    %2426 = vmatpush1.bf16.msra.mxu0 %v2407
    %2427 = vmatprep.subr.bf16.mxu0 %v2406
    %2428 = vmatpush1.bf16.msra.mxu0 %v2405
    %2429 = vmatprep.subr.bf16.mxu0 %v2404
    %2430 = vmatpush1.bf16.msra.mxu0 %v2403
    %2431 = vmatprep.subr.bf16.mxu0 %v2402
    %2432 = vmatpush1.bf16.msra.mxu0 %v2401
    %2433 = vmatprep.subr.bf16.mxu0 %v2400
    %2434 = vmatpush1.bf16.msra.mxu0 %v2399
    %2435 = vmatprep.subr.bf16.mxu0 %v2398
    %2436 = vmatpush1.bf16.msra.mxu0 %v2397
    %2437 = vmatprep.subr.bf16.mxu0 %v2396
    %2438 = vmatpush1.bf16.msra.mxu0 %v2395
    %2439 = vmatprep.subr.bf16.mxu0 %v2394
    %2440 = vmatpush1.bf16.msra.mxu0 %v2393
    %2441 = vmatprep.subr.bf16.mxu0 0
    %2442 = vmatpush2.bf16.msra.mxu0 0
    %2443 = vmatprep.subr.bf16.mxu0 0
    %2444 = vmatpush2.bf16.msra.mxu0 0
    %2445 = vmatprep.subr.bf16.mxu0 0
    %2446 = vmatpush2.bf16.msra.mxu0 0
    %2447 = vmatprep.subr.bf16.mxu0 0
    %2448 = vmatpush2.bf16.msra.mxu0 0
    %2449 = vmatprep.subr.bf16.mxu0 0
    %2450 = vmatpush2.bf16.msra.mxu0 0
    %2451 = vmatprep.subr.bf16.mxu0 0
    %2452 = vmatpush2.bf16.msra.mxu0 0
    %2453 = vmatprep.subr.bf16.mxu0 0
    %2454 = vmatpush2.bf16.msra.mxu0 0
    %2455 = vmatprep.subr.bf16.mxu0 0
    %2456 = vmatpush2.bf16.msra.mxu0 0
    %2457 = vmatprep.mubr.bf16.mxu0 0
    %2458 = vmatmul.mubr.bf16.gmra.mxu0 %v2324
    %v2459 = vpop.f32.mrf.mxu0
    %v2460 = vadd.f32 0.0, %v2459
    %v2461 = vpop.f32.mrf.mxu0
    %v2462 = vadd.f32 0.0, %v2461
    %v2463 = vpop.f32.mrf.mxu0
    %v2464 = vadd.f32 0.0, %v2463
    %v2465 = vpop.f32.mrf.mxu0
    %v2466 = vadd.f32 0.0, %v2465
    %2467 = vmatprep.mubr.bf16.mxu0 0
    %2468 = vmatmul.mubr.bf16.gmra.mxu0 %v2325
    %v2469 = vpop.f32.mrf.mxu0
    %v2470 = vadd.f32 0.0, %v2469
    %v2471 = vpop.f32.mrf.mxu0
    %v2472 = vadd.f32 0.0, %v2471
    %v2473 = vpop.f32.mrf.mxu0
    %v2474 = vadd.f32 0.0, %v2473
    %v2475 = vpop.f32.mrf.mxu0
    %v2476 = vadd.f32 0.0, %v2475
    %2477 = vmatprep.mubr.bf16.mxu0 0
    %2478 = vmatmul.mubr.bf16.gmra.mxu0 %v2326
    %v2479 = vpop.f32.mrf.mxu0
    %v2480 = vadd.f32 0.0, %v2479
    %v2481 = vpop.f32.mrf.mxu0
    %v2482 = vadd.f32 0.0, %v2481
    %v2483 = vpop.f32.mrf.mxu0
    %v2484 = vadd.f32 0.0, %v2483
    %v2485 = vpop.f32.mrf.mxu0
    %v2486 = vadd.f32 0.0, %v2485
    %2487 = vmatprep.mubr.bf16.mxu0 0
    %2488 = vmatmul.mubr.bf16.gmra.mxu0 %v2327
    %v2489 = vpop.f32.mrf.mxu0
    %v2490 = vadd.f32 0.0, %v2489
    %v2491 = vpop.f32.mrf.mxu0
    %v2492 = vadd.f32 0.0, %v2491
    %v2493 = vpop.f32.mrf.mxu0
    %v2494 = vadd.f32 0.0, %v2493
    %v2495 = vpop.f32.mrf.mxu0
    %v2496 = vadd.f32 0.0, %v2495
    %2497 = vdwg.mxu0
    %v2514 = vunpack.c.l.b16 %v2260
    %v2515 = vunpack.c.h.b16 %v2260
    %v2516 = vunpack.c.l.b16 %v2261
    %v2517 = vunpack.c.h.b16 %v2261
    %v2518 = vunpack.c.l.b16 %v2262
    %v2519 = vunpack.c.h.b16 %v2262
    %v2520 = vunpack.c.l.b16 %v2263
    %v2521 = vunpack.c.h.b16 %v2263
    %v2522 = vunpack.c.l.b16 %v2264
    %v2523 = vunpack.c.h.b16 %v2264
    %v2524 = vunpack.c.l.b16 %v2265
    %v2525 = vunpack.c.h.b16 %v2265
    %v2526 = vunpack.c.l.b16 %v2266
    %v2527 = vunpack.c.h.b16 %v2266
    %v2528 = vunpack.c.l.b16 %v2267
    %v2529 = vunpack.c.h.b16 %v2267
    %v2530 = vunpack.c.l.b16 %v2268
    %v2531 = vunpack.c.h.b16 %v2268
    %v2532 = vunpack.c.l.b16 %v2269
    %v2533 = vunpack.c.h.b16 %v2269
    %v2534 = vunpack.c.l.b16 %v2270
    %v2535 = vunpack.c.h.b16 %v2270
    %v2536 = vunpack.c.l.b16 %v2271
    %v2537 = vunpack.c.h.b16 %v2271
    %v2538 = vunpack.c.l.b16 %v2272
    %v2539 = vunpack.c.h.b16 %v2272
    %v2540 = vunpack.c.l.b16 %v2273
    %v2541 = vunpack.c.h.b16 %v2273
    %v2542 = vunpack.c.l.b16 %v2274
    %v2543 = vunpack.c.h.b16 %v2274
    %v2544 = vunpack.c.l.b16 %v2275
    %v2545 = vunpack.c.h.b16 %v2275
    %v2546 = vpack.c.b16 %v2516, %v2514
    %v2547 = vpack.c.b16 %v2517, %v2515
    %v2548 = vpack.c.b16 %v2520, %v2518
    %v2549 = vpack.c.b16 %v2521, %v2519
    %v2550 = vpack.c.b16 %v2524, %v2522
    %v2551 = vpack.c.b16 %v2525, %v2523
    %v2552 = vpack.c.b16 %v2528, %v2526
    %v2553 = vpack.c.b16 %v2529, %v2527
    %v2554 = vpack.c.b16 %v2532, %v2530
    %v2555 = vpack.c.b16 %v2533, %v2531
    %v2556 = vpack.c.b16 %v2536, %v2534
    %v2557 = vpack.c.b16 %v2537, %v2535
    %v2558 = vpack.c.b16 %v2540, %v2538
    %v2559 = vpack.c.b16 %v2541, %v2539
    %v2560 = vpack.c.b16 %v2544, %v2542
    %v2561 = vpack.c.b16 %v2545, %v2543
    %2578 = vmatprep.subr.bf16.mxu0 %v2561
    %2579 = vmatpush1.bf16.msra.mxu0 %v2560
    %2580 = vmatprep.subr.bf16.mxu0 %v2559
    %2581 = vmatpush1.bf16.msra.mxu0 %v2558
    %2582 = vmatprep.subr.bf16.mxu0 %v2557
    %2583 = vmatpush1.bf16.msra.mxu0 %v2556
    %2584 = vmatprep.subr.bf16.mxu0 %v2555
    %2585 = vmatpush1.bf16.msra.mxu0 %v2554
    %2586 = vmatprep.subr.bf16.mxu0 %v2553
    %2587 = vmatpush1.bf16.msra.mxu0 %v2552
    %2588 = vmatprep.subr.bf16.mxu0 %v2551
    %2589 = vmatpush1.bf16.msra.mxu0 %v2550
    %2590 = vmatprep.subr.bf16.mxu0 %v2549
    %2591 = vmatpush1.bf16.msra.mxu0 %v2548
    %2592 = vmatprep.subr.bf16.mxu0 %v2547
    %2593 = vmatpush1.bf16.msra.mxu0 %v2546
    %2594 = vmatprep.subr.bf16.mxu0 0
    %2595 = vmatpush2.bf16.msra.mxu0 0
    %2596 = vmatprep.subr.bf16.mxu0 0
    %2597 = vmatpush2.bf16.msra.mxu0 0
    %2598 = vmatprep.subr.bf16.mxu0 0
    %2599 = vmatpush2.bf16.msra.mxu0 0
    %2600 = vmatprep.subr.bf16.mxu0 0
    %2601 = vmatpush2.bf16.msra.mxu0 0
    %2602 = vmatprep.subr.bf16.mxu0 0
    %2603 = vmatpush2.bf16.msra.mxu0 0
    %2604 = vmatprep.subr.bf16.mxu0 0
    %2605 = vmatpush2.bf16.msra.mxu0 0
    %2606 = vmatprep.subr.bf16.mxu0 0
    %2607 = vmatpush2.bf16.msra.mxu0 0
    %2608 = vmatprep.subr.bf16.mxu0 0
    %2609 = vmatpush2.bf16.msra.mxu0 0
    %2610 = vmatprep.mubr.bf16.mxu0 0
    %2611 = vmatmul.mubr.bf16.gmra.mxu0 %v2256
    %v2612 = vpop.f32.mrf.mxu0
    %v2613 = vadd.f32 %v2460, %v2612
    %v2614 = vpop.f32.mrf.mxu0
    %v2615 = vadd.f32 %v2462, %v2614
    %v2616 = vpop.f32.mrf.mxu0
    %v2617 = vadd.f32 %v2464, %v2616
    %v2618 = vpop.f32.mrf.mxu0
    %v2619 = vadd.f32 %v2466, %v2618
    %2620 = vmatprep.mubr.bf16.mxu0 0
    %2621 = vmatmul.mubr.bf16.gmra.mxu0 %v2257
    %v2622 = vpop.f32.mrf.mxu0
    %v2623 = vadd.f32 %v2470, %v2622
    %v2624 = vpop.f32.mrf.mxu0
    %v2625 = vadd.f32 %v2472, %v2624
    %v2626 = vpop.f32.mrf.mxu0
    %v2627 = vadd.f32 %v2474, %v2626
    %v2628 = vpop.f32.mrf.mxu0
    %v2629 = vadd.f32 %v2476, %v2628
    %2630 = vmatprep.mubr.bf16.mxu0 0
    %2631 = vmatmul.mubr.bf16.gmra.mxu0 %v2258
    %v2632 = vpop.f32.mrf.mxu0
    %v2633 = vadd.f32 %v2480, %v2632
    %v2634 = vpop.f32.mrf.mxu0
    %v2635 = vadd.f32 %v2482, %v2634
    %v2636 = vpop.f32.mrf.mxu0
    %v2637 = vadd.f32 %v2484, %v2636
    %v2638 = vpop.f32.mrf.mxu0
    %v2639 = vadd.f32 %v2486, %v2638
    %2640 = vmatprep.mubr.bf16.mxu0 0
    %2641 = vmatmul.mubr.bf16.gmra.mxu0 %v2259
    %v2642 = vpop.f32.mrf.mxu0
    %v2643 = vadd.f32 %v2490, %v2642
    %v2644 = vpop.f32.mrf.mxu0
    %v2645 = vadd.f32 %v2492, %v2644
    %v2646 = vpop.f32.mrf.mxu0
    %v2647 = vadd.f32 %v2494, %v2646
    %v2648 = vpop.f32.mrf.mxu0
    %v2649 = vadd.f32 %v2496, %v2648
    %2650 = vdwg.mxu0
    %v2651 = vrot.slane %v2224, 2
    %v2652 = vrot.slane %v2248, 2
    %v2653 = vsel %vm365, %v2651, %v2652
    %v2654 = vrot.slane %v2225, 2
    %v2655 = vrot.slane %v2249, 2
    %v2656 = vsel %vm365, %v2654, %v2655
    %v2657 = vrot.slane %v2226, 2
    %v2658 = vrot.slane %v2250, 2
    %v2659 = vsel %vm365, %v2657, %v2658
    %v2660 = vrot.slane %v2227, 2
    %v2661 = vrot.slane %v2251, 2
    %v2662 = vsel %vm365, %v2660, %v2661
    %v2663 = vrot.slane %v2228, 2
    %v2664 = vrot.slane %v2252, 2
    %v2665 = vsel %vm365, %v2663, %v2664
    %v2666 = vrot.slane %v2229, 2
    %v2667 = vrot.slane %v2253, 2
    %v2668 = vsel %vm365, %v2666, %v2667
    %v2669 = vrot.slane %v2230, 2
    %v2670 = vrot.slane %v2254, 2
    %v2671 = vsel %vm365, %v2669, %v2670
    %v2672 = vrot.slane %v2231, 2
    %v2673 = vrot.slane %v2255, 2
    %v2674 = vsel %vm365, %v2672, %v2673
    %v2683 = vpack.c.bf16 %v2656, %v2653
    %v2684 = vpack.c.bf16 %v2662, %v2659
    %v2685 = vpack.c.bf16 %v2668, %v2665
    %v2686 = vpack.c.bf16 %v2674, %v2671
    %s2687 = scalar_lea.vmem [#allocation2], 256
    %v2688 = vld [vmem:[%s2687] sm:$0xff]
    %v2689 = vld [vmem:[%s2687 + $0x8] sm:$0xff]
    %v2690 = vld [vmem:[%s2687 + $0x10] sm:$0xff]
    %v2691 = vld [vmem:[%s2687 + $0x18] sm:$0xff]
    %v2692 = vld [vmem:[%s2687 + $0x20] sm:$0xff]
    %v2693 = vld [vmem:[%s2687 + $0x28] sm:$0xff]
    %v2694 = vld [vmem:[%s2687 + $0x30] sm:$0xff]
    %v2695 = vld [vmem:[%s2687 + $0x38] sm:$0xff]
    %v2696 = vld [vmem:[%s2687 + $0x40] sm:$0xff]
    %v2697 = vld [vmem:[%s2687 + $0x48] sm:$0xff]
    %v2698 = vld [vmem:[%s2687 + $0x50] sm:$0xff]
    %v2699 = vld [vmem:[%s2687 + $0x58] sm:$0xff]
    %v2700 = vld [vmem:[%s2687 + $0x60] sm:$0xff]
    %v2701 = vld [vmem:[%s2687 + $0x68] sm:$0xff]
    %v2702 = vld [vmem:[%s2687 + $0x70] sm:$0xff]
    %v2703 = vld [vmem:[%s2687 + $0x78] sm:$0xff]
    %v2720 = vunpack.c.l.b16 %v2688
    %v2721 = vunpack.c.h.b16 %v2688
    %v2722 = vunpack.c.l.b16 %v2689
    %v2723 = vunpack.c.h.b16 %v2689
    %v2724 = vunpack.c.l.b16 %v2690
    %v2725 = vunpack.c.h.b16 %v2690
    %v2726 = vunpack.c.l.b16 %v2691
    %v2727 = vunpack.c.h.b16 %v2691
    %v2728 = vunpack.c.l.b16 %v2692
    %v2729 = vunpack.c.h.b16 %v2692
    %v2730 = vunpack.c.l.b16 %v2693
    %v2731 = vunpack.c.h.b16 %v2693
    %v2732 = vunpack.c.l.b16 %v2694
    %v2733 = vunpack.c.h.b16 %v2694
    %v2734 = vunpack.c.l.b16 %v2695
    %v2735 = vunpack.c.h.b16 %v2695
    %v2736 = vunpack.c.l.b16 %v2696
    %v2737 = vunpack.c.h.b16 %v2696
    %v2738 = vunpack.c.l.b16 %v2697
    %v2739 = vunpack.c.h.b16 %v2697
    %v2740 = vunpack.c.l.b16 %v2698
    %v2741 = vunpack.c.h.b16 %v2698
    %v2742 = vunpack.c.l.b16 %v2699
    %v2743 = vunpack.c.h.b16 %v2699
    %v2744 = vunpack.c.l.b16 %v2700
    %v2745 = vunpack.c.h.b16 %v2700
    %v2746 = vunpack.c.l.b16 %v2701
    %v2747 = vunpack.c.h.b16 %v2701
    %v2748 = vunpack.c.l.b16 %v2702
    %v2749 = vunpack.c.h.b16 %v2702
    %v2750 = vunpack.c.l.b16 %v2703
    %v2751 = vunpack.c.h.b16 %v2703
    %v2752 = vpack.c.b16 %v2722, %v2720
    %v2753 = vpack.c.b16 %v2723, %v2721
    %v2754 = vpack.c.b16 %v2726, %v2724
    %v2755 = vpack.c.b16 %v2727, %v2725
    %v2756 = vpack.c.b16 %v2730, %v2728
    %v2757 = vpack.c.b16 %v2731, %v2729
    %v2758 = vpack.c.b16 %v2734, %v2732
    %v2759 = vpack.c.b16 %v2735, %v2733
    %v2760 = vpack.c.b16 %v2738, %v2736
    %v2761 = vpack.c.b16 %v2739, %v2737
    %v2762 = vpack.c.b16 %v2742, %v2740
    %v2763 = vpack.c.b16 %v2743, %v2741
    %v2764 = vpack.c.b16 %v2746, %v2744
    %v2765 = vpack.c.b16 %v2747, %v2745
    %v2766 = vpack.c.b16 %v2750, %v2748
    %v2767 = vpack.c.b16 %v2751, %v2749
    %2784 = vmatprep.subr.bf16.mxu0 %v2767
    %2785 = vmatpush1.bf16.msra.mxu0 %v2766
    %2786 = vmatprep.subr.bf16.mxu0 %v2765
    %2787 = vmatpush1.bf16.msra.mxu0 %v2764
    %2788 = vmatprep.subr.bf16.mxu0 %v2763
    %2789 = vmatpush1.bf16.msra.mxu0 %v2762
    %2790 = vmatprep.subr.bf16.mxu0 %v2761
    %2791 = vmatpush1.bf16.msra.mxu0 %v2760
    %2792 = vmatprep.subr.bf16.mxu0 %v2759
    %2793 = vmatpush1.bf16.msra.mxu0 %v2758
    %2794 = vmatprep.subr.bf16.mxu0 %v2757
    %2795 = vmatpush1.bf16.msra.mxu0 %v2756
    %2796 = vmatprep.subr.bf16.mxu0 %v2755
    %2797 = vmatpush1.bf16.msra.mxu0 %v2754
    %2798 = vmatprep.subr.bf16.mxu0 %v2753
    %2799 = vmatpush1.bf16.msra.mxu0 %v2752
    %2800 = vmatprep.subr.bf16.mxu0 0
    %2801 = vmatpush2.bf16.msra.mxu0 0
    %2802 = vmatprep.subr.bf16.mxu0 0
    %2803 = vmatpush2.bf16.msra.mxu0 0
    %2804 = vmatprep.subr.bf16.mxu0 0
    %2805 = vmatpush2.bf16.msra.mxu0 0
    %2806 = vmatprep.subr.bf16.mxu0 0
    %2807 = vmatpush2.bf16.msra.mxu0 0
    %2808 = vmatprep.subr.bf16.mxu0 0
    %2809 = vmatpush2.bf16.msra.mxu0 0
    %2810 = vmatprep.subr.bf16.mxu0 0
    %2811 = vmatpush2.bf16.msra.mxu0 0
    %2812 = vmatprep.subr.bf16.mxu0 0
    %2813 = vmatpush2.bf16.msra.mxu0 0
    %2814 = vmatprep.subr.bf16.mxu0 0
    %2815 = vmatpush2.bf16.msra.mxu0 0
    %2816 = vmatprep.mubr.bf16.mxu0 0
    %2817 = vmatmul.mubr.bf16.gmra.mxu0 %v2683
    %v2818 = vpop.f32.mrf.mxu0
    %v2819 = vadd.f32 0.0, %v2818
    %v2820 = vpop.f32.mrf.mxu0
    %v2821 = vadd.f32 0.0, %v2820
    %v2822 = vpop.f32.mrf.mxu0
    %v2823 = vadd.f32 0.0, %v2822
    %v2824 = vpop.f32.mrf.mxu0
    %v2825 = vadd.f32 0.0, %v2824
    %2826 = vmatprep.mubr.bf16.mxu0 0
    %2827 = vmatmul.mubr.bf16.gmra.mxu0 %v2684
    %v2828 = vpop.f32.mrf.mxu0
    %v2829 = vadd.f32 0.0, %v2828
    %v2830 = vpop.f32.mrf.mxu0
    %v2831 = vadd.f32 0.0, %v2830
    %v2832 = vpop.f32.mrf.mxu0
    %v2833 = vadd.f32 0.0, %v2832
    %v2834 = vpop.f32.mrf.mxu0
    %v2835 = vadd.f32 0.0, %v2834
    %2836 = vmatprep.mubr.bf16.mxu0 0
    %2837 = vmatmul.mubr.bf16.gmra.mxu0 %v2685
    %v2838 = vpop.f32.mrf.mxu0
    %v2839 = vadd.f32 0.0, %v2838
    %v2840 = vpop.f32.mrf.mxu0
    %v2841 = vadd.f32 0.0, %v2840
    %v2842 = vpop.f32.mrf.mxu0
    %v2843 = vadd.f32 0.0, %v2842
    %v2844 = vpop.f32.mrf.mxu0
    %v2845 = vadd.f32 0.0, %v2844
    %2846 = vmatprep.mubr.bf16.mxu0 0
    %2847 = vmatmul.mubr.bf16.gmra.mxu0 %v2686
    %v2848 = vpop.f32.mrf.mxu0
    %v2849 = vadd.f32 0.0, %v2848
    %v2850 = vpop.f32.mrf.mxu0
    %v2851 = vadd.f32 0.0, %v2850
    %v2852 = vpop.f32.mrf.mxu0
    %v2853 = vadd.f32 0.0, %v2852
    %v2854 = vpop.f32.mrf.mxu0
    %v2855 = vadd.f32 0.0, %v2854
    %2856 = vdwg.mxu0
    %v2857 = vadd.f32 %v2613, %v2819
    %v2858 = vadd.f32 %v2615, %v2821
    %v2859 = vadd.f32 %v2617, %v2823
    %v2860 = vadd.f32 %v2619, %v2825
    %v2861 = vadd.f32 %v2623, %v2829
    %v2862 = vadd.f32 %v2625, %v2831
    %v2863 = vadd.f32 %v2627, %v2833
    %v2864 = vadd.f32 %v2629, %v2835
    %v2865 = vadd.f32 %v2633, %v2839
    %v2866 = vadd.f32 %v2635, %v2841
    %v2867 = vadd.f32 %v2637, %v2843
    %v2868 = vadd.f32 %v2639, %v2845
    %v2869 = vadd.f32 %v2643, %v2849
    %v2870 = vadd.f32 %v2645, %v2851
    %v2871 = vadd.f32 %v2647, %v2853
    %v2872 = vadd.f32 %v2649, %v2855
    %v2873 = vrot.slane %v2224, 3
    %v2874 = vrot.slane %v2248, 3
    %v2875 = vsel %vm1096, %v2873, %v2874
    %v2876 = vrot.slane %v2225, 3
    %v2877 = vrot.slane %v2249, 3
    %v2878 = vsel %vm1096, %v2876, %v2877
    %v2879 = vrot.slane %v2226, 3
    %v2880 = vrot.slane %v2250, 3
    %v2881 = vsel %vm1096, %v2879, %v2880
    %v2882 = vrot.slane %v2227, 3
    %v2883 = vrot.slane %v2251, 3
    %v2884 = vsel %vm1096, %v2882, %v2883
    %v2885 = vrot.slane %v2228, 3
    %v2886 = vrot.slane %v2252, 3
    %v2887 = vsel %vm1096, %v2885, %v2886
    %v2888 = vrot.slane %v2229, 3
    %v2889 = vrot.slane %v2253, 3
    %v2890 = vsel %vm1096, %v2888, %v2889
    %v2891 = vrot.slane %v2230, 3
    %v2892 = vrot.slane %v2254, 3
    %v2893 = vsel %vm1096, %v2891, %v2892
    %v2894 = vrot.slane %v2231, 3
    %v2895 = vrot.slane %v2255, 3
    %v2896 = vsel %vm1096, %v2894, %v2895
    %v2905 = vpack.c.bf16 %v2878, %v2875
    %v2906 = vpack.c.bf16 %v2884, %v2881
    %v2907 = vpack.c.bf16 %v2890, %v2887
    %v2908 = vpack.c.bf16 %v2896, %v2893
    %s2909 = scalar_lea.vmem [#allocation2], 384
    %v2910 = vld [vmem:[%s2909] sm:$0xff]
    %v2911 = vld [vmem:[%s2909 + $0x8] sm:$0xff]
    %v2912 = vld [vmem:[%s2909 + $0x10] sm:$0xff]
    %v2913 = vld [vmem:[%s2909 + $0x18] sm:$0xff]
    %v2914 = vld [vmem:[%s2909 + $0x20] sm:$0xff]
    %v2915 = vld [vmem:[%s2909 + $0x28] sm:$0xff]
    %v2916 = vld [vmem:[%s2909 + $0x30] sm:$0xff]
    %v2917 = vld [vmem:[%s2909 + $0x38] sm:$0xff]
    %v2918 = vld [vmem:[%s2909 + $0x40] sm:$0xff]
    %v2919 = vld [vmem:[%s2909 + $0x48] sm:$0xff]
    %v2920 = vld [vmem:[%s2909 + $0x50] sm:$0xff]
    %v2921 = vld [vmem:[%s2909 + $0x58] sm:$0xff]
    %v2922 = vld [vmem:[%s2909 + $0x60] sm:$0xff]
    %v2923 = vld [vmem:[%s2909 + $0x68] sm:$0xff]
    %v2924 = vld [vmem:[%s2909 + $0x70] sm:$0xff]
    %v2925 = vld [vmem:[%s2909 + $0x78] sm:$0xff]
    %v2942 = vunpack.c.l.b16 %v2910
    %v2943 = vunpack.c.h.b16 %v2910
    %v2944 = vunpack.c.l.b16 %v2911
    %v2945 = vunpack.c.h.b16 %v2911
    %v2946 = vunpack.c.l.b16 %v2912
    %v2947 = vunpack.c.h.b16 %v2912
    %v2948 = vunpack.c.l.b16 %v2913
    %v2949 = vunpack.c.h.b16 %v2913
    %v2950 = vunpack.c.l.b16 %v2914
    %v2951 = vunpack.c.h.b16 %v2914
    %v2952 = vunpack.c.l.b16 %v2915
    %v2953 = vunpack.c.h.b16 %v2915
    %v2954 = vunpack.c.l.b16 %v2916
    %v2955 = vunpack.c.h.b16 %v2916
    %v2956 = vunpack.c.l.b16 %v2917
    %v2957 = vunpack.c.h.b16 %v2917
    %v2958 = vunpack.c.l.b16 %v2918
    %v2959 = vunpack.c.h.b16 %v2918
    %v2960 = vunpack.c.l.b16 %v2919
    %v2961 = vunpack.c.h.b16 %v2919
    %v2962 = vunpack.c.l.b16 %v2920
    %v2963 = vunpack.c.h.b16 %v2920
    %v2964 = vunpack.c.l.b16 %v2921
    %v2965 = vunpack.c.h.b16 %v2921
    %v2966 = vunpack.c.l.b16 %v2922
    %v2967 = vunpack.c.h.b16 %v2922
    %v2968 = vunpack.c.l.b16 %v2923
    %v2969 = vunpack.c.h.b16 %v2923
    %v2970 = vunpack.c.l.b16 %v2924
    %v2971 = vunpack.c.h.b16 %v2924
    %v2972 = vunpack.c.l.b16 %v2925
    %v2973 = vunpack.c.h.b16 %v2925
    %v2974 = vpack.c.b16 %v2944, %v2942
    %v2975 = vpack.c.b16 %v2945, %v2943
    %v2976 = vpack.c.b16 %v2948, %v2946
    %v2977 = vpack.c.b16 %v2949, %v2947
    %v2978 = vpack.c.b16 %v2952, %v2950
    %v2979 = vpack.c.b16 %v2953, %v2951
    %v2980 = vpack.c.b16 %v2956, %v2954
    %v2981 = vpack.c.b16 %v2957, %v2955
    %v2982 = vpack.c.b16 %v2960, %v2958
    %v2983 = vpack.c.b16 %v2961, %v2959
    %v2984 = vpack.c.b16 %v2964, %v2962
    %v2985 = vpack.c.b16 %v2965, %v2963
    %v2986 = vpack.c.b16 %v2968, %v2966
    %v2987 = vpack.c.b16 %v2969, %v2967
    %v2988 = vpack.c.b16 %v2972, %v2970
    %v2989 = vpack.c.b16 %v2973, %v2971
    %3006 = vmatprep.subr.bf16.mxu0 %v2989
    %3007 = vmatpush1.bf16.msra.mxu0 %v2988
    %3008 = vmatprep.subr.bf16.mxu0 %v2987
    %3009 = vmatpush1.bf16.msra.mxu0 %v2986
    %3010 = vmatprep.subr.bf16.mxu0 %v2985
    %3011 = vmatpush1.bf16.msra.mxu0 %v2984
    %3012 = vmatprep.subr.bf16.mxu0 %v2983
    %3013 = vmatpush1.bf16.msra.mxu0 %v2982
    %3014 = vmatprep.subr.bf16.mxu0 %v2981
    %3015 = vmatpush1.bf16.msra.mxu0 %v2980
    %3016 = vmatprep.subr.bf16.mxu0 %v2979
    %3017 = vmatpush1.bf16.msra.mxu0 %v2978
    %3018 = vmatprep.subr.bf16.mxu0 %v2977
    %3019 = vmatpush1.bf16.msra.mxu0 %v2976
    %3020 = vmatprep.subr.bf16.mxu0 %v2975
    %3021 = vmatpush1.bf16.msra.mxu0 %v2974
    %3022 = vmatprep.subr.bf16.mxu0 0
    %3023 = vmatpush2.bf16.msra.mxu0 0
    %3024 = vmatprep.subr.bf16.mxu0 0
    %3025 = vmatpush2.bf16.msra.mxu0 0
    %3026 = vmatprep.subr.bf16.mxu0 0
    %3027 = vmatpush2.bf16.msra.mxu0 0
    %3028 = vmatprep.subr.bf16.mxu0 0
    %3029 = vmatpush2.bf16.msra.mxu0 0
    %3030 = vmatprep.subr.bf16.mxu0 0
    %3031 = vmatpush2.bf16.msra.mxu0 0
    %3032 = vmatprep.subr.bf16.mxu0 0
    %3033 = vmatpush2.bf16.msra.mxu0 0
    %3034 = vmatprep.subr.bf16.mxu0 0
    %3035 = vmatpush2.bf16.msra.mxu0 0
    %3036 = vmatprep.subr.bf16.mxu0 0
    %3037 = vmatpush2.bf16.msra.mxu0 0
    %3038 = vmatprep.mubr.bf16.mxu0 0
    %3039 = vmatmul.mubr.bf16.gmra.mxu0 %v2905
    %v3040 = vpop.f32.mrf.mxu0
    %v3041 = vadd.f32 0.0, %v3040
    %v3042 = vpop.f32.mrf.mxu0
    %v3043 = vadd.f32 0.0, %v3042
    %v3044 = vpop.f32.mrf.mxu0
    %v3045 = vadd.f32 0.0, %v3044
    %v3046 = vpop.f32.mrf.mxu0
    %v3047 = vadd.f32 0.0, %v3046
    %3048 = vmatprep.mubr.bf16.mxu0 0
    %3049 = vmatmul.mubr.bf16.gmra.mxu0 %v2906
    %v3050 = vpop.f32.mrf.mxu0
    %v3051 = vadd.f32 0.0, %v3050
    %v3052 = vpop.f32.mrf.mxu0
    %v3053 = vadd.f32 0.0, %v3052
    %v3054 = vpop.f32.mrf.mxu0
    %v3055 = vadd.f32 0.0, %v3054
    %v3056 = vpop.f32.mrf.mxu0
    %v3057 = vadd.f32 0.0, %v3056
    %3058 = vmatprep.mubr.bf16.mxu0 0
    %3059 = vmatmul.mubr.bf16.gmra.mxu0 %v2907
    %v3060 = vpop.f32.mrf.mxu0
    %v3061 = vadd.f32 0.0, %v3060
    %v3062 = vpop.f32.mrf.mxu0
    %v3063 = vadd.f32 0.0, %v3062
    %v3064 = vpop.f32.mrf.mxu0
    %v3065 = vadd.f32 0.0, %v3064
    %v3066 = vpop.f32.mrf.mxu0
    %v3067 = vadd.f32 0.0, %v3066
    %3068 = vmatprep.mubr.bf16.mxu0 0
    %3069 = vmatmul.mubr.bf16.gmra.mxu0 %v2908
    %v3070 = vpop.f32.mrf.mxu0
    %v3071 = vadd.f32 0.0, %v3070
    %v3072 = vpop.f32.mrf.mxu0
    %v3073 = vadd.f32 0.0, %v3072
    %v3074 = vpop.f32.mrf.mxu0
    %v3075 = vadd.f32 0.0, %v3074
    %v3076 = vpop.f32.mrf.mxu0
    %v3077 = vadd.f32 0.0, %v3076
    %3078 = vdwg.mxu0
    %v3079 = vadd.f32 %v2857, %v3041
    %v3080 = vadd.f32 %v2858, %v3043
    %v3081 = vadd.f32 %v2859, %v3045
    %v3082 = vadd.f32 %v2860, %v3047
    %v3083 = vadd.f32 %v2861, %v3051
    %v3084 = vadd.f32 %v2862, %v3053
    %v3085 = vadd.f32 %v2863, %v3055
    %v3086 = vadd.f32 %v2864, %v3057
    %v3087 = vadd.f32 %v2865, %v3061
    %v3088 = vadd.f32 %v2866, %v3063
    %v3089 = vadd.f32 %v2867, %v3065
    %v3090 = vadd.f32 %v2868, %v3067
    %v3091 = vadd.f32 %v2869, %v3071
    %v3092 = vadd.f32 %v2870, %v3073
    %v3093 = vadd.f32 %v2871, %v3075
    %v3094 = vadd.f32 %v2872, %v3077
    %v3095 = vrot.slane %v2224, 4
    %v3096 = vrot.slane %v2248, 4
    %v3097 = vsel %vm1455, %v3095, %v3096
    %v3098 = vrot.slane %v2225, 4
    %v3099 = vrot.slane %v2249, 4
    %v3100 = vsel %vm1455, %v3098, %v3099
    %v3101 = vrot.slane %v2226, 4
    %v3102 = vrot.slane %v2250, 4
    %v3103 = vsel %vm1455, %v3101, %v3102
    %v3104 = vrot.slane %v2227, 4
    %v3105 = vrot.slane %v2251, 4
    %v3106 = vsel %vm1455, %v3104, %v3105
    %v3107 = vrot.slane %v2228, 4
    %v3108 = vrot.slane %v2252, 4
    %v3109 = vsel %vm1455, %v3107, %v3108
    %v3110 = vrot.slane %v2229, 4
    %v3111 = vrot.slane %v2253, 4
    %v3112 = vsel %vm1455, %v3110, %v3111
    %v3113 = vrot.slane %v2230, 4
    %v3114 = vrot.slane %v2254, 4
    %v3115 = vsel %vm1455, %v3113, %v3114
    %v3116 = vrot.slane %v2231, 4
    %v3117 = vrot.slane %v2255, 4
    %v3118 = vsel %vm1455, %v3116, %v3117
    %v3127 = vpack.c.bf16 %v3100, %v3097
    %v3128 = vpack.c.bf16 %v3106, %v3103
    %v3129 = vpack.c.bf16 %v3112, %v3109
    %v3130 = vpack.c.bf16 %v3118, %v3115
    %s3131 = scalar_lea.vmem [#allocation2], 512
    %v3132 = vld [vmem:[%s3131] sm:$0xff]
    %v3133 = vld [vmem:[%s3131 + $0x8] sm:$0xff]
    %v3134 = vld [vmem:[%s3131 + $0x10] sm:$0xff]
    %v3135 = vld [vmem:[%s3131 + $0x18] sm:$0xff]
    %v3136 = vld [vmem:[%s3131 + $0x20] sm:$0xff]
    %v3137 = vld [vmem:[%s3131 + $0x28] sm:$0xff]
    %v3138 = vld [vmem:[%s3131 + $0x30] sm:$0xff]
    %v3139 = vld [vmem:[%s3131 + $0x38] sm:$0xff]
    %v3140 = vld [vmem:[%s3131 + $0x40] sm:$0xff]
    %v3141 = vld [vmem:[%s3131 + $0x48] sm:$0xff]
    %v3142 = vld [vmem:[%s3131 + $0x50] sm:$0xff]
    %v3143 = vld [vmem:[%s3131 + $0x58] sm:$0xff]
    %v3144 = vld [vmem:[%s3131 + $0x60] sm:$0xff]
    %v3145 = vld [vmem:[%s3131 + $0x68] sm:$0xff]
    %v3146 = vld [vmem:[%s3131 + $0x70] sm:$0xff]
    %v3147 = vld [vmem:[%s3131 + $0x78] sm:$0xff]
    %v3164 = vunpack.c.l.b16 %v3132
    %v3165 = vunpack.c.h.b16 %v3132
    %v3166 = vunpack.c.l.b16 %v3133
    %v3167 = vunpack.c.h.b16 %v3133
    %v3168 = vunpack.c.l.b16 %v3134
    %v3169 = vunpack.c.h.b16 %v3134
    %v3170 = vunpack.c.l.b16 %v3135
    %v3171 = vunpack.c.h.b16 %v3135
    %v3172 = vunpack.c.l.b16 %v3136
    %v3173 = vunpack.c.h.b16 %v3136
    %v3174 = vunpack.c.l.b16 %v3137
    %v3175 = vunpack.c.h.b16 %v3137
    %v3176 = vunpack.c.l.b16 %v3138
    %v3177 = vunpack.c.h.b16 %v3138
    %v3178 = vunpack.c.l.b16 %v3139
    %v3179 = vunpack.c.h.b16 %v3139
    %v3180 = vunpack.c.l.b16 %v3140
    %v3181 = vunpack.c.h.b16 %v3140
    %v3182 = vunpack.c.l.b16 %v3141
    %v3183 = vunpack.c.h.b16 %v3141
    %v3184 = vunpack.c.l.b16 %v3142
    %v3185 = vunpack.c.h.b16 %v3142
    %v3186 = vunpack.c.l.b16 %v3143
    %v3187 = vunpack.c.h.b16 %v3143
    %v3188 = vunpack.c.l.b16 %v3144
    %v3189 = vunpack.c.h.b16 %v3144
    %v3190 = vunpack.c.l.b16 %v3145
    %v3191 = vunpack.c.h.b16 %v3145
    %v3192 = vunpack.c.l.b16 %v3146
    %v3193 = vunpack.c.h.b16 %v3146
    %v3194 = vunpack.c.l.b16 %v3147
    %v3195 = vunpack.c.h.b16 %v3147
    %v3196 = vpack.c.b16 %v3166, %v3164
    %v3197 = vpack.c.b16 %v3167, %v3165
    %v3198 = vpack.c.b16 %v3170, %v3168
    %v3199 = vpack.c.b16 %v3171, %v3169
    %v3200 = vpack.c.b16 %v3174, %v3172
    %v3201 = vpack.c.b16 %v3175, %v3173
    %v3202 = vpack.c.b16 %v3178, %v3176
    %v3203 = vpack.c.b16 %v3179, %v3177
    %v3204 = vpack.c.b16 %v3182, %v3180
    %v3205 = vpack.c.b16 %v3183, %v3181
    %v3206 = vpack.c.b16 %v3186, %v3184
    %v3207 = vpack.c.b16 %v3187, %v3185
    %v3208 = vpack.c.b16 %v3190, %v3188
    %v3209 = vpack.c.b16 %v3191, %v3189
    %v3210 = vpack.c.b16 %v3194, %v3192
    %v3211 = vpack.c.b16 %v3195, %v3193
    %3228 = vmatprep.subr.bf16.mxu0 %v3211
    %3229 = vmatpush1.bf16.msra.mxu0 %v3210
    %3230 = vmatprep.subr.bf16.mxu0 %v3209
    %3231 = vmatpush1.bf16.msra.mxu0 %v3208
    %3232 = vmatprep.subr.bf16.mxu0 %v3207
    %3233 = vmatpush1.bf16.msra.mxu0 %v3206
    %3234 = vmatprep.subr.bf16.mxu0 %v3205
    %3235 = vmatpush1.bf16.msra.mxu0 %v3204
    %3236 = vmatprep.subr.bf16.mxu0 %v3203
    %3237 = vmatpush1.bf16.msra.mxu0 %v3202
    %3238 = vmatprep.subr.bf16.mxu0 %v3201
    %3239 = vmatpush1.bf16.msra.mxu0 %v3200
    %3240 = vmatprep.subr.bf16.mxu0 %v3199
    %3241 = vmatpush1.bf16.msra.mxu0 %v3198
    %3242 = vmatprep.subr.bf16.mxu0 %v3197
    %3243 = vmatpush1.bf16.msra.mxu0 %v3196
    %3244 = vmatprep.subr.bf16.mxu0 0
    %3245 = vmatpush2.bf16.msra.mxu0 0
    %3246 = vmatprep.subr.bf16.mxu0 0
    %3247 = vmatpush2.bf16.msra.mxu0 0
    %3248 = vmatprep.subr.bf16.mxu0 0
    %3249 = vmatpush2.bf16.msra.mxu0 0
    %3250 = vmatprep.subr.bf16.mxu0 0
    %3251 = vmatpush2.bf16.msra.mxu0 0
    %3252 = vmatprep.subr.bf16.mxu0 0
    %3253 = vmatpush2.bf16.msra.mxu0 0
    %3254 = vmatprep.subr.bf16.mxu0 0
    %3255 = vmatpush2.bf16.msra.mxu0 0
    %3256 = vmatprep.subr.bf16.mxu0 0
    %3257 = vmatpush2.bf16.msra.mxu0 0
    %3258 = vmatprep.subr.bf16.mxu0 0
    %3259 = vmatpush2.bf16.msra.mxu0 0
    %3260 = vmatprep.mubr.bf16.mxu0 0
    %3261 = vmatmul.mubr.bf16.gmra.mxu0 %v3127
    %v3262 = vpop.f32.mrf.mxu0
    %v3263 = vadd.f32 0.0, %v3262
    %v3264 = vpop.f32.mrf.mxu0
    %v3265 = vadd.f32 0.0, %v3264
    %v3266 = vpop.f32.mrf.mxu0
    %v3267 = vadd.f32 0.0, %v3266
    %v3268 = vpop.f32.mrf.mxu0
    %v3269 = vadd.f32 0.0, %v3268
    %3270 = vmatprep.mubr.bf16.mxu0 0
    %3271 = vmatmul.mubr.bf16.gmra.mxu0 %v3128
    %v3272 = vpop.f32.mrf.mxu0
    %v3273 = vadd.f32 0.0, %v3272
    %v3274 = vpop.f32.mrf.mxu0
    %v3275 = vadd.f32 0.0, %v3274
    %v3276 = vpop.f32.mrf.mxu0
    %v3277 = vadd.f32 0.0, %v3276
    %v3278 = vpop.f32.mrf.mxu0
    %v3279 = vadd.f32 0.0, %v3278
    %3280 = vmatprep.mubr.bf16.mxu0 0
    %3281 = vmatmul.mubr.bf16.gmra.mxu0 %v3129
    %v3282 = vpop.f32.mrf.mxu0
    %v3283 = vadd.f32 0.0, %v3282
    %v3284 = vpop.f32.mrf.mxu0
    %v3285 = vadd.f32 0.0, %v3284
    %v3286 = vpop.f32.mrf.mxu0
    %v3287 = vadd.f32 0.0, %v3286
    %v3288 = vpop.f32.mrf.mxu0
    %v3289 = vadd.f32 0.0, %v3288
    %3290 = vmatprep.mubr.bf16.mxu0 0
    %3291 = vmatmul.mubr.bf16.gmra.mxu0 %v3130
    %v3292 = vpop.f32.mrf.mxu0
    %v3293 = vadd.f32 0.0, %v3292
    %v3294 = vpop.f32.mrf.mxu0
    %v3295 = vadd.f32 0.0, %v3294
    %v3296 = vpop.f32.mrf.mxu0
    %v3297 = vadd.f32 0.0, %v3296
    %v3298 = vpop.f32.mrf.mxu0
    %v3299 = vadd.f32 0.0, %v3298
    %3300 = vdwg.mxu0
    %v3301 = vadd.f32 %v3079, %v3263
    %v3302 = vadd.f32 %v3080, %v3265
    %v3303 = vadd.f32 %v3081, %v3267
    %v3304 = vadd.f32 %v3082, %v3269
    %v3305 = vadd.f32 %v3083, %v3273
    %v3306 = vadd.f32 %v3084, %v3275
    %v3307 = vadd.f32 %v3085, %v3277
    %v3308 = vadd.f32 %v3086, %v3279
    %v3309 = vadd.f32 %v3087, %v3283
    %v3310 = vadd.f32 %v3088, %v3285
    %v3311 = vadd.f32 %v3089, %v3287
    %v3312 = vadd.f32 %v3090, %v3289
    %v3313 = vadd.f32 %v3091, %v3293
    %v3314 = vadd.f32 %v3092, %v3295
    %v3315 = vadd.f32 %v3093, %v3297
    %v3316 = vadd.f32 %v3094, %v3299
    %v3317 = vmax.f32 %v3301, %v3302
    %v3318 = vmax.f32 %v3303, %v3304
    %v3319 = vmax.f32 %v3305, %v3306
    %v3320 = vmax.f32 %v3307, %v3308
    %v3321 = vmax.f32 %v3309, %v3310
    %v3322 = vmax.f32 %v3311, %v3312
    %v3323 = vmax.f32 %v3313, %v3314
    %v3324 = vmax.f32 %v3315, %v3316
    %v3325 = vld [vmem:[%s4] sm:$0x1]
    %v3327 = vlaneseq
    %v3328 = vshrl.u32 %v3327, 7
    %v3329 = vsub.s32 0, %v3328
    %v3330 = vrot.slane %v3325, %v3329
    %v3332 = vadd.f32 %v3317, %v3330
    %v3333 = vadd.f32 %v3318, %v3330
    %v3334 = vadd.f32 %v3319, %v3330
    %v3335 = vadd.f32 %v3320, %v3330
    %v3336 = vadd.f32 %v3321, %v3330
    %v3337 = vadd.f32 %v3322, %v3330
    %v3338 = vadd.f32 %v3323, %v3330
    %v3339 = vadd.f32 %v3324, %v3330
    %v3340 = vmax.f32 %v3332, 0.0
    %v3341 = vmax.f32 %v3333, 0.0
    %v3342 = vmax.f32 %v3334, 0.0
    %v3343 = vmax.f32 %v3335, 0.0
    %v3344 = vmax.f32 %v3336, 0.0
    %v3345 = vmax.f32 %v3337, 0.0
    %v3346 = vmax.f32 %v3338, 0.0
    %v3347 = vmax.f32 %v3339, 0.0
    %v3356 = vrot.slane %v3340, 1
    %v3357 = vrot.slane %v3341, 1
    %v3358 = vrot.slane %v3342, 1
    %v3359 = vrot.slane %v3343, 1
    %v3360 = vrot.slane %v3344, 1
    %v3361 = vrot.slane %v3345, 1
    %v3362 = vrot.slane %v3346, 1
    %v3363 = vrot.slane %v3347, 1
    %v3372 = vmax.f32 %v3340, %v3356
    %v3373 = vmax.f32 %v3341, %v3357
    %v3374 = vmax.f32 %v3342, %v3358
    %v3375 = vmax.f32 %v3343, %v3359
    %v3376 = vmax.f32 %v3344, %v3360
    %v3377 = vmax.f32 %v3345, %v3361
    %v3378 = vmax.f32 %v3346, %v3362
    %v3379 = vmax.f32 %v3347, %v3363
    %v3388 = vrot.slane %v3373, 7
    %vm3389 = vcmask 1041409
    %v3390 = vsel %vm3389, %v3388, %v3372
    %v3391 = vrot.slane %v3374, 6
    %vm3392 = vcmask 1042434
    %v3393 = vsel %vm3392, %v3391, %v3390
    %v3394 = vrot.slane %v3375, 5
    %vm3395 = vcmask 1043459
    %v3396 = vsel %vm3395, %v3394, %v3393
    %v3397 = vrot.slane %v3376, 4
    %vm3398 = vcmask 1044484
    %v3399 = vsel %vm3398, %v3397, %v3396
    %v3400 = vrot.slane %v3377, 3
    %vm3401 = vcmask 1045509
    %v3402 = vsel %vm3401, %v3400, %v3399
    %v3403 = vrot.slane %v3378, 2
    %vm3404 = vcmask 1046534
    %v3405 = vsel %vm3404, %v3403, %v3402
    %v3406 = vrot.slane %v3379, 1
    %vm3407 = vcmask 1047559
    %v3408 = vsel %vm3407, %v3406, %v3405
    %v3410 = vrot.slane %v3372, 2
    %v3411 = vrot.slane %v3373, 1
    %v3412 = vsel %vm3389, %v3411, %v3410
    %v3413 = vsel %vm3392, %v3374, %v3412
    %v3414 = vrot.slane %v3375, 7
    %v3415 = vsel %vm3395, %v3414, %v3413
    %v3416 = vrot.slane %v3376, 6
    %v3417 = vsel %vm3398, %v3416, %v3415
    %v3418 = vrot.slane %v3377, 5
    %v3419 = vsel %vm3401, %v3418, %v3417
    %v3420 = vrot.slane %v3378, 4
    %v3421 = vsel %vm3404, %v3420, %v3419
    %v3422 = vrot.slane %v3379, 3
    %v3423 = vsel %vm3407, %v3422, %v3421
    %v3425 = vrot.slane %v3372, 4
    %v3426 = vrot.slane %v3373, 3
    %v3427 = vsel %vm3389, %v3426, %v3425
    %v3428 = vrot.slane %v3374, 2
    %v3429 = vsel %vm3392, %v3428, %v3427
    %v3430 = vrot.slane %v3375, 1
    %v3431 = vsel %vm3395, %v3430, %v3429
    %v3432 = vsel %vm3398, %v3376, %v3431
    %v3433 = vrot.slane %v3377, 7
    %v3434 = vsel %vm3401, %v3433, %v3432
    %v3435 = vrot.slane %v3378, 6
    %v3436 = vsel %vm3404, %v3435, %v3434
    %v3437 = vrot.slane %v3379, 5
    %v3438 = vsel %vm3407, %v3437, %v3436
    %v3440 = vrot.slane %v3372, 6
    %v3441 = vrot.slane %v3373, 5
    %v3442 = vsel %vm3389, %v3441, %v3440
    %v3443 = vrot.slane %v3374, 4
    %v3444 = vsel %vm3392, %v3443, %v3442
    %v3445 = vrot.slane %v3375, 3
    %v3446 = vsel %vm3395, %v3445, %v3444
    %v3447 = vrot.slane %v3376, 2
    %v3448 = vsel %vm3398, %v3447, %v3446
    %v3449 = vrot.slane %v3377, 1
    %v3450 = vsel %vm3401, %v3449, %v3448
    %v3451 = vsel %vm3404, %v3378, %v3450
    %v3452 = vrot.slane %v3379, 7
    %v3453 = vsel %vm3407, %v3452, %v3451
    %v3455 = vpack.c.bf16 %v3408, %v3408
    %v3456 = vpack.c.bf16 %v3423, %v3423
    %v3457 = vpack.c.bf16 %v3438, %v3438
    %v3458 = vpack.c.bf16 %v3453, %v3453
    %v3459 = vld [vmem:[#allocation4] sm:$0xff]
    %v3460 = vld [vmem:[#allocation4 + $0x8] sm:$0xff]
    %v3461 = vld [vmem:[#allocation4 + $0x10] sm:$0xff]
    %v3462 = vld [vmem:[#allocation4 + $0x18] sm:$0xff]
    %v3463 = vld [vmem:[#allocation4 + $0x20] sm:$0xff]
    %v3464 = vld [vmem:[#allocation4 + $0x28] sm:$0xff]
    %v3465 = vld [vmem:[#allocation4 + $0x30] sm:$0xff]
    %v3466 = vld [vmem:[#allocation4 + $0x38] sm:$0xff]
    %v3467 = vld [vmem:[#allocation4 + $0x40] sm:$0xff]
    %v3468 = vld [vmem:[#allocation4 + $0x48] sm:$0xff]
    %v3469 = vld [vmem:[#allocation4 + $0x50] sm:$0xff]
    %v3470 = vld [vmem:[#allocation4 + $0x58] sm:$0xff]
    %v3471 = vld [vmem:[#allocation4 + $0x60] sm:$0xff]
    %v3472 = vld [vmem:[#allocation4 + $0x68] sm:$0xff]
    %v3473 = vld [vmem:[#allocation4 + $0x70] sm:$0xff]
    %v3474 = vld [vmem:[#allocation4 + $0x78] sm:$0xff]
    %v3475 = vld [vmem:[#allocation4 + $0x80] sm:$0xff]
    %v3476 = vld [vmem:[#allocation4 + $0x88] sm:$0xff]
    %v3477 = vld [vmem:[#allocation4 + $0x90] sm:$0xff]
    %v3478 = vld [vmem:[#allocation4 + $0x98] sm:$0xff]
    %v3479 = vld [vmem:[#allocation4 + $0xa0] sm:$0xff]
    %v3480 = vld [vmem:[#allocation4 + $0xa8] sm:$0xff]
    %v3481 = vld [vmem:[#allocation4 + $0xb0] sm:$0xff]
    %v3482 = vld [vmem:[#allocation4 + $0xb8] sm:$0xff]
    %v3483 = vld [vmem:[#allocation4 + $0xc0] sm:$0xff]
    %v3484 = vld [vmem:[#allocation4 + $0xc8] sm:$0xff]
    %v3485 = vld [vmem:[#allocation4 + $0xd0] sm:$0xff]
    %v3486 = vld [vmem:[#allocation4 + $0xd8] sm:$0xff]
    %v3487 = vld [vmem:[#allocation4 + $0xe0] sm:$0xff]
    %v3488 = vld [vmem:[#allocation4 + $0xe8] sm:$0xff]
    %v3489 = vld [vmem:[#allocation4 + $0xf0] sm:$0xff]
    %v3490 = vld [vmem:[#allocation4 + $0xf8] sm:$0xff]
    %v3491 = vld [vmem:[#allocation4 + $0x100] sm:$0xff]
    %v3492 = vld [vmem:[#allocation4 + $0x108] sm:$0xff]
    %v3493 = vld [vmem:[#allocation4 + $0x110] sm:$0xff]
    %v3494 = vld [vmem:[#allocation4 + $0x118] sm:$0xff]
    %v3495 = vld [vmem:[#allocation4 + $0x120] sm:$0xff]
    %v3496 = vld [vmem:[#allocation4 + $0x128] sm:$0xff]
    %v3497 = vld [vmem:[#allocation4 + $0x130] sm:$0xff]
    %v3498 = vld [vmem:[#allocation4 + $0x138] sm:$0xff]
    %v3499 = vld [vmem:[#allocation4 + $0x140] sm:$0xff]
    %v3500 = vld [vmem:[#allocation4 + $0x148] sm:$0xff]
    %v3501 = vld [vmem:[#allocation4 + $0x150] sm:$0xff]
    %v3502 = vld [vmem:[#allocation4 + $0x158] sm:$0xff]
    %v3503 = vld [vmem:[#allocation4 + $0x160] sm:$0xff]
    %v3504 = vld [vmem:[#allocation4 + $0x168] sm:$0xff]
    %v3505 = vld [vmem:[#allocation4 + $0x170] sm:$0xff]
    %v3506 = vld [vmem:[#allocation4 + $0x178] sm:$0xff]
    %v3507 = vld [vmem:[#allocation4 + $0x180] sm:$0xff]
    %v3508 = vld [vmem:[#allocation4 + $0x188] sm:$0xff]
    %v3509 = vld [vmem:[#allocation4 + $0x190] sm:$0xff]
    %v3510 = vld [vmem:[#allocation4 + $0x198] sm:$0xff]
    %v3511 = vld [vmem:[#allocation4 + $0x1a0] sm:$0xff]
    %v3512 = vld [vmem:[#allocation4 + $0x1a8] sm:$0xff]
    %v3513 = vld [vmem:[#allocation4 + $0x1b0] sm:$0xff]
    %v3514 = vld [vmem:[#allocation4 + $0x1b8] sm:$0xff]
    %v3515 = vld [vmem:[#allocation4 + $0x1c0] sm:$0xff]
    %v3516 = vld [vmem:[#allocation4 + $0x1c8] sm:$0xff]
    %v3517 = vld [vmem:[#allocation4 + $0x1d0] sm:$0xff]
    %v3518 = vld [vmem:[#allocation4 + $0x1d8] sm:$0xff]
    %v3519 = vld [vmem:[#allocation4 + $0x1e0] sm:$0xff]
    %v3520 = vld [vmem:[#allocation4 + $0x1e8] sm:$0xff]
    %v3521 = vld [vmem:[#allocation4 + $0x1f0] sm:$0xff]
    %v3522 = vld [vmem:[#allocation4 + $0x1f8] sm:$0xff]
    %v3523 = vld [vmem:[#allocation4 + $0x200] sm:$0xff]
    %v3524 = vld [vmem:[#allocation4 + $0x208] sm:$0xff]
    %v3525 = vld [vmem:[#allocation4 + $0x210] sm:$0xff]
    %v3526 = vld [vmem:[#allocation4 + $0x218] sm:$0xff]
    %v3527 = vld [vmem:[#allocation4 + $0x220] sm:$0xff]
    %v3528 = vld [vmem:[#allocation4 + $0x228] sm:$0xff]
    %v3529 = vld [vmem:[#allocation4 + $0x230] sm:$0xff]
    %v3530 = vld [vmem:[#allocation4 + $0x238] sm:$0xff]
    %v3531 = vld [vmem:[#allocation4 + $0x240] sm:$0xff]
    %v3532 = vld [vmem:[#allocation4 + $0x248] sm:$0xff]
    %v3533 = vld [vmem:[#allocation4 + $0x250] sm:$0xff]
    %v3534 = vld [vmem:[#allocation4 + $0x258] sm:$0xff]
    %v3535 = vld [vmem:[#allocation4 + $0x260] sm:$0xff]
    %v3536 = vld [vmem:[#allocation4 + $0x268] sm:$0xff]
    %v3537 = vld [vmem:[#allocation4 + $0x270] sm:$0xff]
    %v3538 = vld [vmem:[#allocation4 + $0x278] sm:$0xff]
    %v3539 = vld [vmem:[#allocation4 + $0x280] sm:$0xff]
    %v3540 = vld [vmem:[#allocation4 + $0x288] sm:$0xff]
    %v3541 = vld [vmem:[#allocation4 + $0x290] sm:$0xff]
    %v3542 = vld [vmem:[#allocation4 + $0x298] sm:$0xff]
    %v3543 = vld [vmem:[#allocation4 + $0x2a0] sm:$0xff]
    %v3544 = vld [vmem:[#allocation4 + $0x2a8] sm:$0xff]
    %v3545 = vld [vmem:[#allocation4 + $0x2b0] sm:$0xff]
    %v3546 = vld [vmem:[#allocation4 + $0x2b8] sm:$0xff]
    %v3547 = vld [vmem:[#allocation4 + $0x2c0] sm:$0xff]
    %v3548 = vld [vmem:[#allocation4 + $0x2c8] sm:$0xff]
    %v3549 = vld [vmem:[#allocation4 + $0x2d0] sm:$0xff]
    %v3550 = vld [vmem:[#allocation4 + $0x2d8] sm:$0xff]
    %v3551 = vld [vmem:[#allocation4 + $0x2e0] sm:$0xff]
    %v3552 = vld [vmem:[#allocation4 + $0x2e8] sm:$0xff]
    %v3553 = vld [vmem:[#allocation4 + $0x2f0] sm:$0xff]
    %v3554 = vld [vmem:[#allocation4 + $0x2f8] sm:$0xff]
    %v3555 = vld [vmem:[#allocation4 + $0x300] sm:$0xff]
    %v3556 = vld [vmem:[#allocation4 + $0x308] sm:$0xff]
    %v3557 = vld [vmem:[#allocation4 + $0x310] sm:$0xff]
    %v3558 = vld [vmem:[#allocation4 + $0x318] sm:$0xff]
    %v3559 = vld [vmem:[#allocation4 + $0x320] sm:$0xff]
    %v3560 = vld [vmem:[#allocation4 + $0x328] sm:$0xff]
    %v3561 = vld [vmem:[#allocation4 + $0x330] sm:$0xff]
    %v3562 = vld [vmem:[#allocation4 + $0x338] sm:$0xff]
    %v3563 = vld [vmem:[#allocation4 + $0x340] sm:$0xff]
    %v3564 = vld [vmem:[#allocation4 + $0x348] sm:$0xff]
    %v3565 = vld [vmem:[#allocation4 + $0x350] sm:$0xff]
    %v3566 = vld [vmem:[#allocation4 + $0x358] sm:$0xff]
    %v3567 = vld [vmem:[#allocation4 + $0x360] sm:$0xff]
    %v3568 = vld [vmem:[#allocation4 + $0x368] sm:$0xff]
    %v3569 = vld [vmem:[#allocation4 + $0x370] sm:$0xff]
    %v3570 = vld [vmem:[#allocation4 + $0x378] sm:$0xff]
    %v3571 = vld [vmem:[#allocation4 + $0x380] sm:$0xff]
    %v3572 = vld [vmem:[#allocation4 + $0x388] sm:$0xff]
    %v3573 = vld [vmem:[#allocation4 + $0x390] sm:$0xff]
    %v3574 = vld [vmem:[#allocation4 + $0x398] sm:$0xff]
    %v3575 = vld [vmem:[#allocation4 + $0x3a0] sm:$0xff]
    %v3576 = vld [vmem:[#allocation4 + $0x3a8] sm:$0xff]
    %v3577 = vld [vmem:[#allocation4 + $0x3b0] sm:$0xff]
    %v3578 = vld [vmem:[#allocation4 + $0x3b8] sm:$0xff]
    %v3579 = vld [vmem:[#allocation4 + $0x3c0] sm:$0xff]
    %v3580 = vld [vmem:[#allocation4 + $0x3c8] sm:$0xff]
    %v3581 = vld [vmem:[#allocation4 + $0x3d0] sm:$0xff]
    %v3582 = vld [vmem:[#allocation4 + $0x3d8] sm:$0xff]
    %v3583 = vld [vmem:[#allocation4 + $0x3e0] sm:$0xff]
    %v3584 = vld [vmem:[#allocation4 + $0x3e8] sm:$0xff]
    %v3585 = vld [vmem:[#allocation4 + $0x3f0] sm:$0xff]
    %v3586 = vld [vmem:[#allocation4 + $0x3f8] sm:$0xff]
    %v3715 = vunpack.c.l.b16 %v3459
    %v3716 = vunpack.c.h.b16 %v3459
    %v3717 = vunpack.c.l.b16 %v3460
    %v3718 = vunpack.c.h.b16 %v3460
    %v3719 = vunpack.c.l.b16 %v3461
    %v3720 = vunpack.c.h.b16 %v3461
    %v3721 = vunpack.c.l.b16 %v3462
    %v3722 = vunpack.c.h.b16 %v3462
    %v3723 = vunpack.c.l.b16 %v3463
    %v3724 = vunpack.c.h.b16 %v3463
    %v3725 = vunpack.c.l.b16 %v3464
    %v3726 = vunpack.c.h.b16 %v3464
    %v3727 = vunpack.c.l.b16 %v3465
    %v3728 = vunpack.c.h.b16 %v3465
    %v3729 = vunpack.c.l.b16 %v3466
    %v3730 = vunpack.c.h.b16 %v3466
    %v3731 = vunpack.c.l.b16 %v3467
    %v3732 = vunpack.c.h.b16 %v3467
    %v3733 = vunpack.c.l.b16 %v3468
    %v3734 = vunpack.c.h.b16 %v3468
    %v3735 = vunpack.c.l.b16 %v3469
    %v3736 = vunpack.c.h.b16 %v3469
    %v3737 = vunpack.c.l.b16 %v3470
    %v3738 = vunpack.c.h.b16 %v3470
    %v3739 = vunpack.c.l.b16 %v3471
    %v3740 = vunpack.c.h.b16 %v3471
    %v3741 = vunpack.c.l.b16 %v3472
    %v3742 = vunpack.c.h.b16 %v3472
    %v3743 = vunpack.c.l.b16 %v3473
    %v3744 = vunpack.c.h.b16 %v3473
    %v3745 = vunpack.c.l.b16 %v3474
    %v3746 = vunpack.c.h.b16 %v3474
    %v3747 = vunpack.c.l.b16 %v3475
    %v3748 = vunpack.c.h.b16 %v3475
    %v3749 = vunpack.c.l.b16 %v3476
    %v3750 = vunpack.c.h.b16 %v3476
    %v3751 = vunpack.c.l.b16 %v3477
    %v3752 = vunpack.c.h.b16 %v3477
    %v3753 = vunpack.c.l.b16 %v3478
    %v3754 = vunpack.c.h.b16 %v3478
    %v3755 = vunpack.c.l.b16 %v3479
    %v3756 = vunpack.c.h.b16 %v3479
    %v3757 = vunpack.c.l.b16 %v3480
    %v3758 = vunpack.c.h.b16 %v3480
    %v3759 = vunpack.c.l.b16 %v3481
    %v3760 = vunpack.c.h.b16 %v3481
    %v3761 = vunpack.c.l.b16 %v3482
    %v3762 = vunpack.c.h.b16 %v3482
    %v3763 = vunpack.c.l.b16 %v3483
    %v3764 = vunpack.c.h.b16 %v3483
    %v3765 = vunpack.c.l.b16 %v3484
    %v3766 = vunpack.c.h.b16 %v3484
    %v3767 = vunpack.c.l.b16 %v3485
    %v3768 = vunpack.c.h.b16 %v3485
    %v3769 = vunpack.c.l.b16 %v3486
    %v3770 = vunpack.c.h.b16 %v3486
    %v3771 = vunpack.c.l.b16 %v3487
    %v3772 = vunpack.c.h.b16 %v3487
    %v3773 = vunpack.c.l.b16 %v3488
    %v3774 = vunpack.c.h.b16 %v3488
    %v3775 = vunpack.c.l.b16 %v3489
    %v3776 = vunpack.c.h.b16 %v3489
    %v3777 = vunpack.c.l.b16 %v3490
    %v3778 = vunpack.c.h.b16 %v3490
    %v3779 = vunpack.c.l.b16 %v3491
    %v3780 = vunpack.c.h.b16 %v3491
    %v3781 = vunpack.c.l.b16 %v3492
    %v3782 = vunpack.c.h.b16 %v3492
    %v3783 = vunpack.c.l.b16 %v3493
    %v3784 = vunpack.c.h.b16 %v3493
    %v3785 = vunpack.c.l.b16 %v3494
    %v3786 = vunpack.c.h.b16 %v3494
    %v3787 = vunpack.c.l.b16 %v3495
    %v3788 = vunpack.c.h.b16 %v3495
    %v3789 = vunpack.c.l.b16 %v3496
    %v3790 = vunpack.c.h.b16 %v3496
    %v3791 = vunpack.c.l.b16 %v3497
    %v3792 = vunpack.c.h.b16 %v3497
    %v3793 = vunpack.c.l.b16 %v3498
    %v3794 = vunpack.c.h.b16 %v3498
    %v3795 = vunpack.c.l.b16 %v3499
    %v3796 = vunpack.c.h.b16 %v3499
    %v3797 = vunpack.c.l.b16 %v3500
    %v3798 = vunpack.c.h.b16 %v3500
    %v3799 = vunpack.c.l.b16 %v3501
    %v3800 = vunpack.c.h.b16 %v3501
    %v3801 = vunpack.c.l.b16 %v3502
    %v3802 = vunpack.c.h.b16 %v3502
    %v3803 = vunpack.c.l.b16 %v3503
    %v3804 = vunpack.c.h.b16 %v3503
    %v3805 = vunpack.c.l.b16 %v3504
    %v3806 = vunpack.c.h.b16 %v3504
    %v3807 = vunpack.c.l.b16 %v3505
    %v3808 = vunpack.c.h.b16 %v3505
    %v3809 = vunpack.c.l.b16 %v3506
    %v3810 = vunpack.c.h.b16 %v3506
    %v3811 = vunpack.c.l.b16 %v3507
    %v3812 = vunpack.c.h.b16 %v3507
    %v3813 = vunpack.c.l.b16 %v3508
    %v3814 = vunpack.c.h.b16 %v3508
    %v3815 = vunpack.c.l.b16 %v3509
    %v3816 = vunpack.c.h.b16 %v3509
    %v3817 = vunpack.c.l.b16 %v3510
    %v3818 = vunpack.c.h.b16 %v3510
    %v3819 = vunpack.c.l.b16 %v3511
    %v3820 = vunpack.c.h.b16 %v3511
    %v3821 = vunpack.c.l.b16 %v3512
    %v3822 = vunpack.c.h.b16 %v3512
    %v3823 = vunpack.c.l.b16 %v3513
    %v3824 = vunpack.c.h.b16 %v3513
    %v3825 = vunpack.c.l.b16 %v3514
    %v3826 = vunpack.c.h.b16 %v3514
    %v3827 = vunpack.c.l.b16 %v3515
    %v3828 = vunpack.c.h.b16 %v3515
    %v3829 = vunpack.c.l.b16 %v3516
    %v3830 = vunpack.c.h.b16 %v3516
    %v3831 = vunpack.c.l.b16 %v3517
    %v3832 = vunpack.c.h.b16 %v3517
    %v3833 = vunpack.c.l.b16 %v3518
    %v3834 = vunpack.c.h.b16 %v3518
    %v3835 = vunpack.c.l.b16 %v3519
    %v3836 = vunpack.c.h.b16 %v3519
    %v3837 = vunpack.c.l.b16 %v3520
    %v3838 = vunpack.c.h.b16 %v3520
    %v3839 = vunpack.c.l.b16 %v3521
    %v3840 = vunpack.c.h.b16 %v3521
    %v3841 = vunpack.c.l.b16 %v3522
    %v3842 = vunpack.c.h.b16 %v3522
    %v3843 = vunpack.c.l.b16 %v3523
    %v3844 = vunpack.c.h.b16 %v3523
    %v3845 = vunpack.c.l.b16 %v3524
    %v3846 = vunpack.c.h.b16 %v3524
    %v3847 = vunpack.c.l.b16 %v3525
    %v3848 = vunpack.c.h.b16 %v3525
    %v3849 = vunpack.c.l.b16 %v3526
    %v3850 = vunpack.c.h.b16 %v3526
    %v3851 = vunpack.c.l.b16 %v3527
    %v3852 = vunpack.c.h.b16 %v3527
    %v3853 = vunpack.c.l.b16 %v3528
    %v3854 = vunpack.c.h.b16 %v3528
    %v3855 = vunpack.c.l.b16 %v3529
    %v3856 = vunpack.c.h.b16 %v3529
    %v3857 = vunpack.c.l.b16 %v3530
    %v3858 = vunpack.c.h.b16 %v3530
    %v3859 = vunpack.c.l.b16 %v3531
    %v3860 = vunpack.c.h.b16 %v3531
    %v3861 = vunpack.c.l.b16 %v3532
    %v3862 = vunpack.c.h.b16 %v3532
    %v3863 = vunpack.c.l.b16 %v3533
    %v3864 = vunpack.c.h.b16 %v3533
    %v3865 = vunpack.c.l.b16 %v3534
    %v3866 = vunpack.c.h.b16 %v3534
    %v3867 = vunpack.c.l.b16 %v3535
    %v3868 = vunpack.c.h.b16 %v3535
    %v3869 = vunpack.c.l.b16 %v3536
    %v3870 = vunpack.c.h.b16 %v3536
    %v3871 = vunpack.c.l.b16 %v3537
    %v3872 = vunpack.c.h.b16 %v3537
    %v3873 = vunpack.c.l.b16 %v3538
    %v3874 = vunpack.c.h.b16 %v3538
    %v3875 = vunpack.c.l.b16 %v3539
    %v3876 = vunpack.c.h.b16 %v3539
    %v3877 = vunpack.c.l.b16 %v3540
    %v3878 = vunpack.c.h.b16 %v3540
    %v3879 = vunpack.c.l.b16 %v3541
    %v3880 = vunpack.c.h.b16 %v3541
    %v3881 = vunpack.c.l.b16 %v3542
    %v3882 = vunpack.c.h.b16 %v3542
    %v3883 = vunpack.c.l.b16 %v3543
    %v3884 = vunpack.c.h.b16 %v3543
    %v3885 = vunpack.c.l.b16 %v3544
    %v3886 = vunpack.c.h.b16 %v3544
    %v3887 = vunpack.c.l.b16 %v3545
    %v3888 = vunpack.c.h.b16 %v3545
    %v3889 = vunpack.c.l.b16 %v3546
    %v3890 = vunpack.c.h.b16 %v3546
    %v3891 = vunpack.c.l.b16 %v3547
    %v3892 = vunpack.c.h.b16 %v3547
    %v3893 = vunpack.c.l.b16 %v3548
    %v3894 = vunpack.c.h.b16 %v3548
    %v3895 = vunpack.c.l.b16 %v3549
    %v3896 = vunpack.c.h.b16 %v3549
    %v3897 = vunpack.c.l.b16 %v3550
    %v3898 = vunpack.c.h.b16 %v3550
    %v3899 = vunpack.c.l.b16 %v3551
    %v3900 = vunpack.c.h.b16 %v3551
    %v3901 = vunpack.c.l.b16 %v3552
    %v3902 = vunpack.c.h.b16 %v3552
    %v3903 = vunpack.c.l.b16 %v3553
    %v3904 = vunpack.c.h.b16 %v3553
    %v3905 = vunpack.c.l.b16 %v3554
    %v3906 = vunpack.c.h.b16 %v3554
    %v3907 = vunpack.c.l.b16 %v3555
    %v3908 = vunpack.c.h.b16 %v3555
    %v3909 = vunpack.c.l.b16 %v3556
    %v3910 = vunpack.c.h.b16 %v3556
    %v3911 = vunpack.c.l.b16 %v3557
    %v3912 = vunpack.c.h.b16 %v3557
    %v3913 = vunpack.c.l.b16 %v3558
    %v3914 = vunpack.c.h.b16 %v3558
    %v3915 = vunpack.c.l.b16 %v3559
    %v3916 = vunpack.c.h.b16 %v3559
    %v3917 = vunpack.c.l.b16 %v3560
    %v3918 = vunpack.c.h.b16 %v3560
    %v3919 = vunpack.c.l.b16 %v3561
    %v3920 = vunpack.c.h.b16 %v3561
    %v3921 = vunpack.c.l.b16 %v3562
    %v3922 = vunpack.c.h.b16 %v3562
    %v3923 = vunpack.c.l.b16 %v3563
    %v3924 = vunpack.c.h.b16 %v3563
    %v3925 = vunpack.c.l.b16 %v3564
    %v3926 = vunpack.c.h.b16 %v3564
    %v3927 = vunpack.c.l.b16 %v3565
    %v3928 = vunpack.c.h.b16 %v3565
    %v3929 = vunpack.c.l.b16 %v3566
    %v3930 = vunpack.c.h.b16 %v3566
    %v3931 = vunpack.c.l.b16 %v3567
    %v3932 = vunpack.c.h.b16 %v3567
    %v3933 = vunpack.c.l.b16 %v3568
    %v3934 = vunpack.c.h.b16 %v3568
    %v3935 = vunpack.c.l.b16 %v3569
    %v3936 = vunpack.c.h.b16 %v3569
    %v3937 = vunpack.c.l.b16 %v3570
    %v3938 = vunpack.c.h.b16 %v3570
    %v3939 = vunpack.c.l.b16 %v3571
    %v3940 = vunpack.c.h.b16 %v3571
    %v3941 = vunpack.c.l.b16 %v3572
    %v3942 = vunpack.c.h.b16 %v3572
    %v3943 = vunpack.c.l.b16 %v3573
    %v3944 = vunpack.c.h.b16 %v3573
    %v3945 = vunpack.c.l.b16 %v3574
    %v3946 = vunpack.c.h.b16 %v3574
    %v3947 = vunpack.c.l.b16 %v3575
    %v3948 = vunpack.c.h.b16 %v3575
    %v3949 = vunpack.c.l.b16 %v3576
    %v3950 = vunpack.c.h.b16 %v3576
    %v3951 = vunpack.c.l.b16 %v3577
    %v3952 = vunpack.c.h.b16 %v3577
    %v3953 = vunpack.c.l.b16 %v3578
    %v3954 = vunpack.c.h.b16 %v3578
    %v3955 = vunpack.c.l.b16 %v3579
    %v3956 = vunpack.c.h.b16 %v3579
    %v3957 = vunpack.c.l.b16 %v3580
    %v3958 = vunpack.c.h.b16 %v3580
    %v3959 = vunpack.c.l.b16 %v3581
    %v3960 = vunpack.c.h.b16 %v3581
    %v3961 = vunpack.c.l.b16 %v3582
    %v3962 = vunpack.c.h.b16 %v3582
    %v3963 = vunpack.c.l.b16 %v3583
    %v3964 = vunpack.c.h.b16 %v3583
    %v3965 = vunpack.c.l.b16 %v3584
    %v3966 = vunpack.c.h.b16 %v3584
    %v3967 = vunpack.c.l.b16 %v3585
    %v3968 = vunpack.c.h.b16 %v3585
    %v3969 = vunpack.c.l.b16 %v3586
    %v3970 = vunpack.c.h.b16 %v3586
    %v3971 = vpack.c.b16 %v3719, %v3715
    %v3972 = vpack.c.b16 %v3720, %v3716
    %v3973 = vpack.c.b16 %v3721, %v3717
    %v3974 = vpack.c.b16 %v3722, %v3718
    %v3975 = vpack.c.b16 %v3727, %v3723
    %v3976 = vpack.c.b16 %v3728, %v3724
    %v3977 = vpack.c.b16 %v3729, %v3725
    %v3978 = vpack.c.b16 %v3730, %v3726
    %v3979 = vpack.c.b16 %v3735, %v3731
    %v3980 = vpack.c.b16 %v3736, %v3732
    %v3981 = vpack.c.b16 %v3737, %v3733
    %v3982 = vpack.c.b16 %v3738, %v3734
    %v3983 = vpack.c.b16 %v3743, %v3739
    %v3984 = vpack.c.b16 %v3744, %v3740
    %v3985 = vpack.c.b16 %v3745, %v3741
    %v3986 = vpack.c.b16 %v3746, %v3742
    %v3987 = vpack.c.b16 %v3751, %v3747
    %v3988 = vpack.c.b16 %v3752, %v3748
    %v3989 = vpack.c.b16 %v3753, %v3749
    %v3990 = vpack.c.b16 %v3754, %v3750
    %v3991 = vpack.c.b16 %v3759, %v3755
    %v3992 = vpack.c.b16 %v3760, %v3756
    %v3993 = vpack.c.b16 %v3761, %v3757
    %v3994 = vpack.c.b16 %v3762, %v3758
    %v3995 = vpack.c.b16 %v3767, %v3763
    %v3996 = vpack.c.b16 %v3768, %v3764
    %v3997 = vpack.c.b16 %v3769, %v3765
    %v3998 = vpack.c.b16 %v3770, %v3766
    %v3999 = vpack.c.b16 %v3775, %v3771
    %v4000 = vpack.c.b16 %v3776, %v3772
    %v4001 = vpack.c.b16 %v3777, %v3773
    %v4002 = vpack.c.b16 %v3778, %v3774
    %v4003 = vpack.c.b16 %v3783, %v3779
    %v4004 = vpack.c.b16 %v3784, %v3780
    %v4005 = vpack.c.b16 %v3785, %v3781
    %v4006 = vpack.c.b16 %v3786, %v3782
    %v4007 = vpack.c.b16 %v3791, %v3787
    %v4008 = vpack.c.b16 %v3792, %v3788
    %v4009 = vpack.c.b16 %v3793, %v3789
    %v4010 = vpack.c.b16 %v3794, %v3790
    %v4011 = vpack.c.b16 %v3799, %v3795
    %v4012 = vpack.c.b16 %v3800, %v3796
    %v4013 = vpack.c.b16 %v3801, %v3797
    %v4014 = vpack.c.b16 %v3802, %v3798
    %v4015 = vpack.c.b16 %v3807, %v3803
    %v4016 = vpack.c.b16 %v3808, %v3804
    %v4017 = vpack.c.b16 %v3809, %v3805
    %v4018 = vpack.c.b16 %v3810, %v3806
    %v4019 = vpack.c.b16 %v3815, %v3811
    %v4020 = vpack.c.b16 %v3816, %v3812
    %v4021 = vpack.c.b16 %v3817, %v3813
    %v4022 = vpack.c.b16 %v3818, %v3814
    %v4023 = vpack.c.b16 %v3823, %v3819
    %v4024 = vpack.c.b16 %v3824, %v3820
    %v4025 = vpack.c.b16 %v3825, %v3821
    %v4026 = vpack.c.b16 %v3826, %v3822
    %v4027 = vpack.c.b16 %v3831, %v3827
    %v4028 = vpack.c.b16 %v3832, %v3828
    %v4029 = vpack.c.b16 %v3833, %v3829
    %v4030 = vpack.c.b16 %v3834, %v3830
    %v4031 = vpack.c.b16 %v3839, %v3835
    %v4032 = vpack.c.b16 %v3840, %v3836
    %v4033 = vpack.c.b16 %v3841, %v3837
    %v4034 = vpack.c.b16 %v3842, %v3838
    %v4035 = vpack.c.b16 %v3847, %v3843
    %v4036 = vpack.c.b16 %v3848, %v3844
    %v4037 = vpack.c.b16 %v3849, %v3845
    %v4038 = vpack.c.b16 %v3850, %v3846
    %v4039 = vpack.c.b16 %v3855, %v3851
    %v4040 = vpack.c.b16 %v3856, %v3852
    %v4041 = vpack.c.b16 %v3857, %v3853
    %v4042 = vpack.c.b16 %v3858, %v3854
    %v4043 = vpack.c.b16 %v3863, %v3859
    %v4044 = vpack.c.b16 %v3864, %v3860
    %v4045 = vpack.c.b16 %v3865, %v3861
    %v4046 = vpack.c.b16 %v3866, %v3862
    %v4047 = vpack.c.b16 %v3871, %v3867
    %v4048 = vpack.c.b16 %v3872, %v3868
    %v4049 = vpack.c.b16 %v3873, %v3869
    %v4050 = vpack.c.b16 %v3874, %v3870
    %v4051 = vpack.c.b16 %v3879, %v3875
    %v4052 = vpack.c.b16 %v3880, %v3876
    %v4053 = vpack.c.b16 %v3881, %v3877
    %v4054 = vpack.c.b16 %v3882, %v3878
    %v4055 = vpack.c.b16 %v3887, %v3883
    %v4056 = vpack.c.b16 %v3888, %v3884
    %v4057 = vpack.c.b16 %v3889, %v3885
    %v4058 = vpack.c.b16 %v3890, %v3886
    %v4059 = vpack.c.b16 %v3895, %v3891
    %v4060 = vpack.c.b16 %v3896, %v3892
    %v4061 = vpack.c.b16 %v3897, %v3893
    %v4062 = vpack.c.b16 %v3898, %v3894
    %v4063 = vpack.c.b16 %v3903, %v3899
    %v4064 = vpack.c.b16 %v3904, %v3900
    %v4065 = vpack.c.b16 %v3905, %v3901
    %v4066 = vpack.c.b16 %v3906, %v3902
    %v4067 = vpack.c.b16 %v3911, %v3907
    %v4068 = vpack.c.b16 %v3912, %v3908
    %v4069 = vpack.c.b16 %v3913, %v3909
    %v4070 = vpack.c.b16 %v3914, %v3910
    %v4071 = vpack.c.b16 %v3919, %v3915
    %v4072 = vpack.c.b16 %v3920, %v3916
    %v4073 = vpack.c.b16 %v3921, %v3917
    %v4074 = vpack.c.b16 %v3922, %v3918
    %v4075 = vpack.c.b16 %v3927, %v3923
    %v4076 = vpack.c.b16 %v3928, %v3924
    %v4077 = vpack.c.b16 %v3929, %v3925
    %v4078 = vpack.c.b16 %v3930, %v3926
    %v4079 = vpack.c.b16 %v3935, %v3931
    %v4080 = vpack.c.b16 %v3936, %v3932
    %v4081 = vpack.c.b16 %v3937, %v3933
    %v4082 = vpack.c.b16 %v3938, %v3934
    %v4083 = vpack.c.b16 %v3943, %v3939
    %v4084 = vpack.c.b16 %v3944, %v3940
    %v4085 = vpack.c.b16 %v3945, %v3941
    %v4086 = vpack.c.b16 %v3946, %v3942
    %v4087 = vpack.c.b16 %v3951, %v3947
    %v4088 = vpack.c.b16 %v3952, %v3948
    %v4089 = vpack.c.b16 %v3953, %v3949
    %v4090 = vpack.c.b16 %v3954, %v3950
    %v4091 = vpack.c.b16 %v3959, %v3955
    %v4092 = vpack.c.b16 %v3960, %v3956
    %v4093 = vpack.c.b16 %v3961, %v3957
    %v4094 = vpack.c.b16 %v3962, %v3958
    %v4095 = vpack.c.b16 %v3967, %v3963
    %v4096 = vpack.c.b16 %v3968, %v3964
    %v4097 = vpack.c.b16 %v3969, %v3965
    %v4098 = vpack.c.b16 %v3970, %v3966
    %4227 = vmatprep.subr.bf16.mxu0 %v4000
    %4228 = vmatpush1.bf16.msra.mxu0 %v3999
    %4229 = vmatprep.subr.bf16.mxu0 %v3996
    %4230 = vmatpush1.bf16.msra.mxu0 %v3995
    %4231 = vmatprep.subr.bf16.mxu0 %v3992
    %4232 = vmatpush1.bf16.msra.mxu0 %v3991
    %4233 = vmatprep.subr.bf16.mxu0 %v3988
    %4234 = vmatpush1.bf16.msra.mxu0 %v3987
    %4235 = vmatprep.subr.bf16.mxu0 %v3984
    %4236 = vmatpush1.bf16.msra.mxu0 %v3983
    %4237 = vmatprep.subr.bf16.mxu0 %v3980
    %4238 = vmatpush1.bf16.msra.mxu0 %v3979
    %4239 = vmatprep.subr.bf16.mxu0 %v3976
    %4240 = vmatpush1.bf16.msra.mxu0 %v3975
    %4241 = vmatprep.subr.bf16.mxu0 %v3972
    %4242 = vmatpush1.bf16.msra.mxu0 %v3971
    %4243 = vmatprep.subr.bf16.mxu0 %v4032
    %4244 = vmatpush2.bf16.msra.mxu0 %v4031
    %4245 = vmatprep.subr.bf16.mxu0 %v4028
    %4246 = vmatpush2.bf16.msra.mxu0 %v4027
    %4247 = vmatprep.subr.bf16.mxu0 %v4024
    %4248 = vmatpush2.bf16.msra.mxu0 %v4023
    %4249 = vmatprep.subr.bf16.mxu0 %v4020
    %4250 = vmatpush2.bf16.msra.mxu0 %v4019
    %4251 = vmatprep.subr.bf16.mxu0 %v4016
    %4252 = vmatpush2.bf16.msra.mxu0 %v4015
    %4253 = vmatprep.subr.bf16.mxu0 %v4012
    %4254 = vmatpush2.bf16.msra.mxu0 %v4011
    %4255 = vmatprep.subr.bf16.mxu0 %v4008
    %4256 = vmatpush2.bf16.msra.mxu0 %v4007
    %4257 = vmatprep.subr.bf16.mxu0 %v4004
    %4258 = vmatpush2.bf16.msra.mxu0 %v4003
    %4259 = vmatprep.mubr.bf16.mxu0 %v3456
    %4260 = vmatmul.mubr.bf16.gmra.mxu0 %v3455
    %v4261 = vpop.f32.mrf.mxu0
    %v4262 = vadd.f32 0.0, %v4261
    %v4263 = vpop.f32.mrf.mxu0
    %v4264 = vadd.f32 0.0, %v4263
    %v4265 = vpop.f32.mrf.mxu0
    %v4266 = vpop.f32.mrf.mxu0
    %4267 = vdwg.mxu0
    %4268 = vmatprep.subr.bf16.mxu0 %v4064
    %4269 = vmatpush1.bf16.msra.mxu0 %v4063
    %4270 = vmatprep.subr.bf16.mxu0 %v4060
    %4271 = vmatpush1.bf16.msra.mxu0 %v4059
    %4272 = vmatprep.subr.bf16.mxu0 %v4056
    %4273 = vmatpush1.bf16.msra.mxu0 %v4055
    %4274 = vmatprep.subr.bf16.mxu0 %v4052
    %4275 = vmatpush1.bf16.msra.mxu0 %v4051
    %4276 = vmatprep.subr.bf16.mxu0 %v4048
    %4277 = vmatpush1.bf16.msra.mxu0 %v4047
    %4278 = vmatprep.subr.bf16.mxu0 %v4044
    %4279 = vmatpush1.bf16.msra.mxu0 %v4043
    %4280 = vmatprep.subr.bf16.mxu0 %v4040
    %4281 = vmatpush1.bf16.msra.mxu0 %v4039
    %4282 = vmatprep.subr.bf16.mxu0 %v4036
    %4283 = vmatpush1.bf16.msra.mxu0 %v4035
    %4284 = vmatprep.subr.bf16.mxu0 %v4096
    %4285 = vmatpush2.bf16.msra.mxu0 %v4095
    %4286 = vmatprep.subr.bf16.mxu0 %v4092
    %4287 = vmatpush2.bf16.msra.mxu0 %v4091
    %4288 = vmatprep.subr.bf16.mxu0 %v4088
    %4289 = vmatpush2.bf16.msra.mxu0 %v4087
    %4290 = vmatprep.subr.bf16.mxu0 %v4084
    %4291 = vmatpush2.bf16.msra.mxu0 %v4083
    %4292 = vmatprep.subr.bf16.mxu0 %v4080
    %4293 = vmatpush2.bf16.msra.mxu0 %v4079
    %4294 = vmatprep.subr.bf16.mxu0 %v4076
    %4295 = vmatpush2.bf16.msra.mxu0 %v4075
    %4296 = vmatprep.subr.bf16.mxu0 %v4072
    %4297 = vmatpush2.bf16.msra.mxu0 %v4071
    %4298 = vmatprep.subr.bf16.mxu0 %v4068
    %4299 = vmatpush2.bf16.msra.mxu0 %v4067
    %4300 = vmatprep.mubr.bf16.mxu0 %v3458
    %4301 = vmatmul.mubr.bf16.gmra.mxu0 %v3457
    %v4302 = vpop.f32.mrf.mxu0
    %v4303 = vadd.f32 %v4262, %v4302
    %v4304 = vpop.f32.mrf.mxu0
    %v4305 = vadd.f32 %v4264, %v4304
    %v4306 = vpop.f32.mrf.mxu0
    %v4307 = vpop.f32.mrf.mxu0
    %4308 = vdwg.mxu0
    %4309 = vmatprep.subr.bf16.mxu0 %v4002
    %4310 = vmatpush1.bf16.msra.mxu0 %v4001
    %4311 = vmatprep.subr.bf16.mxu0 %v3998
    %4312 = vmatpush1.bf16.msra.mxu0 %v3997
    %4313 = vmatprep.subr.bf16.mxu0 %v3994
    %4314 = vmatpush1.bf16.msra.mxu0 %v3993
    %4315 = vmatprep.subr.bf16.mxu0 %v3990
    %4316 = vmatpush1.bf16.msra.mxu0 %v3989
    %4317 = vmatprep.subr.bf16.mxu0 %v3986
    %4318 = vmatpush1.bf16.msra.mxu0 %v3985
    %4319 = vmatprep.subr.bf16.mxu0 %v3982
    %4320 = vmatpush1.bf16.msra.mxu0 %v3981
    %4321 = vmatprep.subr.bf16.mxu0 %v3978
    %4322 = vmatpush1.bf16.msra.mxu0 %v3977
    %4323 = vmatprep.subr.bf16.mxu0 %v3974
    %4324 = vmatpush1.bf16.msra.mxu0 %v3973
    %4325 = vmatprep.subr.bf16.mxu0 %v4034
    %4326 = vmatpush2.bf16.msra.mxu0 %v4033
    %4327 = vmatprep.subr.bf16.mxu0 %v4030
    %4328 = vmatpush2.bf16.msra.mxu0 %v4029
    %4329 = vmatprep.subr.bf16.mxu0 %v4026
    %4330 = vmatpush2.bf16.msra.mxu0 %v4025
    %4331 = vmatprep.subr.bf16.mxu0 %v4022
    %4332 = vmatpush2.bf16.msra.mxu0 %v4021
    %4333 = vmatprep.subr.bf16.mxu0 %v4018
    %4334 = vmatpush2.bf16.msra.mxu0 %v4017
    %4335 = vmatprep.subr.bf16.mxu0 %v4014
    %4336 = vmatpush2.bf16.msra.mxu0 %v4013
    %4337 = vmatprep.subr.bf16.mxu0 %v4010
    %4338 = vmatpush2.bf16.msra.mxu0 %v4009
    %4339 = vmatprep.subr.bf16.mxu0 %v4006
    %4340 = vmatpush2.bf16.msra.mxu0 %v4005
    %4341 = vmatprep.mubr.bf16.mxu0 %v3456
    %4342 = vmatmul.mubr.bf16.gmra.mxu0 %v3455
    %v4343 = vpop.f32.mrf.mxu0
    %v4344 = vadd.f32 0.0, %v4343
    %v4345 = vpop.f32.mrf.mxu0
    %v4346 = vadd.f32 0.0, %v4345
    %v4347 = vpop.f32.mrf.mxu0
    %v4348 = vpop.f32.mrf.mxu0
    %4349 = vdwg.mxu0
    %4350 = vmatprep.subr.bf16.mxu0 %v4066
    %4351 = vmatpush1.bf16.msra.mxu0 %v4065
    %4352 = vmatprep.subr.bf16.mxu0 %v4062
    %4353 = vmatpush1.bf16.msra.mxu0 %v4061
    %4354 = vmatprep.subr.bf16.mxu0 %v4058
    %4355 = vmatpush1.bf16.msra.mxu0 %v4057
    %4356 = vmatprep.subr.bf16.mxu0 %v4054
    %4357 = vmatpush1.bf16.msra.mxu0 %v4053
    %4358 = vmatprep.subr.bf16.mxu0 %v4050
    %4359 = vmatpush1.bf16.msra.mxu0 %v4049
    %4360 = vmatprep.subr.bf16.mxu0 %v4046
    %4361 = vmatpush1.bf16.msra.mxu0 %v4045
    %4362 = vmatprep.subr.bf16.mxu0 %v4042
    %4363 = vmatpush1.bf16.msra.mxu0 %v4041
    %4364 = vmatprep.subr.bf16.mxu0 %v4038
    %4365 = vmatpush1.bf16.msra.mxu0 %v4037
    %4366 = vmatprep.subr.bf16.mxu0 %v4098
    %4367 = vmatpush2.bf16.msra.mxu0 %v4097
    %4368 = vmatprep.subr.bf16.mxu0 %v4094
    %4369 = vmatpush2.bf16.msra.mxu0 %v4093
    %4370 = vmatprep.subr.bf16.mxu0 %v4090
    %4371 = vmatpush2.bf16.msra.mxu0 %v4089
    %4372 = vmatprep.subr.bf16.mxu0 %v4086
    %4373 = vmatpush2.bf16.msra.mxu0 %v4085
    %4374 = vmatprep.subr.bf16.mxu0 %v4082
    %4375 = vmatpush2.bf16.msra.mxu0 %v4081
    %4376 = vmatprep.subr.bf16.mxu0 %v4078
    %4377 = vmatpush2.bf16.msra.mxu0 %v4077
    %4378 = vmatprep.subr.bf16.mxu0 %v4074
    %4379 = vmatpush2.bf16.msra.mxu0 %v4073
    %4380 = vmatprep.subr.bf16.mxu0 %v4070
    %4381 = vmatpush2.bf16.msra.mxu0 %v4069
    %4382 = vmatprep.mubr.bf16.mxu0 %v3458
    %4383 = vmatmul.mubr.bf16.gmra.mxu0 %v3457
    %v4384 = vpop.f32.mrf.mxu0
    %v4385 = vadd.f32 %v4344, %v4384
    %v4386 = vpop.f32.mrf.mxu0
    %v4387 = vadd.f32 %v4346, %v4386
    %v4388 = vpop.f32.mrf.mxu0
    %v4389 = vpop.f32.mrf.mxu0
    %4390 = vdwg.mxu0
    %v4391 = vmax.f32 %v4303, %v4305
    %v4392 = vmax.f32 %v4391, %v4385
    %v4393 = vmax.f32 %v4392, %v4387
    %v4394 = vld [vmem:[%s6] sm:$0x1]
    %v4396 = vlaneseq
    %v4397 = vshrl.u32 %v4396, 7
    %v4398 = vsub.s32 0, %v4397
    %v4399 = vrot.slane %v4394, %v4398
    %v4401 = vadd.f32 %v4393, %v4399
    %v4402 = vmax.f32 %v4401, 0.0
    %v4403 = vpack.c.bf16 %v4402, %v4402
    %v4404 = vld [vmem:[%s7] sm:$0xf]
    %v4405 = vld [vmem:[%s7 + $0x4] sm:$0xf]
    %v4406 = vld [vmem:[%s7 + $0x8] sm:$0xf]
    %v4407 = vld [vmem:[%s7 + $0xc] sm:$0xf]
    %v4408 = vld [vmem:[%s7 + $0x10] sm:$0xf]
    %v4409 = vld [vmem:[%s7 + $0x14] sm:$0xf]
    %v4410 = vld [vmem:[%s7 + $0x18] sm:$0xf]
    %v4411 = vld [vmem:[%s7 + $0x1c] sm:$0xf]
    %v4412 = vld [vmem:[%s7 + $0x20] sm:$0xf]
    %v4413 = vld [vmem:[%s7 + $0x24] sm:$0xf]
    %v4414 = vld [vmem:[%s7 + $0x28] sm:$0xf]
    %v4415 = vld [vmem:[%s7 + $0x2c] sm:$0xf]
    %v4416 = vld [vmem:[%s7 + $0x30] sm:$0xf]
    %v4417 = vld [vmem:[%s7 + $0x34] sm:$0xf]
    %v4418 = vld [vmem:[%s7 + $0x38] sm:$0xf]
    %v4419 = vld [vmem:[%s7 + $0x3c] sm:$0xf]
    %v4420 = vld [vmem:[%s8] sm:$0x1]
    %v4422 = vlaneseq
    %v4423 = vshrl.u32 %v4422, 7
    %v4424 = vsub.s32 0, %v4423
    %v4425 = vrot.slane %v4420, %v4424
    %v4443 = vunpack.c.l.b16 %v4404
    %v4444 = vunpack.c.l.b16 %v4405
    %v4445 = vunpack.c.l.b16 %v4406
    %v4446 = vunpack.c.l.b16 %v4407
    %v4447 = vunpack.c.l.b16 %v4408
    %v4448 = vunpack.c.l.b16 %v4409
    %v4449 = vunpack.c.l.b16 %v4410
    %v4450 = vunpack.c.l.b16 %v4411
    %v4451 = vunpack.c.l.b16 %v4412
    %v4452 = vunpack.c.l.b16 %v4413
    %v4453 = vunpack.c.l.b16 %v4414
    %v4454 = vunpack.c.l.b16 %v4415
    %v4455 = vunpack.c.l.b16 %v4416
    %v4456 = vunpack.c.l.b16 %v4417
    %v4457 = vunpack.c.l.b16 %v4418
    %v4458 = vunpack.c.l.b16 %v4419
    %v4459 = vpack.c.b16 %v4444, %v4443
    %v4460 = vpack.c.b16 %v4446, %v4445
    %v4461 = vpack.c.b16 %v4448, %v4447
    %v4462 = vpack.c.b16 %v4450, %v4449
    %v4463 = vpack.c.b16 %v4452, %v4451
    %v4464 = vpack.c.b16 %v4454, %v4453
    %v4465 = vpack.c.b16 %v4456, %v4455
    %v4466 = vpack.c.b16 %v4458, %v4457
    %4475 = vmatprep.subr.bf16.mxu0 0
    %4476 = vmatpush1.bf16.msra.mxu0 %v4466
    %4477 = vmatprep.subr.bf16.mxu0 0
    %4478 = vmatpush1.bf16.msra.mxu0 %v4465
    %4479 = vmatprep.subr.bf16.mxu0 0
    %4480 = vmatpush1.bf16.msra.mxu0 %v4464
    %4481 = vmatprep.subr.bf16.mxu0 0
    %4482 = vmatpush1.bf16.msra.mxu0 %v4463
    %4483 = vmatprep.subr.bf16.mxu0 0
    %4484 = vmatpush1.bf16.msra.mxu0 %v4462
    %4485 = vmatprep.subr.bf16.mxu0 0
    %4486 = vmatpush1.bf16.msra.mxu0 %v4461
    %4487 = vmatprep.subr.bf16.mxu0 0
    %4488 = vmatpush1.bf16.msra.mxu0 %v4460
    %4489 = vmatprep.subr.bf16.mxu0 0
    %4490 = vmatpush1.bf16.msra.mxu0 %v4459
    %4491 = vmatprep.subr.bf16.mxu0 0
    %4492 = vmatpush2.bf16.msra.mxu0 0
    %4493 = vmatprep.subr.bf16.mxu0 0
    %4494 = vmatpush2.bf16.msra.mxu0 0
    %4495 = vmatprep.subr.bf16.mxu0 0
    %4496 = vmatpush2.bf16.msra.mxu0 0
    %4497 = vmatprep.subr.bf16.mxu0 0
    %4498 = vmatpush2.bf16.msra.mxu0 0
    %4499 = vmatprep.subr.bf16.mxu0 0
    %4500 = vmatpush2.bf16.msra.mxu0 0
    %4501 = vmatprep.subr.bf16.mxu0 0
    %4502 = vmatpush2.bf16.msra.mxu0 0
    %4503 = vmatprep.subr.bf16.mxu0 0
    %4504 = vmatpush2.bf16.msra.mxu0 0
    %4505 = vmatprep.subr.bf16.mxu0 0
    %4506 = vmatpush2.bf16.msra.mxu0 0
    %4507 = vmatprep.mubr.bf16.mxu0 0
    %4508 = vmatmul.mubr.bf16.gmra.mxu0 %v4403
    %v4509 = vpop.f32.mrf.mxu0
    %v4510 = vadd.f32 %v4425, %v4509
    %v4511 = vpop.f32.mrf.mxu0
    %v4512 = vpop.f32.mrf.mxu0
    %v4513 = vpop.f32.mrf.mxu0
    %4514 = vdwg.mxu0
    %v4515 = vmax.f32 %v4510, 0.0
    %v4516 = vpack.c.bf16 %v4515, %v4515
    %v4517 = vld [vmem:[#allocation6] sm:$0xf]
    %v4518 = vld [vmem:[#allocation6 + $0x4] sm:$0xf]
    %v4519 = vld [vmem:[#allocation6 + $0x8] sm:$0xf]
    %v4520 = vld [vmem:[#allocation6 + $0xc] sm:$0xf]
    %v4521 = vld [vmem:[#allocation6 + $0x10] sm:$0xf]
    %v4522 = vld [vmem:[#allocation6 + $0x14] sm:$0xf]
    %v4523 = vld [vmem:[#allocation6 + $0x18] sm:$0xf]
    %v4524 = vld [vmem:[#allocation6 + $0x1c] sm:$0xf]
    %v4525 = vld [vmem:[#allocation6 + $0x20] sm:$0xf]
    %v4526 = vld [vmem:[#allocation6 + $0x24] sm:$0xf]
    %v4527 = vld [vmem:[#allocation6 + $0x28] sm:$0xf]
    %v4528 = vld [vmem:[#allocation6 + $0x2c] sm:$0xf]
    %v4529 = vld [vmem:[#allocation6 + $0x30] sm:$0xf]
    %v4530 = vld [vmem:[#allocation6 + $0x34] sm:$0xf]
    %v4531 = vld [vmem:[#allocation6 + $0x38] sm:$0xf]
    %v4532 = vld [vmem:[#allocation6 + $0x3c] sm:$0xf]
    %v4533 = vld [vmem:[%s10] sm:$0x1]
    %v4535 = vlaneseq
    %v4536 = vshrl.u32 %v4535, 7
    %v4537 = vsub.s32 0, %v4536
    %v4538 = vrot.slane %v4533, %v4537
    %v4556 = vunpack.c.l.b16 %v4517
    %v4557 = vunpack.c.l.b16 %v4518
    %v4558 = vunpack.c.l.b16 %v4519
    %v4559 = vunpack.c.l.b16 %v4520
    %v4560 = vunpack.c.l.b16 %v4521
    %v4561 = vunpack.c.l.b16 %v4522
    %v4562 = vunpack.c.l.b16 %v4523
    %v4563 = vunpack.c.l.b16 %v4524
    %v4564 = vunpack.c.l.b16 %v4525
    %v4565 = vunpack.c.l.b16 %v4526
    %v4566 = vunpack.c.l.b16 %v4527
    %v4567 = vunpack.c.l.b16 %v4528
    %v4568 = vunpack.c.l.b16 %v4529
    %v4569 = vunpack.c.l.b16 %v4530
    %v4570 = vunpack.c.l.b16 %v4531
    %v4571 = vunpack.c.l.b16 %v4532
    %v4572 = vpack.c.b16 %v4557, %v4556
    %v4573 = vpack.c.b16 %v4559, %v4558
    %v4574 = vpack.c.b16 %v4561, %v4560
    %v4575 = vpack.c.b16 %v4563, %v4562
    %v4576 = vpack.c.b16 %v4565, %v4564
    %v4577 = vpack.c.b16 %v4567, %v4566
    %v4578 = vpack.c.b16 %v4569, %v4568
    %v4579 = vpack.c.b16 %v4571, %v4570
    %4588 = vmatprep.subr.bf16.mxu0 0
    %4589 = vmatpush1.bf16.msra.mxu0 %v4579
    %4590 = vmatprep.subr.bf16.mxu0 0
    %4591 = vmatpush1.bf16.msra.mxu0 %v4578
    %4592 = vmatprep.subr.bf16.mxu0 0
    %4593 = vmatpush1.bf16.msra.mxu0 %v4577
    %4594 = vmatprep.subr.bf16.mxu0 0
    %4595 = vmatpush1.bf16.msra.mxu0 %v4576
    %4596 = vmatprep.subr.bf16.mxu0 0
    %4597 = vmatpush1.bf16.msra.mxu0 %v4575
    %4598 = vmatprep.subr.bf16.mxu0 0
    %4599 = vmatpush1.bf16.msra.mxu0 %v4574
    %4600 = vmatprep.subr.bf16.mxu0 0
    %4601 = vmatpush1.bf16.msra.mxu0 %v4573
    %4602 = vmatprep.subr.bf16.mxu0 0
    %4603 = vmatpush1.bf16.msra.mxu0 %v4572
    %4604 = vmatprep.subr.bf16.mxu0 0
    %4605 = vmatpush2.bf16.msra.mxu0 0
    %4606 = vmatprep.subr.bf16.mxu0 0
    %4607 = vmatpush2.bf16.msra.mxu0 0
    %4608 = vmatprep.subr.bf16.mxu0 0
    %4609 = vmatpush2.bf16.msra.mxu0 0
    %4610 = vmatprep.subr.bf16.mxu0 0
    %4611 = vmatpush2.bf16.msra.mxu0 0
    %4612 = vmatprep.subr.bf16.mxu0 0
    %4613 = vmatpush2.bf16.msra.mxu0 0
    %4614 = vmatprep.subr.bf16.mxu0 0
    %4615 = vmatpush2.bf16.msra.mxu0 0
    %4616 = vmatprep.subr.bf16.mxu0 0
    %4617 = vmatpush2.bf16.msra.mxu0 0
    %4618 = vmatprep.subr.bf16.mxu0 0
    %4619 = vmatpush2.bf16.msra.mxu0 0
    %4620 = vmatprep.mubr.bf16.mxu0 0
    %4621 = vmatmul.mubr.bf16.gmra.mxu0 %v4516
    %v4622 = vpop.f32.mrf.mxu0
    %v4623 = vadd.f32 %v4538, %v4622
    %v4624 = vpop.f32.mrf.mxu0
    %v4625 = vpop.f32.mrf.mxu0
    %v4626 = vpop.f32.mrf.mxu0
    %4627 = vdwg.mxu0
    %v4628 = vmax.f32 %v4623, 0.0
    %v4629 = vpack.c.bf16 %v4628, %v4628
    %v4630 = vld [vmem:[#allocation7] sm:$0xf]
    %v4631 = vld [vmem:[#allocation7 + $0x4] sm:$0xf]
    %v4632 = vld [vmem:[#allocation7 + $0x8] sm:$0xf]
    %v4633 = vld [vmem:[#allocation7 + $0xc] sm:$0xf]
    %v4634 = vld [vmem:[#allocation7 + $0x10] sm:$0xf]
    %v4635 = vld [vmem:[#allocation7 + $0x14] sm:$0xf]
    %v4636 = vld [vmem:[#allocation7 + $0x18] sm:$0xf]
    %v4637 = vld [vmem:[#allocation7 + $0x1c] sm:$0xf]
    %v4638 = vld [vmem:[#allocation7 + $0x20] sm:$0xf]
    %v4639 = vld [vmem:[#allocation7 + $0x24] sm:$0xf]
    %v4640 = vld [vmem:[#allocation7 + $0x28] sm:$0xf]
    %v4641 = vld [vmem:[#allocation7 + $0x2c] sm:$0xf]
    %v4642 = vld [vmem:[#allocation7 + $0x30] sm:$0xf]
    %v4643 = vld [vmem:[#allocation7 + $0x34] sm:$0xf]
    %v4644 = vld [vmem:[#allocation7 + $0x38] sm:$0xf]
    %v4645 = vld [vmem:[#allocation7 + $0x3c] sm:$0xf]
    %v4646 = vld [vmem:[%s12] sm:$0x1]
    %v4648 = vlaneseq
    %v4649 = vshrl.u32 %v4648, 7
    %v4650 = vsub.s32 0, %v4649
    %v4651 = vrot.slane %v4646, %v4650
    %v4669 = vunpack.c.l.b16 %v4630
    %v4670 = vunpack.c.l.b16 %v4631
    %v4671 = vunpack.c.l.b16 %v4632
    %v4672 = vunpack.c.l.b16 %v4633
    %v4673 = vunpack.c.l.b16 %v4634
    %v4674 = vunpack.c.l.b16 %v4635
    %v4675 = vunpack.c.l.b16 %v4636
    %v4676 = vunpack.c.l.b16 %v4637
    %v4677 = vunpack.c.l.b16 %v4638
    %v4678 = vunpack.c.l.b16 %v4639
    %v4679 = vunpack.c.l.b16 %v4640
    %v4680 = vunpack.c.l.b16 %v4641
    %v4681 = vunpack.c.l.b16 %v4642
    %v4682 = vunpack.c.l.b16 %v4643
    %v4683 = vunpack.c.l.b16 %v4644
    %v4684 = vunpack.c.l.b16 %v4645
    %v4685 = vpack.c.b16 %v4670, %v4669
    %v4686 = vpack.c.b16 %v4672, %v4671
    %v4687 = vpack.c.b16 %v4674, %v4673
    %v4688 = vpack.c.b16 %v4676, %v4675
    %v4689 = vpack.c.b16 %v4678, %v4677
    %v4690 = vpack.c.b16 %v4680, %v4679
    %v4691 = vpack.c.b16 %v4682, %v4681
    %v4692 = vpack.c.b16 %v4684, %v4683
    %4701 = vmatprep.subr.bf16.mxu0 0
    %4702 = vmatpush1.bf16.msra.mxu0 %v4692
    %4703 = vmatprep.subr.bf16.mxu0 0
    %4704 = vmatpush1.bf16.msra.mxu0 %v4691
    %4705 = vmatprep.subr.bf16.mxu0 0
    %4706 = vmatpush1.bf16.msra.mxu0 %v4690
    %4707 = vmatprep.subr.bf16.mxu0 0
    %4708 = vmatpush1.bf16.msra.mxu0 %v4689
    %4709 = vmatprep.subr.bf16.mxu0 0
    %4710 = vmatpush1.bf16.msra.mxu0 %v4688
    %4711 = vmatprep.subr.bf16.mxu0 0
    %4712 = vmatpush1.bf16.msra.mxu0 %v4687
    %4713 = vmatprep.subr.bf16.mxu0 0
    %4714 = vmatpush1.bf16.msra.mxu0 %v4686
    %4715 = vmatprep.subr.bf16.mxu0 0
    %4716 = vmatpush1.bf16.msra.mxu0 %v4685
    %4717 = vmatprep.subr.bf16.mxu0 0
    %4718 = vmatpush2.bf16.msra.mxu0 0
    %4719 = vmatprep.subr.bf16.mxu0 0
    %4720 = vmatpush2.bf16.msra.mxu0 0
    %4721 = vmatprep.subr.bf16.mxu0 0
    %4722 = vmatpush2.bf16.msra.mxu0 0
    %4723 = vmatprep.subr.bf16.mxu0 0
    %4724 = vmatpush2.bf16.msra.mxu0 0
    %4725 = vmatprep.subr.bf16.mxu0 0
    %4726 = vmatpush2.bf16.msra.mxu0 0
    %4727 = vmatprep.subr.bf16.mxu0 0
    %4728 = vmatpush2.bf16.msra.mxu0 0
    %4729 = vmatprep.subr.bf16.mxu0 0
    %4730 = vmatpush2.bf16.msra.mxu0 0
    %4731 = vmatprep.subr.bf16.mxu0 0
    %4732 = vmatpush2.bf16.msra.mxu0 0
    %4733 = vmatprep.mubr.bf16.mxu0 0
    %4734 = vmatmul.mubr.bf16.gmra.mxu0 %v4629
    %v4735 = vpop.f32.mrf.mxu0
    %v4736 = vadd.f32 %v4651, %v4735
    %v4737 = vpop.f32.mrf.mxu0
    %v4738 = vpop.f32.mrf.mxu0
    %v4739 = vpop.f32.mrf.mxu0
    %4740 = vdwg.mxu0
    %4741 = vst [vmem:[%s13] sm:$0xff] %v4736
    // Predicated region
    $region70: #{mauro_mnist_convnet.1} parent=1 // pred_check
      _
    $region71: #{mauro_mnist_convnet.1} parent=1 // pred_check_branch
      %4743 = sbr.rel (0) target = $region73
    $region72: #{mauro_mnist_convnet.1} parent=1 // pred_region
      _
    $region73: #{mauro_mnist_convnet.1} parent=1 // pred_fallthru
      _
    // Predicated region
    $region74: #{mauro_mnist_convnet.1} parent=1 // pred_check
      _
    $region75: #{mauro_mnist_convnet.1} parent=1 // pred_check_branch
      %4745 = sbr.rel (0) target = $region77
    $region76: #{mauro_mnist_convnet.1} parent=1 // pred_region
      _
    $region77: #{mauro_mnist_convnet.1} parent=1 // pred_fallthru
      _
    %4746 = vsyncpa [#allocation3], 1
    %4747 = vsyncpa [#allocation5], 1
    %4748 = vsyncpa [#allocation8], 1

</llo_original>
